<compile_context>
chip_gen: v7x
topology: tpu7x:2x2x1
jax: 0.10.0
libtpu: 0.0.40
codegen_flags: <defaults>
</compile_context>

<pallas_src>
import jax
import jax.numpy as jnp
from jax.experimental import pallas as pl
from jax.experimental.pallas import tpu as pltpu

_HIGHEST = jax.lax.Precision.HIGHEST


def _silu(x):
    return x * jax.nn.sigmoid(x)


# ---------------------------------------------------------------------------
# Fused stage kernel
# ---------------------------------------------------------------------------

def _make_stage_kernel(cfg, treedef, n_leaves):
    H, W = cfg['H'], cfg['W']
    Wp = W + 2
    NP = (H + 2) * Wp                    # true flattened padded-spatial size
    NPp = cfg['np_pad']                  # NP rounded up to a multiple of 128
    OFF = 128                            # lane-aligned image offset in scratch
    C3 = cfg['scratch_c']                # max Cin over all 3x3 convs (mult of 8)
    use_c3k = cfg['use_c3k']
    shortcut = cfg['shortcut']

    def conv1x1(x, p):
        # x: (Cin, NPp), w: (Cout, Cin), b: (Cout, 1)
        y = jnp.dot(p['w'][...], x, preferred_element_type=jnp.float32)
        return _silu(y + p['b'][...])

    def conv3x3(x, p, mask, img, col, residual=None):
        # x: (Cin, NPp); p['w']: (Cout, 9*Cin), tap t = dy*3+dx occupies columns
        # [t*Cin, (t+1)*Cin) (same tap order as torch weight[:, :, dy, dx]).
        cin = x.shape[0]
        # Masked write: restores the zero-padding invariant (halo + lane pad).
        img[0:cin, OFF:OFF + NPp] = x * mask
        # im2col: 9 statically shifted windows -> contiguous scratch rows.
        # TODO(synk): build the shifts with pltpu.roll (XLU) instead of
        # unaligned lane slices once verified on-HW.
        for t in range(9):
            dy, dx = t // 3, t % 3
            start = OFF + (dy - 1) * Wp + (dx - 1)
            col[t * cin:(t + 1) * cin, :] = img[0:cin, start:start + NPp]
        y = jnp.dot(p['w'][...], col[0:9 * cin, :],
                    preferred_element_type=jnp.float32)
        y = _silu(y + p['b'][...])
        if residual is not None:
            y = y + residual             # shortcut add fused after activation
        return y

    def bottleneck(x, p, mask, img, col, use_residual):
        h = conv3x3(x, p['cv1'], mask, img, col)
        return conv3x3(h, p['cv2'], mask, img, col,
                       residual=(x if use_residual else None))

    def c3k(x, p, mask, img, col):
        a = conv1x1(x, p['cv1'])
        b = conv1x1(x, p['cv2'])
        for bp in p['m']:
            a = bottleneck(a, bp, mask, img, col, use_residual=shortcut)
        # cv3 over torch.cat([a, b], dim=1) == sum of two matmuls (no concat).
        y = (jnp.dot(p['cv3']['wa'][...], a, preferred_element_type=jnp.float32)
             + jnp.dot(p['cv3']['wb'][...], b, preferred_element_type=jnp.float32)
             + p['cv3']['b'][...])
        return _silu(y)

    def kernel(*refs):
        x_ref, mask_ref = refs[0], refs[1]
        leaf_refs = refs[2:2 + n_leaves]
        o_ref = refs[2 + n_leaves]
        img = refs[3 + n_leaves]         # (C3, OFF + NPp + OFF) image scratch
        col = refs[4 + n_leaves]         # (9*C3, NPp) im2col scratch
        params = jax.tree_util.tree_unflatten(treedef, list(leaf_refs))

        # Zero only the two halo bands; every conv3x3 rewrites the interior.
        img[:, 0:OFF] = jnp.zeros((C3, OFF), jnp.float32)
        img[:, OFF + NPp:OFF + NPp + OFF] = jnp.zeros((C3, OFF), jnp.float32)

        mask = mask_ref[...]             # (1, NPp): 1 on interior, 0 on halo/pad
        x = x_ref[0]                     # (Cin, NPp)

        # Stage cv1 + torch.chunk(.., 2, dim=1): weights pre-split at init.
        x1 = conv1x1(x, params['cv1a'])
        cur = conv1x1(x, params['cv1b'])

        # Stage cv2 over torch.cat(outs, 1): incremental per-chunk accumulation.
        wck = params['cv2']['w_chunks']
        y = (params['cv2']['b'][...]
             + jnp.dot(wck[0][...], x1, preferred_element_type=jnp.float32)
             + jnp.dot(wck[1][...], cur, preferred_element_type=jnp.float32))

        for i, mp in enumerate(params['m']):
            if use_c3k:
                cur = c3k(cur, mp, mask, img, col)
            else:
                cur = bottleneck(cur, mp, mask, img, col, use_residual=shortcut)
            y = y + jnp.dot(wck[2 + i][...], cur,
                            preferred_element_type=jnp.float32)

        # Wrapper crops the halo, so no final mask multiply is needed.
        o_ref[0] = _silu(y).astype(o_ref.dtype)

    return kernel


def yolo_stage_forward(x_nchw, params, cfg):
    """Fused YoloStage forward. x_nchw: (B, Cin, H, W) -> (B, out_dim, H, W)."""
    B, cin, H, W = x_nchw.shape
    assert (H, W) == (cfg['H'], cfg['W'])
    Hp, Wp = H + 2, W + 2
    NP = Hp * Wp
    NPp = cfg['np_pad']
    out_dim = cfg['out_dim']
    C3 = cfg['scratch_c']

    # Zero-pad the spatial halo once, flatten, pad lanes to a multiple of 128.
    xp = jnp.pad(x_nchw, ((0, 0), (0, 0), (1, 1), (1, 1))).reshape(B, cin, NP)
    xp = jnp.pad(xp, ((0, 0), (0, 0), (0, NPp - NP)))
    mask = jnp.pad(jnp.ones((H, W), jnp.float32),
                   ((1, 1), (1, 1))).reshape(1, NP)
    mask = jnp.pad(mask, ((0, 0), (0, NPp - NP)))

    leaves, treedef = jax.tree_util.tree_flatten(params)
    kernel = _make_stage_kernel(cfg, treedef, len(leaves))

    def _full(shape):
        nd = len(shape)
        return pl.BlockSpec(shape, lambda b, _nd=nd: (0,) * _nd)

    # Weight index maps are constant -> the pipeline fetches them once and
    # reuses the buffers across grid steps.
    # TODO(synk): pack the many tiny weight leaves into one contiguous array
    # (static in-kernel slices) to collapse the per-leaf DMA descriptors.
    in_specs = [pl.BlockSpec((1, cin, NPp), lambda b: (b, 0, 0)),
                _full((1, NPp))]
    in_specs += [_full(leaf.shape) for leaf in leaves]

    out = pl.pallas_call(
        kernel,
        out_shape=jax.ShapeDtypeStruct((B, out_dim, NPp), jnp.float32),
        grid=(B,),
        in_specs=in_specs,
        out_specs=pl.BlockSpec((1, out_dim, NPp), lambda b: (b, 0, 0)),
        scratch_shapes=[pltpu.VMEM((C3, 128 + NPp + 128), jnp.float32),   # image
                        pltpu.VMEM((9 * C3, NPp), jnp.float32)],          # im2col
        compiler_params=pltpu.CompilerParams(
            dimension_semantics=("parallel",),        # batch across TCs (v7x)
            vmem_limit_bytes=32 * 1024 * 1024),       # v5e scoped default is 16 MiB
    )(xp, mask, *leaves)

    # TODO(synk): when chaining stages, keep the padded (C, NPp) layout instead
    # of cropping here and re-padding in the next stage.
    out = out[:, :, :NP].reshape(B, out_dim, Hp, Wp)
    return out[:, :, 1:H + 1, 1:W + 1]


# ---------------------------------------------------------------------------
# Deterministic parameter init (Conv + folded eval-mode BatchNorm)
# ---------------------------------------------------------------------------

def _fold_bn(key, cout):
    k1, k2, k3, k4 = jax.random.split(key, 4)
    gamma = 1.0 + 0.1 * jax.random.normal(k1, (cout,), jnp.float32)
    beta = 0.1 * jax.random.normal(k2, (cout,), jnp.float32)
    mean = 0.1 * jax.random.normal(k3, (cout,), jnp.float32)
    var = 1.0 + 0.1 * jnp.abs(jax.random.normal(k4, (cout,), jnp.float32))
    s = gamma / jnp.sqrt(var + 1e-3)
    return s, beta - mean * s


def init_conv1x1(key, cin, cout):
    kw, kbn = jax.random.split(key)
    w = jax.random.normal(kw, (cout, cin), jnp.float32) * (2.0 / cin) ** 0.5
    s, t = _fold_bn(kbn, cout)
    return {'w': w * s[:, None], 'b': t.reshape(cout, 1)}


def init_conv3x3(key, cin, cout):
    # Stored im2col-style: (Cout, 9*Cin); tap t = dy*3+dx at cols [t*Cin,(t+1)*Cin).
    kw, kbn = jax.random.split(key)
    w = jax.random.normal(kw, (cout, 9, cin), jnp.float32) * (2.0 / (9 * cin)) ** 0.5
    s, t = _fold_bn(kbn, cout)
    w = w * s[:, None, None]
    return {'w': w.reshape(cout, 9 * cin), 'b': t.reshape(cout, 1)}


def init_bottleneck(key, cin, cout, expansion):
    inter = int(cout * expansion)
    k1, k2 = jax.random.split(key)
    return {'cv1': init_conv3x3(k1, cin, inter),
            'cv2': init_conv3x3(k2, inter, cout)}


def init_c3k(key, cin, cout, num_blocks=2):
    ic = int(cout * 0.5)
    keys = jax.random.split(key, 3 + num_blocks)
    cv3_full = init_conv1x1(keys[2], 2 * ic, cout)
    cv3 = {'wa': cv3_full['w'][:, :ic], 'wb': cv3_full['w'][:, ic:],
           'b': cv3_full['b']}
    return {'cv1': init_conv1x1(keys[0], cin, ic),
            'cv2': init_conv1x1(keys[1], cin, ic),
            'cv3': cv3,
            'm': [init_bottleneck(keys[3 + i], ic, ic, 1.0)
                  for i in range(num_blocks)]}


def init_yolo_stage(key, in_dim, out_dim, num_blocks=1, use_c3k=True,
                    expansion=0.5, shortcut=True, H=16, W=16):
    inter = int(out_dim * expansion)
    keys = jax.random.split(key, 2 + num_blocks)

    cv1_full = init_conv1x1(keys[0], in_dim, 2 * inter)
    cv1a = {'w': cv1_full['w'][:inter], 'b': cv1_full['b'][:inter]}     # chunk 1
    cv1b = {'w': cv1_full['w'][inter:], 'b': cv1_full['b'][inter:]}     # chunk 2

    cv2_full = init_conv1x1(keys[1], (2 + num_blocks) * inter, out_dim)
    cv2 = {'w_chunks': [cv2_full['w'][:, i * inter:(i + 1) * inter]
                        for i in range(2 + num_blocks)],
           'b': cv2_full['b']}

    m = []
    for i in range(num_blocks):
        if use_c3k:
            m.append(init_c3k(keys[2 + i], inter, inter, 2))
        else:
            m.append(init_bottleneck(keys[2 + i], inter, inter, 0.5))

    params = {'cv1a': cv1a, 'cv1b': cv1b, 'cv2': cv2, 'm': m}

    # Max Cin over all 3x3 convs -> image-scratch rows (sublane multiple of 8).
    c3_max = 8
    for mp in m:
        bns = mp['m'] if use_c3k else [mp]
        for bp in bns:
            c3_max = max(c3_max, bp['cv1']['w'].shape[1] // 9,
                         bp['cv2']['w'].shape[1] // 9)
    c3_max = ((c3_max + 7) // 8) * 8

    NP = (H + 2) * (W + 2)
    np_pad = ((NP + 127) // 128) * 128

    cfg = {'H': H, 'W': W, 'out_dim': out_dim, 'use_c3k': use_c3k,
           'shortcut': shortcut, 'scratch_c': c3_max, 'np_pad': np_pad}
    return params, cfg


# ---------------------------------------------------------------------------
# Pure-JAX reference (for in-script correctness check)
# ---------------------------------------------------------------------------

def _ref_conv1x1(x, p, act=True):
    y = jnp.einsum('oi,bihw->bohw', p['w'], x, precision=_HIGHEST)
    y = y + p['b'].reshape(1, -1, 1, 1)
    return _silu(y) if act else y


def _ref_conv3x3(x, p, act=True):
    B, C, H, W = x.shape
    cout = p['b'].shape[0]
    w = p['w'].reshape(cout, 9, C)
    xp = jnp.pad(x, ((0, 0), (0, 0), (1, 1), (1, 1)))
    y = 0.0
    for t in range(9):
        dy, dx = t // 3, t % 3
        y = y + jnp.einsum('oi,bihw->bohw', w[:, t, :],
                           xp[:, :, dy:dy + H, dx:dx + W], precision=_HIGHEST)
    y = y + p['b'].reshape(1, -1, 1, 1)
    return _silu(y) if act else y


def _ref_bottleneck(x, p, use_residual):
    h = _ref_conv3x3(_ref_conv3x3(x, p['cv1']), p['cv2'])
    return x + h if use_residual else h


def _ref_c3k(x, p, shortcut):
    a = _ref_conv1x1(x, p['cv1'])
    b = _ref_conv1x1(x, p['cv2'])
    for bp in p['m']:
        a = _ref_bottleneck(a, bp, shortcut)
    y = (jnp.einsum('oi,bihw->bohw', p['cv3']['wa'], a, precision=_HIGHEST)
         + jnp.einsum('oi,bihw->bohw', p['cv3']['wb'], b, precision=_HIGHEST)
         + p['cv3']['b'].reshape(1, -1, 1, 1))
    return _silu(y)


def ref_yolo_stage(x, params, cfg):
    outs = [_ref_conv1x1(x, params['cv1a']), _ref_conv1x1(x, params['cv1b'])]
    for mp in params['m']:
        if cfg['use_c3k']:
            outs.append(_ref_c3k(outs[-1], mp, cfg['shortcut']))
        else:
            outs.append(_ref_bottleneck(outs[-1], mp, cfg['shortcut']))
    y = params['cv2']['b'].reshape(1, -1, 1, 1)
    for wc, o in zip(params['cv2']['w_chunks'], outs):
        y = y + jnp.einsum('oi,bihw->bohw', wc, o, precision=_HIGHEST)
    return _silu(y)


# ---------------------------------------------------------------------------

if __name__ == "__main__":
    key = jax.random.PRNGKey(0)
    kx, kp = jax.random.split(key)

    B, Cin, H, W = 2, 8, 16, 16
    out_dim, num_blocks = 32, 1

    x = jax.random.normal(kx, (B, Cin, H, W), jnp.float32)   # NCHW like PyTorch
    params, cfg = init_yolo_stage(kp, Cin, out_dim, num_blocks=num_blocks,
                                  use_c3k=True, shortcut=True, H=H, W=W)

    fwd = jax.jit(lambda inp: yolo_stage_forward(inp, params, cfg))
    out = jax.block_until_ready(fwd(x))

    assert out.shape == (B, out_dim, H, W), out.shape
    assert bool(jnp.all(jnp.isfinite(out)))

    ref = ref_yolo_stage(x, params, cfg)
    max_err = float(jnp.max(jnp.abs(out - ref)))
    # Tolerance covers MXU f32 accumulation-order differences vs the
    # Precision.HIGHEST pure-JAX reference (structural errors are O(1)).
    assert max_err < 5e-3, f"mismatch vs pure-JAX reference: {max_err}"

    print("KERNEL_OK")
</pallas_src>

<mosaic_0001>
module attributes {stable_mosaic.version = 11 : i64} {
  func.func @kernel(%arg0: i32, %arg1: memref<1x8x384xf32, #tpu.memory_space<vmem>>, %arg2: memref<1x384xf32, #tpu.memory_space<vmem>>, %arg3: memref<16x1xf32, #tpu.memory_space<vmem>>, %arg4: memref<16x8xf32, #tpu.memory_space<vmem>>, %arg5: memref<16x1xf32, #tpu.memory_space<vmem>>, %arg6: memref<16x8xf32, #tpu.memory_space<vmem>>, %arg7: memref<32x1xf32, #tpu.memory_space<vmem>>, %arg8: memref<32x16xf32, #tpu.memory_space<vmem>>, %arg9: memref<32x16xf32, #tpu.memory_space<vmem>>, %arg10: memref<32x16xf32, #tpu.memory_space<vmem>>, %arg11: memref<8x1xf32, #tpu.memory_space<vmem>>, %arg12: memref<8x16xf32, #tpu.memory_space<vmem>>, %arg13: memref<8x1xf32, #tpu.memory_space<vmem>>, %arg14: memref<8x16xf32, #tpu.memory_space<vmem>>, %arg15: memref<16x1xf32, #tpu.memory_space<vmem>>, %arg16: memref<16x8xf32, #tpu.memory_space<vmem>>, %arg17: memref<16x8xf32, #tpu.memory_space<vmem>>, %arg18: memref<8x1xf32, #tpu.memory_space<vmem>>, %arg19: memref<8x72xf32, #tpu.memory_space<vmem>>, %arg20: memref<8x1xf32, #tpu.memory_space<vmem>>, %arg21: memref<8x72xf32, #tpu.memory_space<vmem>>, %arg22: memref<8x1xf32, #tpu.memory_space<vmem>>, %arg23: memref<8x72xf32, #tpu.memory_space<vmem>>, %arg24: memref<8x1xf32, #tpu.memory_space<vmem>>, %arg25: memref<8x72xf32, #tpu.memory_space<vmem>>, %arg26: memref<1x32x384xf32, #tpu.memory_space<vmem>>, %arg27: memref<8x640xf32, #tpu.memory_space<vmem>>, %arg28: memref<72x384xf32, #tpu.memory_space<vmem>>) attributes {dimension_semantics = [#tpu.dimension_semantics<parallel>], iteration_bounds = array<i64: 2>, scalar_prefetch = 0 : i64, scratch_operands = 2 : i64, tpu.core_type = #tpu.core_type<tc>, window_params = [{transform_indices = @transform_0, window_bounds = array<i64: 1, 8, 384>}, {pipeline_mode = #tpu.pipeline_mode<synchronous>, transform_indices = @transform_1, window_bounds = array<i64: 1, 384>}, {pipeline_mode = #tpu.pipeline_mode<synchronous>, transform_indices = @transform_2, window_bounds = array<i64: 16, 1>}, {pipeline_mode = #tpu.pipeline_mode<synchronous>, transform_indices = @transform_3, window_bounds = array<i64: 16, 8>}, {pipeline_mode = #tpu.pipeline_mode<synchronous>, transform_indices = @transform_4, window_bounds = array<i64: 16, 1>}, {pipeline_mode = #tpu.pipeline_mode<synchronous>, transform_indices = @transform_5, window_bounds = array<i64: 16, 8>}, {pipeline_mode = #tpu.pipeline_mode<synchronous>, transform_indices = @transform_6, window_bounds = array<i64: 32, 1>}, {pipeline_mode = #tpu.pipeline_mode<synchronous>, transform_indices = @transform_7, window_bounds = array<i64: 32, 16>}, {pipeline_mode = #tpu.pipeline_mode<synchronous>, transform_indices = @transform_8, window_bounds = array<i64: 32, 16>}, {pipeline_mode = #tpu.pipeline_mode<synchronous>, transform_indices = @transform_9, window_bounds = array<i64: 32, 16>}, {pipeline_mode = #tpu.pipeline_mode<synchronous>, transform_indices = @transform_10, window_bounds = array<i64: 8, 1>}, {pipeline_mode = #tpu.pipeline_mode<synchronous>, transform_indices = @transform_11, window_bounds = array<i64: 8, 16>}, {pipeline_mode = #tpu.pipeline_mode<synchronous>, transform_indices = @transform_12, window_bounds = array<i64: 8, 1>}, {pipeline_mode = #tpu.pipeline_mode<synchronous>, transform_indices = @transform_13, window_bounds = array<i64: 8, 16>}, {pipeline_mode = #tpu.pipeline_mode<synchronous>, transform_indices = @transform_14, window_bounds = array<i64: 16, 1>}, {pipeline_mode = #tpu.pipeline_mode<synchronous>, transform_indices = @transform_15, window_bounds = array<i64: 16, 8>}, {pipeline_mode = #tpu.pipeline_mode<synchronous>, transform_indices = @transform_16, window_bounds = array<i64: 16, 8>}, {pipeline_mode = #tpu.pipeline_mode<synchronous>, transform_indices = @transform_17, window_bounds = array<i64: 8, 1>}, {pipeline_mode = #tpu.pipeline_mode<synchronous>, transform_indices = @transform_18, window_bounds = array<i64: 8, 72>}, {pipeline_mode = #tpu.pipeline_mode<synchronous>, transform_indices = @transform_19, window_bounds = array<i64: 8, 1>}, {pipeline_mode = #tpu.pipeline_mode<synchronous>, transform_indices = @transform_20, window_bounds = array<i64: 8, 72>}, {pipeline_mode = #tpu.pipeline_mode<synchronous>, transform_indices = @transform_21, window_bounds = array<i64: 8, 1>}, {pipeline_mode = #tpu.pipeline_mode<synchronous>, transform_indices = @transform_22, window_bounds = array<i64: 8, 72>}, {pipeline_mode = #tpu.pipeline_mode<synchronous>, transform_indices = @transform_23, window_bounds = array<i64: 8, 1>}, {pipeline_mode = #tpu.pipeline_mode<synchronous>, transform_indices = @transform_24, window_bounds = array<i64: 8, 72>}, {transform_indices = @transform_25, window_bounds = array<i64: 1, 32, 384>}]} {
    %cst = arith.constant 0.000000e+00 : f32
    %0 = vector.broadcast %cst : f32 to vector<8x128xf32>
    %c0 = arith.constant 0 : index
    %c0_0 = arith.constant 0 : index
    %1 = vector.load %arg27[%c0, %c0_0] : memref<8x640xf32, #tpu.memory_space<vmem>>, vector<8x128xf32>
    tpu.vector_store %arg27[%c0, %c0_0], %0 {strides = array<i32>} : memref<8x640xf32, #tpu.memory_space<vmem>>, vector<8x128xf32>,
    %cst_1 = arith.constant 0.000000e+00 : f32
    %2 = vector.broadcast %cst_1 : f32 to vector<8x128xf32>
    %c0_2 = arith.constant 0 : index
    %c512 = arith.constant 512 : index
    %3 = vector.load %arg27[%c0_2, %c512] : memref<8x640xf32, #tpu.memory_space<vmem>>, vector<8x128xf32>
    tpu.vector_store %arg27[%c0_2, %c512], %2 {strides = array<i32>} : memref<8x640xf32, #tpu.memory_space<vmem>>, vector<8x128xf32>,
    %c0_3 = arith.constant 0 : index
    %c0_4 = arith.constant 0 : index
    %4 = vector.load %arg2[%c0_3, %c0_4] : memref<1x384xf32, #tpu.memory_space<vmem>>, vector<1x384xf32>
    %c0_5 = arith.constant 0 : index
    %c0_6 = arith.constant 0 : index
    %c0_7 = arith.constant 0 : index
    %5 = vector.load %arg1[%c0_5, %c0_6, %c0_7] : memref<1x8x384xf32, #tpu.memory_space<vmem>>, vector<1x8x384xf32>
    %6 = vector.shape_cast %5 : vector<1x8x384xf32> to vector<8x384xf32>
    %c0_8 = arith.constant 0 : index
    %c0_9 = arith.constant 0 : index
    %7 = vector.load %arg4[%c0_8, %c0_9] : memref<16x8xf32, #tpu.memory_space<vmem>>, vector<16x8xf32>
    %cst_10 = arith.constant dense<0.000000e+00> : vector<16x384xf32>
    %8 = tpu.matmul %7, %6, %cst_10 {dimension_numbers = #tpu.dot_dimension_numbers<[1], [0], [0], [1], [0, 0, 1, 1], [], []>} : vector<16x8xf32>, vector<8x384xf32>, vector<16x384xf32> -> vector<16x384xf32>
    %c0_11 = arith.constant 0 : index
    %c0_12 = arith.constant 0 : index
    %9 = vector.load %arg3[%c0_11, %c0_12] : memref<16x1xf32, #tpu.memory_space<vmem>>, vector<16x1xf32>
    %10 = vector.broadcast %9 : vector<16x1xf32> to vector<16x384xf32>
    %11 = arith.addf %8, %10 : vector<16x384xf32>
    %12 = arith.negf %11 : vector<16x384xf32>
    %13 = math.exp %12 : vector<16x384xf32>
    %cst_13 = arith.constant 1.000000e+00 : f32
    %14 = vector.broadcast %cst_13 : f32 to vector<16x384xf32>
    %15 = arith.addf %14, %13 : vector<16x384xf32>
    %16 = arith.divf %14, %15 : vector<16x384xf32>
    %17 = arith.mulf %11, %16 : vector<16x384xf32>
    %c0_14 = arith.constant 0 : index
    %c0_15 = arith.constant 0 : index
    %18 = vector.load %arg6[%c0_14, %c0_15] : memref<16x8xf32, #tpu.memory_space<vmem>>, vector<16x8xf32>
    %cst_16 = arith.constant dense<0.000000e+00> : vector<16x384xf32>
    %19 = tpu.matmul %18, %6, %cst_16 {dimension_numbers = #tpu.dot_dimension_numbers<[1], [0], [0], [1], [0, 0, 1, 1], [], []>} : vector<16x8xf32>, vector<8x384xf32>, vector<16x384xf32> -> vector<16x384xf32>
    %c0_17 = arith.constant 0 : index
    %c0_18 = arith.constant 0 : index
    %20 = vector.load %arg5[%c0_17, %c0_18] : memref<16x1xf32, #tpu.memory_space<vmem>>, vector<16x1xf32>
    %21 = vector.broadcast %20 : vector<16x1xf32> to vector<16x384xf32>
    %22 = arith.addf %19, %21 : vector<16x384xf32>
    %23 = arith.negf %22 : vector<16x384xf32>
    %24 = math.exp %23 : vector<16x384xf32>
    %cst_19 = arith.constant 1.000000e+00 : f32
    %25 = vector.broadcast %cst_19 : f32 to vector<16x384xf32>
    %26 = arith.addf %25, %24 : vector<16x384xf32>
    %27 = arith.divf %25, %26 : vector<16x384xf32>
    %28 = arith.mulf %22, %27 : vector<16x384xf32>
    %c0_20 = arith.constant 0 : index
    %c0_21 = arith.constant 0 : index
    %29 = vector.load %arg7[%c0_20, %c0_21] : memref<32x1xf32, #tpu.memory_space<vmem>>, vector<32x1xf32>
    %c0_22 = arith.constant 0 : index
    %c0_23 = arith.constant 0 : index
    %30 = vector.load %arg8[%c0_22, %c0_23] : memref<32x16xf32, #tpu.memory_space<vmem>>, vector<32x16xf32>
    %cst_24 = arith.constant dense<0.000000e+00> : vector<32x384xf32>
    %31 = tpu.matmul %30, %17, %cst_24 {dimension_numbers = #tpu.dot_dimension_numbers<[1], [0], [0], [1], [0, 0, 1, 1], [], []>} : vector<32x16xf32>, vector<16x384xf32>, vector<32x384xf32> -> vector<32x384xf32>
    %32 = vector.broadcast %29 : vector<32x1xf32> to vector<32x384xf32>
    %33 = arith.addf %32, %31 : vector<32x384xf32>
    %c0_25 = arith.constant 0 : index
    %c0_26 = arith.constant 0 : index
    %34 = vector.load %arg9[%c0_25, %c0_26] : memref<32x16xf32, #tpu.memory_space<vmem>>, vector<32x16xf32>
    %cst_27 = arith.constant dense<0.000000e+00> : vector<32x384xf32>
    %35 = tpu.matmul %34, %28, %cst_27 {dimension_numbers = #tpu.dot_dimension_numbers<[1], [0], [0], [1], [0, 0, 1, 1], [], []>} : vector<32x16xf32>, vector<16x384xf32>, vector<32x384xf32> -> vector<32x384xf32>
    %36 = arith.addf %33, %35 : vector<32x384xf32>
    %c0_28 = arith.constant 0 : index
    %c0_29 = arith.constant 0 : index
    %37 = vector.load %arg12[%c0_28, %c0_29] : memref<8x16xf32, #tpu.memory_space<vmem>>, vector<8x16xf32>
    %cst_30 = arith.constant dense<0.000000e+00> : vector<8x384xf32>
    %38 = tpu.matmul %37, %28, %cst_30 {dimension_numbers = #tpu.dot_dimension_numbers<[1], [0], [0], [1], [0, 0, 1, 1], [], []>} : vector<8x16xf32>, vector<16x384xf32>, vector<8x384xf32> -> vector<8x384xf32>
    %c0_31 = arith.constant 0 : index
    %c0_32 = arith.constant 0 : index
    %39 = vector.load %arg11[%c0_31, %c0_32] : memref<8x1xf32, #tpu.memory_space<vmem>>, vector<8x1xf32>
    %40 = vector.broadcast %39 : vector<8x1xf32> to vector<8x384xf32>
    %41 = arith.addf %38, %40 : vector<8x384xf32>
    %42 = arith.negf %41 : vector<8x384xf32>
    %43 = math.exp %42 : vector<8x384xf32>
    %cst_33 = arith.constant 1.000000e+00 : f32
    %44 = vector.broadcast %cst_33 : f32 to vector<8x384xf32>
    %45 = arith.addf %44, %43 : vector<8x384xf32>
    %46 = arith.divf %44, %45 : vector<8x384xf32>
    %47 = arith.mulf %41, %46 : vector<8x384xf32>
    %c0_34 = arith.constant 0 : index
    %c0_35 = arith.constant 0 : index
    %48 = vector.load %arg14[%c0_34, %c0_35] : memref<8x16xf32, #tpu.memory_space<vmem>>, vector<8x16xf32>
    %cst_36 = arith.constant dense<0.000000e+00> : vector<8x384xf32>
    %49 = tpu.matmul %48, %28, %cst_36 {dimension_numbers = #tpu.dot_dimension_numbers<[1], [0], [0], [1], [0, 0, 1, 1], [], []>} : vector<8x16xf32>, vector<16x384xf32>, vector<8x384xf32> -> vector<8x384xf32>
    %c0_37 = arith.constant 0 : index
    %c0_38 = arith.constant 0 : index
    %50 = vector.load %arg13[%c0_37, %c0_38] : memref<8x1xf32, #tpu.memory_space<vmem>>, vector<8x1xf32>
    %51 = vector.broadcast %50 : vector<8x1xf32> to vector<8x384xf32>
    %52 = arith.addf %49, %51 : vector<8x384xf32>
    %53 = arith.negf %52 : vector<8x384xf32>
    %54 = math.exp %53 : vector<8x384xf32>
    %cst_39 = arith.constant 1.000000e+00 : f32
    %55 = vector.broadcast %cst_39 : f32 to vector<8x384xf32>
    %56 = arith.addf %55, %54 : vector<8x384xf32>
    %57 = arith.divf %55, %56 : vector<8x384xf32>
    %58 = arith.mulf %52, %57 : vector<8x384xf32>
    %59 = vector.broadcast %4 : vector<1x384xf32> to vector<8x384xf32>
    %60 = arith.mulf %47, %59 : vector<8x384xf32>
    %c0_40 = arith.constant 0 : index
    %c128 = arith.constant 128 : index
    %61 = vector.load %arg27[%c0_40, %c128] : memref<8x640xf32, #tpu.memory_space<vmem>>, vector<8x384xf32>
    tpu.vector_store %arg27[%c0_40, %c128], %60 {strides = array<i32>} : memref<8x640xf32, #tpu.memory_space<vmem>>, vector<8x384xf32>,
    %c0_41 = arith.constant 0 : index
    %c109 = arith.constant 109 : index
    %62 = vector.load %arg27[%c0_41, %c109] : memref<8x640xf32, #tpu.memory_space<vmem>>, vector<8x384xf32>
    %c0_42 = arith.constant 0 : index
    %c0_43 = arith.constant 0 : index
    %63 = vector.load %arg28[%c0_42, %c0_43] : memref<72x384xf32, #tpu.memory_space<vmem>>, vector<8x384xf32>
    tpu.vector_store %arg28[%c0_42, %c0_43], %62 {strides = array<i32>} : memref<72x384xf32, #tpu.memory_space<vmem>>, vector<8x384xf32>,
    %c0_44 = arith.constant 0 : index
    %c110 = arith.constant 110 : index
    %64 = vector.load %arg27[%c0_44, %c110] : memref<8x640xf32, #tpu.memory_space<vmem>>, vector<8x384xf32>
    %c8 = arith.constant 8 : index
    %c0_45 = arith.constant 0 : index
    %65 = vector.load %arg28[%c8, %c0_45] : memref<72x384xf32, #tpu.memory_space<vmem>>, vector<8x384xf32>
    tpu.vector_store %arg28[%c8, %c0_45], %64 {strides = array<i32>} : memref<72x384xf32, #tpu.memory_space<vmem>>, vector<8x384xf32>,
    %c0_46 = arith.constant 0 : index
    %c111 = arith.constant 111 : index
    %66 = vector.load %arg27[%c0_46, %c111] : memref<8x640xf32, #tpu.memory_space<vmem>>, vector<8x384xf32>
    %c16 = arith.constant 16 : index
    %c0_47 = arith.constant 0 : index
    %67 = vector.load %arg28[%c16, %c0_47] : memref<72x384xf32, #tpu.memory_space<vmem>>, vector<8x384xf32>
    tpu.vector_store %arg28[%c16, %c0_47], %66 {strides = array<i32>} : memref<72x384xf32, #tpu.memory_space<vmem>>, vector<8x384xf32>,
    %c0_48 = arith.constant 0 : index
    %c127 = arith.constant 127 : index
    %68 = vector.load %arg27[%c0_48, %c127] : memref<8x640xf32, #tpu.memory_space<vmem>>, vector<8x384xf32>
    %c24 = arith.constant 24 : index
    %c0_49 = arith.constant 0 : index
    %69 = vector.load %arg28[%c24, %c0_49] : memref<72x384xf32, #tpu.memory_space<vmem>>, vector<8x384xf32>
    tpu.vector_store %arg28[%c24, %c0_49], %68 {strides = array<i32>} : memref<72x384xf32, #tpu.memory_space<vmem>>, vector<8x384xf32>,
    %c0_50 = arith.constant 0 : index
    %c128_51 = arith.constant 128 : index
    %70 = vector.load %arg27[%c0_50, %c128_51] : memref<8x640xf32, #tpu.memory_space<vmem>>, vector<8x384xf32>
    %c32 = arith.constant 32 : index
    %c0_52 = arith.constant 0 : index
    %71 = vector.load %arg28[%c32, %c0_52] : memref<72x384xf32, #tpu.memory_space<vmem>>, vector<8x384xf32>
    tpu.vector_store %arg28[%c32, %c0_52], %70 {strides = array<i32>} : memref<72x384xf32, #tpu.memory_space<vmem>>, vector<8x384xf32>,
    %c0_53 = arith.constant 0 : index
    %c129 = arith.constant 129 : index
    %72 = vector.load %arg27[%c0_53, %c129] : memref<8x640xf32, #tpu.memory_space<vmem>>, vector<8x384xf32>
    %c40 = arith.constant 40 : index
    %c0_54 = arith.constant 0 : index
    %73 = vector.load %arg28[%c40, %c0_54] : memref<72x384xf32, #tpu.memory_space<vmem>>, vector<8x384xf32>
    tpu.vector_store %arg28[%c40, %c0_54], %72 {strides = array<i32>} : memref<72x384xf32, #tpu.memory_space<vmem>>, vector<8x384xf32>,
    %c0_55 = arith.constant 0 : index
    %c145 = arith.constant 145 : index
    %74 = vector.load %arg27[%c0_55, %c145] : memref<8x640xf32, #tpu.memory_space<vmem>>, vector<8x384xf32>
    %c48 = arith.constant 48 : index
    %c0_56 = arith.constant 0 : index
    %75 = vector.load %arg28[%c48, %c0_56] : memref<72x384xf32, #tpu.memory_space<vmem>>, vector<8x384xf32>
    tpu.vector_store %arg28[%c48, %c0_56], %74 {strides = array<i32>} : memref<72x384xf32, #tpu.memory_space<vmem>>, vector<8x384xf32>,
    %c0_57 = arith.constant 0 : index
    %c146 = arith.constant 146 : index
    %76 = vector.load %arg27[%c0_57, %c146] : memref<8x640xf32, #tpu.memory_space<vmem>>, vector<8x384xf32>
    %c56 = arith.constant 56 : index
    %c0_58 = arith.constant 0 : index
    %77 = vector.load %arg28[%c56, %c0_58] : memref<72x384xf32, #tpu.memory_space<vmem>>, vector<8x384xf32>
    tpu.vector_store %arg28[%c56, %c0_58], %76 {strides = array<i32>} : memref<72x384xf32, #tpu.memory_space<vmem>>, vector<8x384xf32>,
    %c0_59 = arith.constant 0 : index
    %c147 = arith.constant 147 : index
    %78 = vector.load %arg27[%c0_59, %c147] : memref<8x640xf32, #tpu.memory_space<vmem>>, vector<8x384xf32>
    %c64 = arith.constant 64 : index
    %c0_60 = arith.constant 0 : index
    %79 = vector.load %arg28[%c64, %c0_60] : memref<72x384xf32, #tpu.memory_space<vmem>>, vector<8x384xf32>
    tpu.vector_store %arg28[%c64, %c0_60], %78 {strides = array<i32>} : memref<72x384xf32, #tpu.memory_space<vmem>>, vector<8x384xf32>,
    %c0_61 = arith.constant 0 : index
    %c0_62 = arith.constant 0 : index
    %80 = vector.load %arg19[%c0_61, %c0_62] : memref<8x72xf32, #tpu.memory_space<vmem>>, vector<8x72xf32>
    %c0_63 = arith.constant 0 : index
    %c0_64 = arith.constant 0 : index
    %81 = vector.load %arg28[%c0_63, %c0_64] : memref<72x384xf32, #tpu.memory_space<vmem>>, vector<72x384xf32>
    %cst_65 = arith.constant dense<0.000000e+00> : vector<8x384xf32>
    %82 = tpu.matmul %80, %81, %cst_65 {dimension_numbers = #tpu.dot_dimension_numbers<[1], [0], [0], [1], [0, 0, 1, 1], [], []>} : vector<8x72xf32>, vector<72x384xf32>, vector<8x384xf32> -> vector<8x384xf32>
    %c0_66 = arith.constant 0 : index
    %c0_67 = arith.constant 0 : index
    %83 = vector.load %arg18[%c0_66, %c0_67] : memref<8x1xf32, #tpu.memory_space<vmem>>, vector<8x1xf32>
    %84 = vector.broadcast %83 : vector<8x1xf32> to vector<8x384xf32>
    %85 = arith.addf %82, %84 : vector<8x384xf32>
    %86 = arith.negf %85 : vector<8x384xf32>
    %87 = math.exp %86 : vector<8x384xf32>
    %cst_68 = arith.constant 1.000000e+00 : f32
    %88 = vector.broadcast %cst_68 : f32 to vector<8x384xf32>
    %89 = arith.addf %88, %87 : vector<8x384xf32>
    %90 = arith.divf %88, %89 : vector<8x384xf32>
    %91 = arith.mulf %85, %90 : vector<8x384xf32>
    %92 = vector.broadcast %4 : vector<1x384xf32> to vector<8x384xf32>
    %93 = arith.mulf %91, %92 : vector<8x384xf32>
    %c0_69 = arith.constant 0 : index
    %c128_70 = arith.constant 128 : index
    %94 = vector.load %arg27[%c0_69, %c128_70] : memref<8x640xf32, #tpu.memory_space<vmem>>, vector<8x384xf32>
    tpu.vector_store %arg27[%c0_69, %c128_70], %93 {strides = array<i32>} : memref<8x640xf32, #tpu.memory_space<vmem>>, vector<8x384xf32>,
    %c0_71 = arith.constant 0 : index
    %c109_72 = arith.constant 109 : index
    %95 = vector.load %arg27[%c0_71, %c109_72] : memref<8x640xf32, #tpu.memory_space<vmem>>, vector<8x384xf32>
    %c0_73 = arith.constant 0 : index
    %c0_74 = arith.constant 0 : index
    %96 = vector.load %arg28[%c0_73, %c0_74] : memref<72x384xf32, #tpu.memory_space<vmem>>, vector<8x384xf32>
    tpu.vector_store %arg28[%c0_73, %c0_74], %95 {strides = array<i32>} : memref<72x384xf32, #tpu.memory_space<vmem>>, vector<8x384xf32>,
    %c0_75 = arith.constant 0 : index
    %c110_76 = arith.constant 110 : index
    %97 = vector.load %arg27[%c0_75, %c110_76] : memref<8x640xf32, #tpu.memory_space<vmem>>, vector<8x384xf32>
    %c8_77 = arith.constant 8 : index
    %c0_78 = arith.constant 0 : index
    %98 = vector.load %arg28[%c8_77, %c0_78] : memref<72x384xf32, #tpu.memory_space<vmem>>, vector<8x384xf32>
    tpu.vector_store %arg28[%c8_77, %c0_78], %97 {strides = array<i32>} : memref<72x384xf32, #tpu.memory_space<vmem>>, vector<8x384xf32>,
    %c0_79 = arith.constant 0 : index
    %c111_80 = arith.constant 111 : index
    %99 = vector.load %arg27[%c0_79, %c111_80] : memref<8x640xf32, #tpu.memory_space<vmem>>, vector<8x384xf32>
    %c16_81 = arith.constant 16 : index
    %c0_82 = arith.constant 0 : index
    %100 = vector.load %arg28[%c16_81, %c0_82] : memref<72x384xf32, #tpu.memory_space<vmem>>, vector<8x384xf32>
    tpu.vector_store %arg28[%c16_81, %c0_82], %99 {strides = array<i32>} : memref<72x384xf32, #tpu.memory_space<vmem>>, vector<8x384xf32>,
    %c0_83 = arith.constant 0 : index
    %c127_84 = arith.constant 127 : index
    %101 = vector.load %arg27[%c0_83, %c127_84] : memref<8x640xf32, #tpu.memory_space<vmem>>, vector<8x384xf32>
    %c24_85 = arith.constant 24 : index
    %c0_86 = arith.constant 0 : index
    %102 = vector.load %arg28[%c24_85, %c0_86] : memref<72x384xf32, #tpu.memory_space<vmem>>, vector<8x384xf32>
    tpu.vector_store %arg28[%c24_85, %c0_86], %101 {strides = array<i32>} : memref<72x384xf32, #tpu.memory_space<vmem>>, vector<8x384xf32>,
    %c0_87 = arith.constant 0 : index
    %c128_88 = arith.constant 128 : index
    %103 = vector.load %arg27[%c0_87, %c128_88] : memref<8x640xf32, #tpu.memory_space<vmem>>, vector<8x384xf32>
    %c32_89 = arith.constant 32 : index
    %c0_90 = arith.constant 0 : index
    %104 = vector.load %arg28[%c32_89, %c0_90] : memref<72x384xf32, #tpu.memory_space<vmem>>, vector<8x384xf32>
    tpu.vector_store %arg28[%c32_89, %c0_90], %103 {strides = array<i32>} : memref<72x384xf32, #tpu.memory_space<vmem>>, vector<8x384xf32>,
    %c0_91 = arith.constant 0 : index
    %c129_92 = arith.constant 129 : index
    %105 = vector.load %arg27[%c0_91, %c129_92] : memref<8x640xf32, #tpu.memory_space<vmem>>, vector<8x384xf32>
    %c40_93 = arith.constant 40 : index
    %c0_94 = arith.constant 0 : index
    %106 = vector.load %arg28[%c40_93, %c0_94] : memref<72x384xf32, #tpu.memory_space<vmem>>, vector<8x384xf32>
    tpu.vector_store %arg28[%c40_93, %c0_94], %105 {strides = array<i32>} : memref<72x384xf32, #tpu.memory_space<vmem>>, vector<8x384xf32>,
    %c0_95 = arith.constant 0 : index
    %c145_96 = arith.constant 145 : index
    %107 = vector.load %arg27[%c0_95, %c145_96] : memref<8x640xf32, #tpu.memory_space<vmem>>, vector<8x384xf32>
    %c48_97 = arith.constant 48 : index
    %c0_98 = arith.constant 0 : index
    %108 = vector.load %arg28[%c48_97, %c0_98] : memref<72x384xf32, #tpu.memory_space<vmem>>, vector<8x384xf32>
    tpu.vector_store %arg28[%c48_97, %c0_98], %107 {strides = array<i32>} : memref<72x384xf32, #tpu.memory_space<vmem>>, vector<8x384xf32>,
    %c0_99 = arith.constant 0 : index
    %c146_100 = arith.constant 146 : index
    %109 = vector.load %arg27[%c0_99, %c146_100] : memref<8x640xf32, #tpu.memory_space<vmem>>, vector<8x384xf32>
    %c56_101 = arith.constant 56 : index
    %c0_102 = arith.constant 0 : index
    %110 = vector.load %arg28[%c56_101, %c0_102] : memref<72x384xf32, #tpu.memory_space<vmem>>, vector<8x384xf32>
    tpu.vector_store %arg28[%c56_101, %c0_102], %109 {strides = array<i32>} : memref<72x384xf32, #tpu.memory_space<vmem>>, vector<8x384xf32>,
    %c0_103 = arith.constant 0 : index
    %c147_104 = arith.constant 147 : index
    %111 = vector.load %arg27[%c0_103, %c147_104] : memref<8x640xf32, #tpu.memory_space<vmem>>, vector<8x384xf32>
    %c64_105 = arith.constant 64 : index
    %c0_106 = arith.constant 0 : index
    %112 = vector.load %arg28[%c64_105, %c0_106] : memref<72x384xf32, #tpu.memory_space<vmem>>, vector<8x384xf32>
    tpu.vector_store %arg28[%c64_105, %c0_106], %111 {strides = array<i32>} : memref<72x384xf32, #tpu.memory_space<vmem>>, vector<8x384xf32>,
    %c0_107 = arith.constant 0 : index
    %c0_108 = arith.constant 0 : index
    %113 = vector.load %arg21[%c0_107, %c0_108] : memref<8x72xf32, #tpu.memory_space<vmem>>, vector<8x72xf32>
    %c0_109 = arith.constant 0 : index
    %c0_110 = arith.constant 0 : index
    %114 = vector.load %arg28[%c0_109, %c0_110] : memref<72x384xf32, #tpu.memory_space<vmem>>, vector<72x384xf32>
    %cst_111 = arith.constant dense<0.000000e+00> : vector<8x384xf32>
    %115 = tpu.matmul %113, %114, %cst_111 {dimension_numbers = #tpu.dot_dimension_numbers<[1], [0], [0], [1], [0, 0, 1, 1], [], []>} : vector<8x72xf32>, vector<72x384xf32>, vector<8x384xf32> -> vector<8x384xf32>
    %c0_112 = arith.constant 0 : index
    %c0_113 = arith.constant 0 : index
    %116 = vector.load %arg20[%c0_112, %c0_113] : memref<8x1xf32, #tpu.memory_space<vmem>>, vector<8x1xf32>
    %117 = vector.broadcast %116 : vector<8x1xf32> to vector<8x384xf32>
    %118 = arith.addf %115, %117 : vector<8x384xf32>
    %119 = arith.negf %118 : vector<8x384xf32>
    %120 = math.exp %119 : vector<8x384xf32>
    %cst_114 = arith.constant 1.000000e+00 : f32
    %121 = vector.broadcast %cst_114 : f32 to vector<8x384xf32>
    %122 = arith.addf %121, %120 : vector<8x384xf32>
    %123 = arith.divf %121, %122 : vector<8x384xf32>
    %124 = arith.mulf %118, %123 : vector<8x384xf32>
    %125 = arith.addf %124, %47 : vector<8x384xf32>
    %126 = vector.broadcast %4 : vector<1x384xf32> to vector<8x384xf32>
    %127 = arith.mulf %125, %126 : vector<8x384xf32>
    %c0_115 = arith.constant 0 : index
    %c128_116 = arith.constant 128 : index
    %128 = vector.load %arg27[%c0_115, %c128_116] : memref<8x640xf32, #tpu.memory_space<vmem>>, vector<8x384xf32>
    tpu.vector_store %arg27[%c0_115, %c128_116], %127 {strides = array<i32>} : memref<8x640xf32, #tpu.memory_space<vmem>>, vector<8x384xf32>,
    %c0_117 = arith.constant 0 : index
    %c109_118 = arith.constant 109 : index
    %129 = vector.load %arg27[%c0_117, %c109_118] : memref<8x640xf32, #tpu.memory_space<vmem>>, vector<8x384xf32>
    %c0_119 = arith.constant 0 : index
    %c0_120 = arith.constant 0 : index
    %130 = vector.load %arg28[%c0_119, %c0_120] : memref<72x384xf32, #tpu.memory_space<vmem>>, vector<8x384xf32>
    tpu.vector_store %arg28[%c0_119, %c0_120], %129 {strides = array<i32>} : memref<72x384xf32, #tpu.memory_space<vmem>>, vector<8x384xf32>,
    %c0_121 = arith.constant 0 : index
    %c110_122 = arith.constant 110 : index
    %131 = vector.load %arg27[%c0_121, %c110_122] : memref<8x640xf32, #tpu.memory_space<vmem>>, vector<8x384xf32>
    %c8_123 = arith.constant 8 : index
    %c0_124 = arith.constant 0 : index
    %132 = vector.load %arg28[%c8_123, %c0_124] : memref<72x384xf32, #tpu.memory_space<vmem>>, vector<8x384xf32>
    tpu.vector_store %arg28[%c8_123, %c0_124], %131 {strides = array<i32>} : memref<72x384xf32, #tpu.memory_space<vmem>>, vector<8x384xf32>,
    %c0_125 = arith.constant 0 : index
    %c111_126 = arith.constant 111 : index
    %133 = vector.load %arg27[%c0_125, %c111_126] : memref<8x640xf32, #tpu.memory_space<vmem>>, vector<8x384xf32>
    %c16_127 = arith.constant 16 : index
    %c0_128 = arith.constant 0 : index
    %134 = vector.load %arg28[%c16_127, %c0_128] : memref<72x384xf32, #tpu.memory_space<vmem>>, vector<8x384xf32>
    tpu.vector_store %arg28[%c16_127, %c0_128], %133 {strides = array<i32>} : memref<72x384xf32, #tpu.memory_space<vmem>>, vector<8x384xf32>,
    %c0_129 = arith.constant 0 : index
    %c127_130 = arith.constant 127 : index
    %135 = vector.load %arg27[%c0_129, %c127_130] : memref<8x640xf32, #tpu.memory_space<vmem>>, vector<8x384xf32>
    %c24_131 = arith.constant 24 : index
    %c0_132 = arith.constant 0 : index
    %136 = vector.load %arg28[%c24_131, %c0_132] : memref<72x384xf32, #tpu.memory_space<vmem>>, vector<8x384xf32>
    tpu.vector_store %arg28[%c24_131, %c0_132], %135 {strides = array<i32>} : memref<72x384xf32, #tpu.memory_space<vmem>>, vector<8x384xf32>,
    %c0_133 = arith.constant 0 : index
    %c128_134 = arith.constant 128 : index
    %137 = vector.load %arg27[%c0_133, %c128_134] : memref<8x640xf32, #tpu.memory_space<vmem>>, vector<8x384xf32>
    %c32_135 = arith.constant 32 : index
    %c0_136 = arith.constant 0 : index
    %138 = vector.load %arg28[%c32_135, %c0_136] : memref<72x384xf32, #tpu.memory_space<vmem>>, vector<8x384xf32>
    tpu.vector_store %arg28[%c32_135, %c0_136], %137 {strides = array<i32>} : memref<72x384xf32, #tpu.memory_space<vmem>>, vector<8x384xf32>,
    %c0_137 = arith.constant 0 : index
    %c129_138 = arith.constant 129 : index
    %139 = vector.load %arg27[%c0_137, %c129_138] : memref<8x640xf32, #tpu.memory_space<vmem>>, vector<8x384xf32>
    %c40_139 = arith.constant 40 : index
    %c0_140 = arith.constant 0 : index
    %140 = vector.load %arg28[%c40_139, %c0_140] : memref<72x384xf32, #tpu.memory_space<vmem>>, vector<8x384xf32>
    tpu.vector_store %arg28[%c40_139, %c0_140], %139 {strides = array<i32>} : memref<72x384xf32, #tpu.memory_space<vmem>>, vector<8x384xf32>,
    %c0_141 = arith.constant 0 : index
    %c145_142 = arith.constant 145 : index
    %141 = vector.load %arg27[%c0_141, %c145_142] : memref<8x640xf32, #tpu.memory_space<vmem>>, vector<8x384xf32>
    %c48_143 = arith.constant 48 : index
    %c0_144 = arith.constant 0 : index
    %142 = vector.load %arg28[%c48_143, %c0_144] : memref<72x384xf32, #tpu.memory_space<vmem>>, vector<8x384xf32>
    tpu.vector_store %arg28[%c48_143, %c0_144], %141 {strides = array<i32>} : memref<72x384xf32, #tpu.memory_space<vmem>>, vector<8x384xf32>,
    %c0_145 = arith.constant 0 : index
    %c146_146 = arith.constant 146 : index
    %143 = vector.load %arg27[%c0_145, %c146_146] : memref<8x640xf32, #tpu.memory_space<vmem>>, vector<8x384xf32>
    %c56_147 = arith.constant 56 : index
    %c0_148 = arith.constant 0 : index
    %144 = vector.load %arg28[%c56_147, %c0_148] : memref<72x384xf32, #tpu.memory_space<vmem>>, vector<8x384xf32>
    tpu.vector_store %arg28[%c56_147, %c0_148], %143 {strides = array<i32>} : memref<72x384xf32, #tpu.memory_space<vmem>>, vector<8x384xf32>,
    %c0_149 = arith.constant 0 : index
    %c147_150 = arith.constant 147 : index
    %145 = vector.load %arg27[%c0_149, %c147_150] : memref<8x640xf32, #tpu.memory_space<vmem>>, vector<8x384xf32>
    %c64_151 = arith.constant 64 : index
    %c0_152 = arith.constant 0 : index
    %146 = vector.load %arg28[%c64_151, %c0_152] : memref<72x384xf32, #tpu.memory_space<vmem>>, vector<8x384xf32>
    tpu.vector_store %arg28[%c64_151, %c0_152], %145 {strides = array<i32>} : memref<72x384xf32, #tpu.memory_space<vmem>>, vector<8x384xf32>,
    %c0_153 = arith.constant 0 : index
    %c0_154 = arith.constant 0 : index
    %147 = vector.load %arg23[%c0_153, %c0_154] : memref<8x72xf32, #tpu.memory_space<vmem>>, vector<8x72xf32>
    %c0_155 = arith.constant 0 : index
    %c0_156 = arith.constant 0 : index
    %148 = vector.load %arg28[%c0_155, %c0_156] : memref<72x384xf32, #tpu.memory_space<vmem>>, vector<72x384xf32>
    %cst_157 = arith.constant dense<0.000000e+00> : vector<8x384xf32>
    %149 = tpu.matmul %147, %148, %cst_157 {dimension_numbers = #tpu.dot_dimension_numbers<[1], [0], [0], [1], [0, 0, 1, 1], [], []>} : vector<8x72xf32>, vector<72x384xf32>, vector<8x384xf32> -> vector<8x384xf32>
    %c0_158 = arith.constant 0 : index
    %c0_159 = arith.constant 0 : index
    %150 = vector.load %arg22[%c0_158, %c0_159] : memref<8x1xf32, #tpu.memory_space<vmem>>, vector<8x1xf32>
    %151 = vector.broadcast %150 : vector<8x1xf32> to vector<8x384xf32>
    %152 = arith.addf %149, %151 : vector<8x384xf32>
    %153 = arith.negf %152 : vector<8x384xf32>
    %154 = math.exp %153 : vector<8x384xf32>
    %cst_160 = arith.constant 1.000000e+00 : f32
    %155 = vector.broadcast %cst_160 : f32 to vector<8x384xf32>
    %156 = arith.addf %155, %154 : vector<8x384xf32>
    %157 = arith.divf %155, %156 : vector<8x384xf32>
    %158 = arith.mulf %152, %157 : vector<8x384xf32>
    %159 = vector.broadcast %4 : vector<1x384xf32> to vector<8x384xf32>
    %160 = arith.mulf %158, %159 : vector<8x384xf32>
    %c0_161 = arith.constant 0 : index
    %c128_162 = arith.constant 128 : index
    %161 = vector.load %arg27[%c0_161, %c128_162] : memref<8x640xf32, #tpu.memory_space<vmem>>, vector<8x384xf32>
    tpu.vector_store %arg27[%c0_161, %c128_162], %160 {strides = array<i32>} : memref<8x640xf32, #tpu.memory_space<vmem>>, vector<8x384xf32>,
    %c0_163 = arith.constant 0 : index
    %c109_164 = arith.constant 109 : index
    %162 = vector.load %arg27[%c0_163, %c109_164] : memref<8x640xf32, #tpu.memory_space<vmem>>, vector<8x384xf32>
    %c0_165 = arith.constant 0 : index
    %c0_166 = arith.constant 0 : index
    %163 = vector.load %arg28[%c0_165, %c0_166] : memref<72x384xf32, #tpu.memory_space<vmem>>, vector<8x384xf32>
    tpu.vector_store %arg28[%c0_165, %c0_166], %162 {strides = array<i32>} : memref<72x384xf32, #tpu.memory_space<vmem>>, vector<8x384xf32>,
    %c0_167 = arith.constant 0 : index
    %c110_168 = arith.constant 110 : index
    %164 = vector.load %arg27[%c0_167, %c110_168] : memref<8x640xf32, #tpu.memory_space<vmem>>, vector<8x384xf32>
    %c8_169 = arith.constant 8 : index
    %c0_170 = arith.constant 0 : index
    %165 = vector.load %arg28[%c8_169, %c0_170] : memref<72x384xf32, #tpu.memory_space<vmem>>, vector<8x384xf32>
    tpu.vector_store %arg28[%c8_169, %c0_170], %164 {strides = array<i32>} : memref<72x384xf32, #tpu.memory_space<vmem>>, vector<8x384xf32>,
    %c0_171 = arith.constant 0 : index
    %c111_172 = arith.constant 111 : index
    %166 = vector.load %arg27[%c0_171, %c111_172] : memref<8x640xf32, #tpu.memory_space<vmem>>, vector<8x384xf32>
    %c16_173 = arith.constant 16 : index
    %c0_174 = arith.constant 0 : index
    %167 = vector.load %arg28[%c16_173, %c0_174] : memref<72x384xf32, #tpu.memory_space<vmem>>, vector<8x384xf32>
    tpu.vector_store %arg28[%c16_173, %c0_174], %166 {strides = array<i32>} : memref<72x384xf32, #tpu.memory_space<vmem>>, vector<8x384xf32>,
    %c0_175 = arith.constant 0 : index
    %c127_176 = arith.constant 127 : index
    %168 = vector.load %arg27[%c0_175, %c127_176] : memref<8x640xf32, #tpu.memory_space<vmem>>, vector<8x384xf32>
    %c24_177 = arith.constant 24 : index
    %c0_178 = arith.constant 0 : index
    %169 = vector.load %arg28[%c24_177, %c0_178] : memref<72x384xf32, #tpu.memory_space<vmem>>, vector<8x384xf32>
    tpu.vector_store %arg28[%c24_177, %c0_178], %168 {strides = array<i32>} : memref<72x384xf32, #tpu.memory_space<vmem>>, vector<8x384xf32>,
    %c0_179 = arith.constant 0 : index
    %c128_180 = arith.constant 128 : index
    %170 = vector.load %arg27[%c0_179, %c128_180] : memref<8x640xf32, #tpu.memory_space<vmem>>, vector<8x384xf32>
    %c32_181 = arith.constant 32 : index
    %c0_182 = arith.constant 0 : index
    %171 = vector.load %arg28[%c32_181, %c0_182] : memref<72x384xf32, #tpu.memory_space<vmem>>, vector<8x384xf32>
    tpu.vector_store %arg28[%c32_181, %c0_182], %170 {strides = array<i32>} : memref<72x384xf32, #tpu.memory_space<vmem>>, vector<8x384xf32>,
    %c0_183 = arith.constant 0 : index
    %c129_184 = arith.constant 129 : index
    %172 = vector.load %arg27[%c0_183, %c129_184] : memref<8x640xf32, #tpu.memory_space<vmem>>, vector<8x384xf32>
    %c40_185 = arith.constant 40 : index
    %c0_186 = arith.constant 0 : index
    %173 = vector.load %arg28[%c40_185, %c0_186] : memref<72x384xf32, #tpu.memory_space<vmem>>, vector<8x384xf32>
    tpu.vector_store %arg28[%c40_185, %c0_186], %172 {strides = array<i32>} : memref<72x384xf32, #tpu.memory_space<vmem>>, vector<8x384xf32>,
    %c0_187 = arith.constant 0 : index
    %c145_188 = arith.constant 145 : index
    %174 = vector.load %arg27[%c0_187, %c145_188] : memref<8x640xf32, #tpu.memory_space<vmem>>, vector<8x384xf32>
    %c48_189 = arith.constant 48 : index
    %c0_190 = arith.constant 0 : index
    %175 = vector.load %arg28[%c48_189, %c0_190] : memref<72x384xf32, #tpu.memory_space<vmem>>, vector<8x384xf32>
    tpu.vector_store %arg28[%c48_189, %c0_190], %174 {strides = array<i32>} : memref<72x384xf32, #tpu.memory_space<vmem>>, vector<8x384xf32>,
    %c0_191 = arith.constant 0 : index
    %c146_192 = arith.constant 146 : index
    %176 = vector.load %arg27[%c0_191, %c146_192] : memref<8x640xf32, #tpu.memory_space<vmem>>, vector<8x384xf32>
    %c56_193 = arith.constant 56 : index
    %c0_194 = arith.constant 0 : index
    %177 = vector.load %arg28[%c56_193, %c0_194] : memref<72x384xf32, #tpu.memory_space<vmem>>, vector<8x384xf32>
    tpu.vector_store %arg28[%c56_193, %c0_194], %176 {strides = array<i32>} : memref<72x384xf32, #tpu.memory_space<vmem>>, vector<8x384xf32>,
    %c0_195 = arith.constant 0 : index
    %c147_196 = arith.constant 147 : index
    %178 = vector.load %arg27[%c0_195, %c147_196] : memref<8x640xf32, #tpu.memory_space<vmem>>, vector<8x384xf32>
    %c64_197 = arith.constant 64 : index
    %c0_198 = arith.constant 0 : index
    %179 = vector.load %arg28[%c64_197, %c0_198] : memref<72x384xf32, #tpu.memory_space<vmem>>, vector<8x384xf32>
    tpu.vector_store %arg28[%c64_197, %c0_198], %178 {strides = array<i32>} : memref<72x384xf32, #tpu.memory_space<vmem>>, vector<8x384xf32>,
    %c0_199 = arith.constant 0 : index
    %c0_200 = arith.constant 0 : index
    %180 = vector.load %arg25[%c0_199, %c0_200] : memref<8x72xf32, #tpu.memory_space<vmem>>, vector<8x72xf32>
    %c0_201 = arith.constant 0 : index
    %c0_202 = arith.constant 0 : index
    %181 = vector.load %arg28[%c0_201, %c0_202] : memref<72x384xf32, #tpu.memory_space<vmem>>, vector<72x384xf32>
    %cst_203 = arith.constant dense<0.000000e+00> : vector<8x384xf32>
    %182 = tpu.matmul %180, %181, %cst_203 {dimension_numbers = #tpu.dot_dimension_numbers<[1], [0], [0], [1], [0, 0, 1, 1], [], []>} : vector<8x72xf32>, vector<72x384xf32>, vector<8x384xf32> -> vector<8x384xf32>
    %c0_204 = arith.constant 0 : index
    %c0_205 = arith.constant 0 : index
    %183 = vector.load %arg24[%c0_204, %c0_205] : memref<8x1xf32, #tpu.memory_space<vmem>>, vector<8x1xf32>
    %184 = vector.broadcast %183 : vector<8x1xf32> to vector<8x384xf32>
    %185 = arith.addf %182, %184 : vector<8x384xf32>
    %186 = arith.negf %185 : vector<8x384xf32>
    %187 = math.exp %186 : vector<8x384xf32>
    %cst_206 = arith.constant 1.000000e+00 : f32
    %188 = vector.broadcast %cst_206 : f32 to vector<8x384xf32>
    %189 = arith.addf %188, %187 : vector<8x384xf32>
    %190 = arith.divf %188, %189 : vector<8x384xf32>
    %191 = arith.mulf %185, %190 : vector<8x384xf32>
    %192 = arith.addf %191, %125 : vector<8x384xf32>
    %c0_207 = arith.constant 0 : index
    %c0_208 = arith.constant 0 : index
    %193 = vector.load %arg16[%c0_207, %c0_208] : memref<16x8xf32, #tpu.memory_space<vmem>>, vector<16x8xf32>
    %cst_209 = arith.constant dense<0.000000e+00> : vector<16x384xf32>
    %194 = tpu.matmul %193, %192, %cst_209 {dimension_numbers = #tpu.dot_dimension_numbers<[1], [0], [0], [1], [0, 0, 1, 1], [], []>} : vector<16x8xf32>, vector<8x384xf32>, vector<16x384xf32> -> vector<16x384xf32>
    %c0_210 = arith.constant 0 : index
    %c0_211 = arith.constant 0 : index
    %195 = vector.load %arg17[%c0_210, %c0_211] : memref<16x8xf32, #tpu.memory_space<vmem>>, vector<16x8xf32>
    %cst_212 = arith.constant dense<0.000000e+00> : vector<16x384xf32>
    %196 = tpu.matmul %195, %58, %cst_212 {dimension_numbers = #tpu.dot_dimension_numbers<[1], [0], [0], [1], [0, 0, 1, 1], [], []>} : vector<16x8xf32>, vector<8x384xf32>, vector<16x384xf32> -> vector<16x384xf32>
    %197 = arith.addf %194, %196 : vector<16x384xf32>
    %c0_213 = arith.constant 0 : index
    %c0_214 = arith.constant 0 : index
    %198 = vector.load %arg15[%c0_213, %c0_214] : memref<16x1xf32, #tpu.memory_space<vmem>>, vector<16x1xf32>
    %199 = vector.broadcast %198 : vector<16x1xf32> to vector<16x384xf32>
    %200 = arith.addf %197, %199 : vector<16x384xf32>
    %201 = arith.negf %200 : vector<16x384xf32>
    %202 = math.exp %201 : vector<16x384xf32>
    %cst_215 = arith.constant 1.000000e+00 : f32
    %203 = vector.broadcast %cst_215 : f32 to vector<16x384xf32>
    %204 = arith.addf %203, %202 : vector<16x384xf32>
    %205 = arith.divf %203, %204 : vector<16x384xf32>
    %206 = arith.mulf %200, %205 : vector<16x384xf32>
    %c0_216 = arith.constant 0 : index
    %c0_217 = arith.constant 0 : index
    %207 = vector.load %arg10[%c0_216, %c0_217] : memref<32x16xf32, #tpu.memory_space<vmem>>, vector<32x16xf32>
    %cst_218 = arith.constant dense<0.000000e+00> : vector<32x384xf32>
    %208 = tpu.matmul %207, %206, %cst_218 {dimension_numbers = #tpu.dot_dimension_numbers<[1], [0], [0], [1], [0, 0, 1, 1], [], []>} : vector<32x16xf32>, vector<16x384xf32>, vector<32x384xf32> -> vector<32x384xf32>
    %209 = arith.addf %36, %208 : vector<32x384xf32>
    %210 = arith.negf %209 : vector<32x384xf32>
    %211 = math.exp %210 : vector<32x384xf32>
    %cst_219 = arith.constant 1.000000e+00 : f32
    %212 = vector.broadcast %cst_219 : f32 to vector<32x384xf32>
    %213 = arith.addf %212, %211 : vector<32x384xf32>
    %214 = arith.divf %212, %213 : vector<32x384xf32>
    %215 = arith.mulf %209, %214 : vector<32x384xf32>
    %c0_220 = arith.constant 0 : index
    %c0_221 = arith.constant 0 : index
    %c0_222 = arith.constant 0 : index
    %216 = vector.load %arg26[%c0_220, %c0_221, %c0_222] : memref<1x32x384xf32, #tpu.memory_space<vmem>>, vector<1x32x384xf32>
    %217 = vector.shape_cast %216 : vector<1x32x384xf32> to vector<32x384xf32>
    %218 = vector.shape_cast %215 : vector<32x384xf32> to vector<1x32x384xf32>
    tpu.vector_store %arg26[%c0_220, %c0_221, %c0_222], %218 {strides = array<i32>} : memref<1x32x384xf32, #tpu.memory_space<vmem>>, vector<1x32x384xf32>,
    return
  }
  func.func @transform_0(%arg0: i32) -> (i32, i32, i32) {
    %c0_i32 = arith.constant 0 : i32
    %c0_i32_0 = arith.constant 0 : i32
    %c0_i32_1 = arith.constant 0 : i32
    return %arg0, %c0_i32, %c0_i32_0 : i32, i32, i32
  }
  func.func @transform_1(%arg0: i32) -> (i32, i32) {
    %c0_i32 = arith.constant 0 : i32
    %c0_i32_0 = arith.constant 0 : i32
    %c0_i32_1 = arith.constant 0 : i32
    return %c0_i32, %c0_i32_0 : i32, i32
  }
  func.func @transform_2(%arg0: i32) -> (i32, i32) {
    %c0_i32 = arith.constant 0 : i32
    %c0_i32_0 = arith.constant 0 : i32
    %c0_i32_1 = arith.constant 0 : i32
    return %c0_i32, %c0_i32_0 : i32, i32
  }
  func.func @transform_3(%arg0: i32) -> (i32, i32) {
    %c0_i32 = arith.constant 0 : i32
    %c0_i32_0 = arith.constant 0 : i32
    %c0_i32_1 = arith.constant 0 : i32
    return %c0_i32, %c0_i32_0 : i32, i32
  }
  func.func @transform_4(%arg0: i32) -> (i32, i32) {
    %c0_i32 = arith.constant 0 : i32
    %c0_i32_0 = arith.constant 0 : i32
    %c0_i32_1 = arith.constant 0 : i32
    return %c0_i32, %c0_i32_0 : i32, i32
  }
  func.func @transform_5(%arg0: i32) -> (i32, i32) {
    %c0_i32 = arith.constant 0 : i32
    %c0_i32_0 = arith.constant 0 : i32
    %c0_i32_1 = arith.constant 0 : i32
    return %c0_i32, %c0_i32_0 : i32, i32
  }
  func.func @transform_6(%arg0: i32) -> (i32, i32) {
    %c0_i32 = arith.constant 0 : i32
    %c0_i32_0 = arith.constant 0 : i32
    %c0_i32_1 = arith.constant 0 : i32
    return %c0_i32, %c0_i32_0 : i32, i32
  }
  func.func @transform_7(%arg0: i32) -> (i32, i32) {
    %c0_i32 = arith.constant 0 : i32
    %c0_i32_0 = arith.constant 0 : i32
    %c0_i32_1 = arith.constant 0 : i32
    return %c0_i32, %c0_i32_0 : i32, i32
  }
  func.func @transform_8(%arg0: i32) -> (i32, i32) {
    %c0_i32 = arith.constant 0 : i32
    %c0_i32_0 = arith.constant 0 : i32
    %c0_i32_1 = arith.constant 0 : i32
    return %c0_i32, %c0_i32_0 : i32, i32
  }
  func.func @transform_9(%arg0: i32) -> (i32, i32) {
    %c0_i32 = arith.constant 0 : i32
    %c0_i32_0 = arith.constant 0 : i32
    %c0_i32_1 = arith.constant 0 : i32
    return %c0_i32, %c0_i32_0 : i32, i32
  }
  func.func @transform_10(%arg0: i32) -> (i32, i32) {
    %c0_i32 = arith.constant 0 : i32
    %c0_i32_0 = arith.constant 0 : i32
    %c0_i32_1 = arith.constant 0 : i32
    return %c0_i32, %c0_i32_0 : i32, i32
  }
  func.func @transform_11(%arg0: i32) -> (i32, i32) {
    %c0_i32 = arith.constant 0 : i32
    %c0_i32_0 = arith.constant 0 : i32
    %c0_i32_1 = arith.constant 0 : i32
    return %c0_i32, %c0_i32_0 : i32, i32
  }
  func.func @transform_12(%arg0: i32) -> (i32, i32) {
    %c0_i32 = arith.constant 0 : i32
    %c0_i32_0 = arith.constant 0 : i32
    %c0_i32_1 = arith.constant 0 : i32
    return %c0_i32, %c0_i32_0 : i32, i32
  }
  func.func @transform_13(%arg0: i32) -> (i32, i32) {
    %c0_i32 = arith.constant 0 : i32
    %c0_i32_0 = arith.constant 0 : i32
    %c0_i32_1 = arith.constant 0 : i32
    return %c0_i32, %c0_i32_0 : i32, i32
  }
  func.func @transform_14(%arg0: i32) -> (i32, i32) {
    %c0_i32 = arith.constant 0 : i32
    %c0_i32_0 = arith.constant 0 : i32
    %c0_i32_1 = arith.constant 0 : i32
    return %c0_i32, %c0_i32_0 : i32, i32
  }
  func.func @transform_15(%arg0: i32) -> (i32, i32) {
    %c0_i32 = arith.constant 0 : i32
    %c0_i32_0 = arith.constant 0 : i32
    %c0_i32_1 = arith.constant 0 : i32
    return %c0_i32, %c0_i32_0 : i32, i32
  }
  func.func @transform_16(%arg0: i32) -> (i32, i32) {
    %c0_i32 = arith.constant 0 : i32
    %c0_i32_0 = arith.constant 0 : i32
    %c0_i32_1 = arith.constant 0 : i32
    return %c0_i32, %c0_i32_0 : i32, i32
  }
  func.func @transform_17(%arg0: i32) -> (i32, i32) {
    %c0_i32 = arith.constant 0 : i32
    %c0_i32_0 = arith.constant 0 : i32
    %c0_i32_1 = arith.constant 0 : i32
    return %c0_i32, %c0_i32_0 : i32, i32
  }
  func.func @transform_18(%arg0: i32) -> (i32, i32) {
    %c0_i32 = arith.constant 0 : i32
    %c0_i32_0 = arith.constant 0 : i32
    %c0_i32_1 = arith.constant 0 : i32
    return %c0_i32, %c0_i32_0 : i32, i32
  }
  func.func @transform_19(%arg0: i32) -> (i32, i32) {
    %c0_i32 = arith.constant 0 : i32
    %c0_i32_0 = arith.constant 0 : i32
    %c0_i32_1 = arith.constant 0 : i32
    return %c0_i32, %c0_i32_0 : i32, i32
  }
  func.func @transform_20(%arg0: i32) -> (i32, i32) {
    %c0_i32 = arith.constant 0 : i32
    %c0_i32_0 = arith.constant 0 : i32
    %c0_i32_1 = arith.constant 0 : i32
    return %c0_i32, %c0_i32_0 : i32, i32
  }
  func.func @transform_21(%arg0: i32) -> (i32, i32) {
    %c0_i32 = arith.constant 0 : i32
    %c0_i32_0 = arith.constant 0 : i32
    %c0_i32_1 = arith.constant 0 : i32
    return %c0_i32, %c0_i32_0 : i32, i32
  }
  func.func @transform_22(%arg0: i32) -> (i32, i32) {
    %c0_i32 = arith.constant 0 : i32
    %c0_i32_0 = arith.constant 0 : i32
    %c0_i32_1 = arith.constant 0 : i32
    return %c0_i32, %c0_i32_0 : i32, i32
  }
  func.func @transform_23(%arg0: i32) -> (i32, i32) {
    %c0_i32 = arith.constant 0 : i32
    %c0_i32_0 = arith.constant 0 : i32
    %c0_i32_1 = arith.constant 0 : i32
    return %c0_i32, %c0_i32_0 : i32, i32
  }
  func.func @transform_24(%arg0: i32) -> (i32, i32) {
    %c0_i32 = arith.constant 0 : i32
    %c0_i32_0 = arith.constant 0 : i32
    %c0_i32_1 = arith.constant 0 : i32
    return %c0_i32, %c0_i32_0 : i32, i32
  }
  func.func @transform_25(%arg0: i32) -> (i32, i32, i32) {
    %c0_i32 = arith.constant 0 : i32
    %c0_i32_0 = arith.constant 0 : i32
    %c0_i32_1 = arith.constant 0 : i32
    return %arg0, %c0_i32, %c0_i32_0 : i32, i32, i32
  }
}

</mosaic_0001>

<llo_original>
// kernel: _lambda_.1
$region0: #{_lambda_.1}
  #allocation0 [shape = 'u32[]', space=smem, size = 0x4, offset = 0x4, fixed_abs, tag = 'smem constant byte address 0x4 - core index']
  #allocation1 [shape = 'u32[144,128]{1,0:T(1,128)}', space=vmem, size = 0x12000, scoped, tag = 'internal scratch']
  #allocation2 [shape = 'f32[8,640]{1,0:T(8,128)}', space=vmem, size = 0x5000, scoped, tag = 'scratch operand']
  #allocation3 [shape = 'f32[72,384]{1,0:T(8,128)}', space=vmem, size = 0x1b000, scoped, tag = 'scratch operand']
  %s0 = inlined_call_operand.vmem [shape: f32[2,8,384], index: 0, kind: input, shape index: {}]
  %s1 = inlined_call_operand.vmem [shape: f32[1,384], index: 1, kind: input, shape index: {}]
  %s2 = inlined_call_operand.vmem [shape: f32[16,1], index: 2, kind: input, shape index: {}]
  %s3 = inlined_call_operand.vmem [shape: f32[16,8], index: 3, kind: input, shape index: {}]
  %s4 = inlined_call_operand.vmem [shape: f32[16,1], index: 4, kind: input, shape index: {}]
  %s5 = inlined_call_operand.vmem [shape: f32[16,8], index: 5, kind: input, shape index: {}]
  %s6 = inlined_call_operand.vmem [shape: f32[32,1], index: 6, kind: input, shape index: {}]
  %s7 = inlined_call_operand.vmem [shape: f32[32,16], index: 7, kind: input, shape index: {}]
  %s8 = inlined_call_operand.vmem [shape: f32[32,16], index: 8, kind: input, shape index: {}]
  %s9 = inlined_call_operand.vmem [shape: f32[32,16], index: 9, kind: input, shape index: {}]
  %s10 = inlined_call_operand.vmem [shape: f32[8,1], index: 10, kind: input, shape index: {}]
  %s11 = inlined_call_operand.vmem [shape: f32[8,16], index: 11, kind: input, shape index: {}]
  %s12 = inlined_call_operand.vmem [shape: f32[8,1], index: 12, kind: input, shape index: {}]
  %s13 = inlined_call_operand.vmem [shape: f32[8,16], index: 13, kind: input, shape index: {}]
  %s14 = inlined_call_operand.vmem [shape: f32[16,1], index: 14, kind: input, shape index: {}]
  %s15 = inlined_call_operand.vmem [shape: f32[16,8], index: 15, kind: input, shape index: {}]
  %s16 = inlined_call_operand.vmem [shape: f32[16,8], index: 16, kind: input, shape index: {}]
  %s17 = inlined_call_operand.vmem [shape: f32[8,1], index: 17, kind: input, shape index: {}]
  %s18 = inlined_call_operand.vmem [shape: f32[8,72], index: 18, kind: input, shape index: {}]
  %s19 = inlined_call_operand.vmem [shape: f32[8,1], index: 19, kind: input, shape index: {}]
  %s20 = inlined_call_operand.vmem [shape: f32[8,72], index: 20, kind: input, shape index: {}]
  %s21 = inlined_call_operand.vmem [shape: f32[8,1], index: 21, kind: input, shape index: {}]
  %s22 = inlined_call_operand.vmem [shape: f32[8,72], index: 22, kind: input, shape index: {}]
  %s23 = inlined_call_operand.vmem [shape: f32[8,1], index: 23, kind: input, shape index: {}]
  %s24 = inlined_call_operand.vmem [shape: f32[8,72], index: 24, kind: input, shape index: {}]
  %s25 = inlined_call_operand.vmem [shape: f32[2,32,384], index: 25, kind: output, shape index: {}]
  %s26 = sld [smem:[#allocation0]]
  $region133: #{_lambda_.1} parent=0
    _
  %s28 = ssub.s32 1, %s26
  %s29 = scalar_select 0, %s28, %s26
  loop: start=0, step=1, limit=4
  $region2: #{_lambda_.1} parent=0 // loop_pre_header
    _
  $region3: #{_lambda_.1} parent=0 // loop_header
    %s31 = sphi 0, %s35
    %p32 = scmp.ge.s32.totalorder %s31, 4
    %s41 = sphi 0, %s43
    %s44 = sphi 0, %s41
    %s45 = sphi 0, %s44
    %s61 = sphi 0, %s45
    %s65 = sphi 0, %s65
    %s67 = sphi 0, %s65
    %s68 = sphi 0, %s67
    %s82 = sphi 0, %s68
    %s86 = sphi 0, %s86
    %s88 = sphi 0, %s86
    %s89 = sphi 0, %s88
    %s103 = sphi 0, %s89
    %s107 = sphi 0, %s107
    %s109 = sphi 0, %s107
    %s110 = sphi 0, %s109
    %s124 = sphi 0, %s110
    %s128 = sphi 0, %s128
    %s130 = sphi 0, %s128
    %s131 = sphi 0, %s130
    %s145 = sphi 0, %s131
    %s149 = sphi 0, %s149
    %s151 = sphi 0, %s149
    %s152 = sphi 0, %s151
    %s166 = sphi 0, %s152
    %s170 = sphi 0, %s170
    %s172 = sphi 0, %s170
    %s173 = sphi 0, %s172
    %s187 = sphi 0, %s173
    %s191 = sphi 0, %s191
    %s193 = sphi 0, %s191
    %s194 = sphi 0, %s193
    %s208 = sphi 0, %s194
    %s212 = sphi 0, %s212
    %s214 = sphi 0, %s212
    %s215 = sphi 0, %s214
    %s229 = sphi 0, %s215
    %s233 = sphi 0, %s233
    %s235 = sphi 0, %s233
    %s236 = sphi 0, %s235
    %s250 = sphi 0, %s236
    %s254 = sphi 0, %s254
    %s256 = sphi 0, %s254
    %s257 = sphi 0, %s256
    %s271 = sphi 0, %s257
    %s275 = sphi 0, %s275
    %s277 = sphi 0, %s275
    %s278 = sphi 0, %s277
    %s292 = sphi 0, %s278
    %s296 = sphi 0, %s296
    %s298 = sphi 0, %s296
    %s299 = sphi 0, %s298
    %s313 = sphi 0, %s299
    %s317 = sphi 0, %s317
    %s319 = sphi 0, %s317
    %s320 = sphi 0, %s319
    %s334 = sphi 0, %s320
    %s338 = sphi 0, %s338
    %s340 = sphi 0, %s338
    %s341 = sphi 0, %s340
    %s355 = sphi 0, %s341
    %s359 = sphi 0, %s359
    %s361 = sphi 0, %s359
    %s362 = sphi 0, %s361
    %s376 = sphi 0, %s362
    %s380 = sphi 0, %s380
    %s382 = sphi 0, %s380
    %s383 = sphi 0, %s382
    %s397 = sphi 0, %s383
    %s401 = sphi 0, %s401
    %s403 = sphi 0, %s401
    %s404 = sphi 0, %s403
    %s418 = sphi 0, %s404
    %s422 = sphi 0, %s422
    %s424 = sphi 0, %s422
    %s425 = sphi 0, %s424
    %s439 = sphi 0, %s425
    %s443 = sphi 0, %s443
    %s445 = sphi 0, %s443
    %s446 = sphi 0, %s445
    %s460 = sphi 0, %s446
    %s464 = sphi 0, %s464
    %s466 = sphi 0, %s464
    %s467 = sphi 0, %s466
    %s481 = sphi 0, %s467
    %s485 = sphi 0, %s485
    %s487 = sphi 0, %s485
    %s488 = sphi 0, %s487
    %s502 = sphi 0, %s488
    %s506 = sphi 0, %s506
    %s508 = sphi 0, %s506
    %s509 = sphi 0, %s508
    %s523 = sphi 0, %s509
    %s527 = sphi 0, %s527
    %s529 = sphi 0, %s527
    %s530 = sphi 0, %s529
    %s544 = sphi 0, %s530
    %s548 = sphi 0, %s548
    %s550 = sphi 0, %s548
    %s551 = sphi 0, %s550
    %s565 = sphi 0, %s551
    %s571 = sphi 0, %s573
    %s574 = sphi 0, %s571
    %s575 = sphi 0, %s574
    %s591 = sphi 0, %s575
  $region4: #{_lambda_.1} parent=0 // loop_header_branch
    %34 = sbr.rel (%p32) target = $region8
  $region5: #{_lambda_.1} parent=0 // loop_body
    %s36 = ssub.s32 %s31, 1
    %s37 = ssub.s32 %s31, 2
    %s38 = sadd.s32 %s31, 1
    %s39 = ssub.s32 %s31, %s38
    %p40 = scmp.eq.s32.totalorder %s39, 0
    %s42 = sadd.s32 %s41, 1
    %s43 = scalar_select %p40, %s41, %s42
    %p46 = pneg %p40
    %p47 = scmp.eq.s32.totalorder %s31, 1
    %p48 = por %p46, %p47
    %p49 = scmp.ne.s32.totalorder %s41, %s44
    %p50 = scmp.eq.s32.totalorder %s31, 0
    %p51 = por %p49, %p50
    %p52 = scmp.ne.s32.totalorder %s41, %s44
    %p53 = scmp.eq.s32.totalorder %s36, 1
    %p54 = por %p52, %p53
    %p55 = scmp.ne.s32.totalorder %s44, %s45
    %p56 = scmp.eq.s32.totalorder %s36, 0
    %p57 = por %p55, %p56
    %p58 = scmp.ne.s32.totalorder %s44, %s45
    %p59 = scmp.eq.s32.totalorder %s37, 1
    %p60 = por %p58, %p59
    %p62 = scmp.ne.s32.totalorder %s45, %s61
    %p63 = scmp.eq.s32.totalorder %s37, 0
    %p64 = por %p62, %p63
    %s66 = sadd.s32 %s65, 1
    %p69 = scmp.eq.s32.totalorder %s31, 1
    %p70 = scmp.ne.s32.totalorder %s65, %s67
    %p71 = scmp.eq.s32.totalorder %s31, 0
    %p72 = por %p70, %p71
    %p73 = scmp.ne.s32.totalorder %s65, %s67
    %p74 = scmp.eq.s32.totalorder %s36, 1
    %p75 = por %p73, %p74
    %p76 = scmp.ne.s32.totalorder %s67, %s68
    %p77 = scmp.eq.s32.totalorder %s36, 0
    %p78 = por %p76, %p77
    %p79 = scmp.ne.s32.totalorder %s67, %s68
    %p80 = scmp.eq.s32.totalorder %s37, 1
    %p81 = por %p79, %p80
    %p83 = scmp.ne.s32.totalorder %s68, %s82
    %p84 = scmp.eq.s32.totalorder %s37, 0
    %p85 = por %p83, %p84
    %s87 = sadd.s32 %s86, 1
    %p90 = scmp.eq.s32.totalorder %s31, 1
    %p91 = scmp.ne.s32.totalorder %s86, %s88
    %p92 = scmp.eq.s32.totalorder %s31, 0
    %p93 = por %p91, %p92
    %p94 = scmp.ne.s32.totalorder %s86, %s88
    %p95 = scmp.eq.s32.totalorder %s36, 1
    %p96 = por %p94, %p95
    %p97 = scmp.ne.s32.totalorder %s88, %s89
    %p98 = scmp.eq.s32.totalorder %s36, 0
    %p99 = por %p97, %p98
    %p100 = scmp.ne.s32.totalorder %s88, %s89
    %p101 = scmp.eq.s32.totalorder %s37, 1
    %p102 = por %p100, %p101
    %p104 = scmp.ne.s32.totalorder %s89, %s103
    %p105 = scmp.eq.s32.totalorder %s37, 0
    %p106 = por %p104, %p105
    %s108 = sadd.s32 %s107, 1
    %p111 = scmp.eq.s32.totalorder %s31, 1
    %p112 = scmp.ne.s32.totalorder %s107, %s109
    %p113 = scmp.eq.s32.totalorder %s31, 0
    %p114 = por %p112, %p113
    %p115 = scmp.ne.s32.totalorder %s107, %s109
    %p116 = scmp.eq.s32.totalorder %s36, 1
    %p117 = por %p115, %p116
    %p118 = scmp.ne.s32.totalorder %s109, %s110
    %p119 = scmp.eq.s32.totalorder %s36, 0
    %p120 = por %p118, %p119
    %p121 = scmp.ne.s32.totalorder %s109, %s110
    %p122 = scmp.eq.s32.totalorder %s37, 1
    %p123 = por %p121, %p122
    %p125 = scmp.ne.s32.totalorder %s110, %s124
    %p126 = scmp.eq.s32.totalorder %s37, 0
    %p127 = por %p125, %p126
    %s129 = sadd.s32 %s128, 1
    %p132 = scmp.eq.s32.totalorder %s31, 1
    %p133 = scmp.ne.s32.totalorder %s128, %s130
    %p134 = scmp.eq.s32.totalorder %s31, 0
    %p135 = por %p133, %p134
    %p136 = scmp.ne.s32.totalorder %s128, %s130
    %p137 = scmp.eq.s32.totalorder %s36, 1
    %p138 = por %p136, %p137
    %p139 = scmp.ne.s32.totalorder %s130, %s131
    %p140 = scmp.eq.s32.totalorder %s36, 0
    %p141 = por %p139, %p140
    %p142 = scmp.ne.s32.totalorder %s130, %s131
    %p143 = scmp.eq.s32.totalorder %s37, 1
    %p144 = por %p142, %p143
    %p146 = scmp.ne.s32.totalorder %s131, %s145
    %p147 = scmp.eq.s32.totalorder %s37, 0
    %p148 = por %p146, %p147
    %s150 = sadd.s32 %s149, 1
    %p153 = scmp.eq.s32.totalorder %s31, 1
    %p154 = scmp.ne.s32.totalorder %s149, %s151
    %p155 = scmp.eq.s32.totalorder %s31, 0
    %p156 = por %p154, %p155
    %p157 = scmp.ne.s32.totalorder %s149, %s151
    %p158 = scmp.eq.s32.totalorder %s36, 1
    %p159 = por %p157, %p158
    %p160 = scmp.ne.s32.totalorder %s151, %s152
    %p161 = scmp.eq.s32.totalorder %s36, 0
    %p162 = por %p160, %p161
    %p163 = scmp.ne.s32.totalorder %s151, %s152
    %p164 = scmp.eq.s32.totalorder %s37, 1
    %p165 = por %p163, %p164
    %p167 = scmp.ne.s32.totalorder %s152, %s166
    %p168 = scmp.eq.s32.totalorder %s37, 0
    %p169 = por %p167, %p168
    %s171 = sadd.s32 %s170, 1
    %p174 = scmp.eq.s32.totalorder %s31, 1
    %p175 = scmp.ne.s32.totalorder %s170, %s172
    %p176 = scmp.eq.s32.totalorder %s31, 0
    %p177 = por %p175, %p176
    %p178 = scmp.ne.s32.totalorder %s170, %s172
    %p179 = scmp.eq.s32.totalorder %s36, 1
    %p180 = por %p178, %p179
    %p181 = scmp.ne.s32.totalorder %s172, %s173
    %p182 = scmp.eq.s32.totalorder %s36, 0
    %p183 = por %p181, %p182
    %p184 = scmp.ne.s32.totalorder %s172, %s173
    %p185 = scmp.eq.s32.totalorder %s37, 1
    %p186 = por %p184, %p185
    %p188 = scmp.ne.s32.totalorder %s173, %s187
    %p189 = scmp.eq.s32.totalorder %s37, 0
    %p190 = por %p188, %p189
    %s192 = sadd.s32 %s191, 1
    %p195 = scmp.eq.s32.totalorder %s31, 1
    %p196 = scmp.ne.s32.totalorder %s191, %s193
    %p197 = scmp.eq.s32.totalorder %s31, 0
    %p198 = por %p196, %p197
    %p199 = scmp.ne.s32.totalorder %s191, %s193
    %p200 = scmp.eq.s32.totalorder %s36, 1
    %p201 = por %p199, %p200
    %p202 = scmp.ne.s32.totalorder %s193, %s194
    %p203 = scmp.eq.s32.totalorder %s36, 0
    %p204 = por %p202, %p203
    %p205 = scmp.ne.s32.totalorder %s193, %s194
    %p206 = scmp.eq.s32.totalorder %s37, 1
    %p207 = por %p205, %p206
    %p209 = scmp.ne.s32.totalorder %s194, %s208
    %p210 = scmp.eq.s32.totalorder %s37, 0
    %p211 = por %p209, %p210
    %s213 = sadd.s32 %s212, 1
    %p216 = scmp.eq.s32.totalorder %s31, 1
    %p217 = scmp.ne.s32.totalorder %s212, %s214
    %p218 = scmp.eq.s32.totalorder %s31, 0
    %p219 = por %p217, %p218
    %p220 = scmp.ne.s32.totalorder %s212, %s214
    %p221 = scmp.eq.s32.totalorder %s36, 1
    %p222 = por %p220, %p221
    %p223 = scmp.ne.s32.totalorder %s214, %s215
    %p224 = scmp.eq.s32.totalorder %s36, 0
    %p225 = por %p223, %p224
    %p226 = scmp.ne.s32.totalorder %s214, %s215
    %p227 = scmp.eq.s32.totalorder %s37, 1
    %p228 = por %p226, %p227
    %p230 = scmp.ne.s32.totalorder %s215, %s229
    %p231 = scmp.eq.s32.totalorder %s37, 0
    %p232 = por %p230, %p231
    %s234 = sadd.s32 %s233, 1
    %p237 = scmp.eq.s32.totalorder %s31, 1
    %p238 = scmp.ne.s32.totalorder %s233, %s235
    %p239 = scmp.eq.s32.totalorder %s31, 0
    %p240 = por %p238, %p239
    %p241 = scmp.ne.s32.totalorder %s233, %s235
    %p242 = scmp.eq.s32.totalorder %s36, 1
    %p243 = por %p241, %p242
    %p244 = scmp.ne.s32.totalorder %s235, %s236
    %p245 = scmp.eq.s32.totalorder %s36, 0
    %p246 = por %p244, %p245
    %p247 = scmp.ne.s32.totalorder %s235, %s236
    %p248 = scmp.eq.s32.totalorder %s37, 1
    %p249 = por %p247, %p248
    %p251 = scmp.ne.s32.totalorder %s236, %s250
    %p252 = scmp.eq.s32.totalorder %s37, 0
    %p253 = por %p251, %p252
    %s255 = sadd.s32 %s254, 1
    %p258 = scmp.eq.s32.totalorder %s31, 1
    %p259 = scmp.ne.s32.totalorder %s254, %s256
    %p260 = scmp.eq.s32.totalorder %s31, 0
    %p261 = por %p259, %p260
    %p262 = scmp.ne.s32.totalorder %s254, %s256
    %p263 = scmp.eq.s32.totalorder %s36, 1
    %p264 = por %p262, %p263
    %p265 = scmp.ne.s32.totalorder %s256, %s257
    %p266 = scmp.eq.s32.totalorder %s36, 0
    %p267 = por %p265, %p266
    %p268 = scmp.ne.s32.totalorder %s256, %s257
    %p269 = scmp.eq.s32.totalorder %s37, 1
    %p270 = por %p268, %p269
    %p272 = scmp.ne.s32.totalorder %s257, %s271
    %p273 = scmp.eq.s32.totalorder %s37, 0
    %p274 = por %p272, %p273
    %s276 = sadd.s32 %s275, 1
    %p279 = scmp.eq.s32.totalorder %s31, 1
    %p280 = scmp.ne.s32.totalorder %s275, %s277
    %p281 = scmp.eq.s32.totalorder %s31, 0
    %p282 = por %p280, %p281
    %p283 = scmp.ne.s32.totalorder %s275, %s277
    %p284 = scmp.eq.s32.totalorder %s36, 1
    %p285 = por %p283, %p284
    %p286 = scmp.ne.s32.totalorder %s277, %s278
    %p287 = scmp.eq.s32.totalorder %s36, 0
    %p288 = por %p286, %p287
    %p289 = scmp.ne.s32.totalorder %s277, %s278
    %p290 = scmp.eq.s32.totalorder %s37, 1
    %p291 = por %p289, %p290
    %p293 = scmp.ne.s32.totalorder %s278, %s292
    %p294 = scmp.eq.s32.totalorder %s37, 0
    %p295 = por %p293, %p294
    %s297 = sadd.s32 %s296, 1
    %p300 = scmp.eq.s32.totalorder %s31, 1
    %p301 = scmp.ne.s32.totalorder %s296, %s298
    %p302 = scmp.eq.s32.totalorder %s31, 0
    %p303 = por %p301, %p302
    %p304 = scmp.ne.s32.totalorder %s296, %s298
    %p305 = scmp.eq.s32.totalorder %s36, 1
    %p306 = por %p304, %p305
    %p307 = scmp.ne.s32.totalorder %s298, %s299
    %p308 = scmp.eq.s32.totalorder %s36, 0
    %p309 = por %p307, %p308
    %p310 = scmp.ne.s32.totalorder %s298, %s299
    %p311 = scmp.eq.s32.totalorder %s37, 1
    %p312 = por %p310, %p311
    %p314 = scmp.ne.s32.totalorder %s299, %s313
    %p315 = scmp.eq.s32.totalorder %s37, 0
    %p316 = por %p314, %p315
    %s318 = sadd.s32 %s317, 1
    %p321 = scmp.eq.s32.totalorder %s31, 1
    %p322 = scmp.ne.s32.totalorder %s317, %s319
    %p323 = scmp.eq.s32.totalorder %s31, 0
    %p324 = por %p322, %p323
    %p325 = scmp.ne.s32.totalorder %s317, %s319
    %p326 = scmp.eq.s32.totalorder %s36, 1
    %p327 = por %p325, %p326
    %p328 = scmp.ne.s32.totalorder %s319, %s320
    %p329 = scmp.eq.s32.totalorder %s36, 0
    %p330 = por %p328, %p329
    %p331 = scmp.ne.s32.totalorder %s319, %s320
    %p332 = scmp.eq.s32.totalorder %s37, 1
    %p333 = por %p331, %p332
    %p335 = scmp.ne.s32.totalorder %s320, %s334
    %p336 = scmp.eq.s32.totalorder %s37, 0
    %p337 = por %p335, %p336
    %s339 = sadd.s32 %s338, 1
    %p342 = scmp.eq.s32.totalorder %s31, 1
    %p343 = scmp.ne.s32.totalorder %s338, %s340
    %p344 = scmp.eq.s32.totalorder %s31, 0
    %p345 = por %p343, %p344
    %p346 = scmp.ne.s32.totalorder %s338, %s340
    %p347 = scmp.eq.s32.totalorder %s36, 1
    %p348 = por %p346, %p347
    %p349 = scmp.ne.s32.totalorder %s340, %s341
    %p350 = scmp.eq.s32.totalorder %s36, 0
    %p351 = por %p349, %p350
    %p352 = scmp.ne.s32.totalorder %s340, %s341
    %p353 = scmp.eq.s32.totalorder %s37, 1
    %p354 = por %p352, %p353
    %p356 = scmp.ne.s32.totalorder %s341, %s355
    %p357 = scmp.eq.s32.totalorder %s37, 0
    %p358 = por %p356, %p357
    %s360 = sadd.s32 %s359, 1
    %p363 = scmp.eq.s32.totalorder %s31, 1
    %p364 = scmp.ne.s32.totalorder %s359, %s361
    %p365 = scmp.eq.s32.totalorder %s31, 0
    %p366 = por %p364, %p365
    %p367 = scmp.ne.s32.totalorder %s359, %s361
    %p368 = scmp.eq.s32.totalorder %s36, 1
    %p369 = por %p367, %p368
    %p370 = scmp.ne.s32.totalorder %s361, %s362
    %p371 = scmp.eq.s32.totalorder %s36, 0
    %p372 = por %p370, %p371
    %p373 = scmp.ne.s32.totalorder %s361, %s362
    %p374 = scmp.eq.s32.totalorder %s37, 1
    %p375 = por %p373, %p374
    %p377 = scmp.ne.s32.totalorder %s362, %s376
    %p378 = scmp.eq.s32.totalorder %s37, 0
    %p379 = por %p377, %p378
    %s381 = sadd.s32 %s380, 1
    %p384 = scmp.eq.s32.totalorder %s31, 1
    %p385 = scmp.ne.s32.totalorder %s380, %s382
    %p386 = scmp.eq.s32.totalorder %s31, 0
    %p387 = por %p385, %p386
    %p388 = scmp.ne.s32.totalorder %s380, %s382
    %p389 = scmp.eq.s32.totalorder %s36, 1
    %p390 = por %p388, %p389
    %p391 = scmp.ne.s32.totalorder %s382, %s383
    %p392 = scmp.eq.s32.totalorder %s36, 0
    %p393 = por %p391, %p392
    %p394 = scmp.ne.s32.totalorder %s382, %s383
    %p395 = scmp.eq.s32.totalorder %s37, 1
    %p396 = por %p394, %p395
    %p398 = scmp.ne.s32.totalorder %s383, %s397
    %p399 = scmp.eq.s32.totalorder %s37, 0
    %p400 = por %p398, %p399
    %s402 = sadd.s32 %s401, 1
    %p405 = scmp.eq.s32.totalorder %s31, 1
    %p406 = scmp.ne.s32.totalorder %s401, %s403
    %p407 = scmp.eq.s32.totalorder %s31, 0
    %p408 = por %p406, %p407
    %p409 = scmp.ne.s32.totalorder %s401, %s403
    %p410 = scmp.eq.s32.totalorder %s36, 1
    %p411 = por %p409, %p410
    %p412 = scmp.ne.s32.totalorder %s403, %s404
    %p413 = scmp.eq.s32.totalorder %s36, 0
    %p414 = por %p412, %p413
    %p415 = scmp.ne.s32.totalorder %s403, %s404
    %p416 = scmp.eq.s32.totalorder %s37, 1
    %p417 = por %p415, %p416
    %p419 = scmp.ne.s32.totalorder %s404, %s418
    %p420 = scmp.eq.s32.totalorder %s37, 0
    %p421 = por %p419, %p420
    %s423 = sadd.s32 %s422, 1
    %p426 = scmp.eq.s32.totalorder %s31, 1
    %p427 = scmp.ne.s32.totalorder %s422, %s424
    %p428 = scmp.eq.s32.totalorder %s31, 0
    %p429 = por %p427, %p428
    %p430 = scmp.ne.s32.totalorder %s422, %s424
    %p431 = scmp.eq.s32.totalorder %s36, 1
    %p432 = por %p430, %p431
    %p433 = scmp.ne.s32.totalorder %s424, %s425
    %p434 = scmp.eq.s32.totalorder %s36, 0
    %p435 = por %p433, %p434
    %p436 = scmp.ne.s32.totalorder %s424, %s425
    %p437 = scmp.eq.s32.totalorder %s37, 1
    %p438 = por %p436, %p437
    %p440 = scmp.ne.s32.totalorder %s425, %s439
    %p441 = scmp.eq.s32.totalorder %s37, 0
    %p442 = por %p440, %p441
    %s444 = sadd.s32 %s443, 1
    %p447 = scmp.eq.s32.totalorder %s31, 1
    %p448 = scmp.ne.s32.totalorder %s443, %s445
    %p449 = scmp.eq.s32.totalorder %s31, 0
    %p450 = por %p448, %p449
    %p451 = scmp.ne.s32.totalorder %s443, %s445
    %p452 = scmp.eq.s32.totalorder %s36, 1
    %p453 = por %p451, %p452
    %p454 = scmp.ne.s32.totalorder %s445, %s446
    %p455 = scmp.eq.s32.totalorder %s36, 0
    %p456 = por %p454, %p455
    %p457 = scmp.ne.s32.totalorder %s445, %s446
    %p458 = scmp.eq.s32.totalorder %s37, 1
    %p459 = por %p457, %p458
    %p461 = scmp.ne.s32.totalorder %s446, %s460
    %p462 = scmp.eq.s32.totalorder %s37, 0
    %p463 = por %p461, %p462
    %s465 = sadd.s32 %s464, 1
    %p468 = scmp.eq.s32.totalorder %s31, 1
    %p469 = scmp.ne.s32.totalorder %s464, %s466
    %p470 = scmp.eq.s32.totalorder %s31, 0
    %p471 = por %p469, %p470
    %p472 = scmp.ne.s32.totalorder %s464, %s466
    %p473 = scmp.eq.s32.totalorder %s36, 1
    %p474 = por %p472, %p473
    %p475 = scmp.ne.s32.totalorder %s466, %s467
    %p476 = scmp.eq.s32.totalorder %s36, 0
    %p477 = por %p475, %p476
    %p478 = scmp.ne.s32.totalorder %s466, %s467
    %p479 = scmp.eq.s32.totalorder %s37, 1
    %p480 = por %p478, %p479
    %p482 = scmp.ne.s32.totalorder %s467, %s481
    %p483 = scmp.eq.s32.totalorder %s37, 0
    %p484 = por %p482, %p483
    %s486 = sadd.s32 %s485, 1
    %p489 = scmp.eq.s32.totalorder %s31, 1
    %p490 = scmp.ne.s32.totalorder %s485, %s487
    %p491 = scmp.eq.s32.totalorder %s31, 0
    %p492 = por %p490, %p491
    %p493 = scmp.ne.s32.totalorder %s485, %s487
    %p494 = scmp.eq.s32.totalorder %s36, 1
    %p495 = por %p493, %p494
    %p496 = scmp.ne.s32.totalorder %s487, %s488
    %p497 = scmp.eq.s32.totalorder %s36, 0
    %p498 = por %p496, %p497
    %p499 = scmp.ne.s32.totalorder %s487, %s488
    %p500 = scmp.eq.s32.totalorder %s37, 1
    %p501 = por %p499, %p500
    %p503 = scmp.ne.s32.totalorder %s488, %s502
    %p504 = scmp.eq.s32.totalorder %s37, 0
    %p505 = por %p503, %p504
    %s507 = sadd.s32 %s506, 1
    %p510 = scmp.eq.s32.totalorder %s31, 1
    %p511 = scmp.ne.s32.totalorder %s506, %s508
    %p512 = scmp.eq.s32.totalorder %s31, 0
    %p513 = por %p511, %p512
    %p514 = scmp.ne.s32.totalorder %s506, %s508
    %p515 = scmp.eq.s32.totalorder %s36, 1
    %p516 = por %p514, %p515
    %p517 = scmp.ne.s32.totalorder %s508, %s509
    %p518 = scmp.eq.s32.totalorder %s36, 0
    %p519 = por %p517, %p518
    %p520 = scmp.ne.s32.totalorder %s508, %s509
    %p521 = scmp.eq.s32.totalorder %s37, 1
    %p522 = por %p520, %p521
    %p524 = scmp.ne.s32.totalorder %s509, %s523
    %p525 = scmp.eq.s32.totalorder %s37, 0
    %p526 = por %p524, %p525
    %s528 = sadd.s32 %s527, 1
    %p531 = scmp.eq.s32.totalorder %s31, 1
    %p532 = scmp.ne.s32.totalorder %s527, %s529
    %p533 = scmp.eq.s32.totalorder %s31, 0
    %p534 = por %p532, %p533
    %p535 = scmp.ne.s32.totalorder %s527, %s529
    %p536 = scmp.eq.s32.totalorder %s36, 1
    %p537 = por %p535, %p536
    %p538 = scmp.ne.s32.totalorder %s529, %s530
    %p539 = scmp.eq.s32.totalorder %s36, 0
    %p540 = por %p538, %p539
    %p541 = scmp.ne.s32.totalorder %s529, %s530
    %p542 = scmp.eq.s32.totalorder %s37, 1
    %p543 = por %p541, %p542
    %p545 = scmp.ne.s32.totalorder %s530, %s544
    %p546 = scmp.eq.s32.totalorder %s37, 0
    %p547 = por %p545, %p546
    %s549 = sadd.s32 %s548, 1
    %p552 = scmp.eq.s32.totalorder %s31, 1
    %p553 = scmp.ne.s32.totalorder %s548, %s550
    %p554 = scmp.eq.s32.totalorder %s31, 0
    %p555 = por %p553, %p554
    %p556 = scmp.ne.s32.totalorder %s548, %s550
    %p557 = scmp.eq.s32.totalorder %s36, 1
    %p558 = por %p556, %p557
    %p559 = scmp.ne.s32.totalorder %s550, %s551
    %p560 = scmp.eq.s32.totalorder %s36, 0
    %p561 = por %p559, %p560
    %p562 = scmp.ne.s32.totalorder %s550, %s551
    %p563 = scmp.eq.s32.totalorder %s37, 1
    %p564 = por %p562, %p563
    %p566 = scmp.ne.s32.totalorder %s551, %s565
    %p567 = scmp.eq.s32.totalorder %s37, 0
    %p568 = por %p566, %p567
    %s569 = ssub.s32 %s31, %s38
    %p570 = scmp.eq.s32.totalorder %s569, 0
    %s572 = sadd.s32 %s571, 1
    %s573 = scalar_select %p570, %s571, %s572
    %p576 = pneg %p570
    %p577 = scmp.eq.s32.totalorder %s31, 1
    %p578 = por %p576, %p577
    %p579 = scmp.ne.s32.totalorder %s571, %s574
    %p580 = scmp.eq.s32.totalorder %s31, 0
    %p581 = por %p579, %p580
    %p582 = scmp.ne.s32.totalorder %s571, %s574
    %p583 = scmp.eq.s32.totalorder %s36, 1
    %p584 = por %p582, %p583
    %p585 = scmp.ne.s32.totalorder %s574, %s575
    %p586 = scmp.eq.s32.totalorder %s36, 0
    %p587 = por %p585, %p586
    %p588 = scmp.ne.s32.totalorder %s574, %s575
    %p589 = scmp.eq.s32.totalorder %s37, 1
    %p590 = por %p588, %p589
    %p592 = scmp.ne.s32.totalorder %s575, %s591
    %p593 = scmp.eq.s32.totalorder %s37, 0
    %p594 = por %p592, %p593
    %p595 = scmp.le.s32.totalorder 1, %s31
    %p596 = scmp.lt.s32.totalorder %s31, 3
    %p597 = pnand %p595, %p596
    %p598 = pneg %p597
    // Predicated region
    $region9: #{_lambda_.1} parent=5 // pred_check
      _
    $region10: #{_lambda_.1} parent=5 // pred_check_branch
      %600 = sbr.rel (%p597) target = $region12
    $region11: #{_lambda_.1} parent=5 // pred_region
      %s601 = ssub.s32 %s31, 1
      // Predicated region
      $region13: #{_lambda_.1} parent=11 // pred_check
        %p602 = pneg %p78
      $region14: #{_lambda_.1} parent=11 // pred_check_branch
        %604 = sbr.rel (%p602) target = $region16
      $region15: #{_lambda_.1} parent=11 // pred_region
        _
      $region16: #{_lambda_.1} parent=11 // pred_fallthru
        _
      // Predicated region
      $region17: #{_lambda_.1} parent=11 // pred_check
        %p605 = pneg %p99
      $region18: #{_lambda_.1} parent=11 // pred_check_branch
        %607 = sbr.rel (%p605) target = $region20
      $region19: #{_lambda_.1} parent=11 // pred_region
        _
      $region20: #{_lambda_.1} parent=11 // pred_fallthru
        _
      // Predicated region
      $region21: #{_lambda_.1} parent=11 // pred_check
        %p608 = pneg %p120
      $region22: #{_lambda_.1} parent=11 // pred_check_branch
        %610 = sbr.rel (%p608) target = $region24
      $region23: #{_lambda_.1} parent=11 // pred_region
        _
      $region24: #{_lambda_.1} parent=11 // pred_fallthru
        _
      // Predicated region
      $region25: #{_lambda_.1} parent=11 // pred_check
        %p611 = pneg %p141
      $region26: #{_lambda_.1} parent=11 // pred_check_branch
        %613 = sbr.rel (%p611) target = $region28
      $region27: #{_lambda_.1} parent=11 // pred_region
        _
      $region28: #{_lambda_.1} parent=11 // pred_fallthru
        _
      // Predicated region
      $region29: #{_lambda_.1} parent=11 // pred_check
        %p614 = pneg %p162
      $region30: #{_lambda_.1} parent=11 // pred_check_branch
        %616 = sbr.rel (%p614) target = $region32
      $region31: #{_lambda_.1} parent=11 // pred_region
        _
      $region32: #{_lambda_.1} parent=11 // pred_fallthru
        _
      // Predicated region
      $region33: #{_lambda_.1} parent=11 // pred_check
        %p617 = pneg %p183
      $region34: #{_lambda_.1} parent=11 // pred_check_branch
        %619 = sbr.rel (%p617) target = $region36
      $region35: #{_lambda_.1} parent=11 // pred_region
        _
      $region36: #{_lambda_.1} parent=11 // pred_fallthru
        _
      // Predicated region
      $region37: #{_lambda_.1} parent=11 // pred_check
        %p620 = pneg %p204
      $region38: #{_lambda_.1} parent=11 // pred_check_branch
        %622 = sbr.rel (%p620) target = $region40
      $region39: #{_lambda_.1} parent=11 // pred_region
        _
      $region40: #{_lambda_.1} parent=11 // pred_fallthru
        _
      // Predicated region
      $region41: #{_lambda_.1} parent=11 // pred_check
        %p623 = pneg %p225
      $region42: #{_lambda_.1} parent=11 // pred_check_branch
        %625 = sbr.rel (%p623) target = $region44
      $region43: #{_lambda_.1} parent=11 // pred_region
        _
      $region44: #{_lambda_.1} parent=11 // pred_fallthru
        _
      // Predicated region
      $region45: #{_lambda_.1} parent=11 // pred_check
        %p626 = pneg %p246
      $region46: #{_lambda_.1} parent=11 // pred_check_branch
        %628 = sbr.rel (%p626) target = $region48
      $region47: #{_lambda_.1} parent=11 // pred_region
        _
      $region48: #{_lambda_.1} parent=11 // pred_fallthru
        _
      // Predicated region
      $region49: #{_lambda_.1} parent=11 // pred_check
        %p629 = pneg %p267
      $region50: #{_lambda_.1} parent=11 // pred_check_branch
        %631 = sbr.rel (%p629) target = $region52
      $region51: #{_lambda_.1} parent=11 // pred_region
        _
      $region52: #{_lambda_.1} parent=11 // pred_fallthru
        _
      // Predicated region
      $region53: #{_lambda_.1} parent=11 // pred_check
        %p632 = pneg %p288
      $region54: #{_lambda_.1} parent=11 // pred_check_branch
        %634 = sbr.rel (%p632) target = $region56
      $region55: #{_lambda_.1} parent=11 // pred_region
        _
      $region56: #{_lambda_.1} parent=11 // pred_fallthru
        _
      // Predicated region
      $region57: #{_lambda_.1} parent=11 // pred_check
        %p635 = pneg %p309
      $region58: #{_lambda_.1} parent=11 // pred_check_branch
        %637 = sbr.rel (%p635) target = $region60
      $region59: #{_lambda_.1} parent=11 // pred_region
        _
      $region60: #{_lambda_.1} parent=11 // pred_fallthru
        _
      // Predicated region
      $region61: #{_lambda_.1} parent=11 // pred_check
        %p638 = pneg %p330
      $region62: #{_lambda_.1} parent=11 // pred_check_branch
        %640 = sbr.rel (%p638) target = $region64
      $region63: #{_lambda_.1} parent=11 // pred_region
        _
      $region64: #{_lambda_.1} parent=11 // pred_fallthru
        _
      // Predicated region
      $region65: #{_lambda_.1} parent=11 // pred_check
        %p641 = pneg %p351
      $region66: #{_lambda_.1} parent=11 // pred_check_branch
        %643 = sbr.rel (%p641) target = $region68
      $region67: #{_lambda_.1} parent=11 // pred_region
        _
      $region68: #{_lambda_.1} parent=11 // pred_fallthru
        _
      // Predicated region
      $region69: #{_lambda_.1} parent=11 // pred_check
        %p644 = pneg %p372
      $region70: #{_lambda_.1} parent=11 // pred_check_branch
        %646 = sbr.rel (%p644) target = $region72
      $region71: #{_lambda_.1} parent=11 // pred_region
        _
      $region72: #{_lambda_.1} parent=11 // pred_fallthru
        _
      // Predicated region
      $region73: #{_lambda_.1} parent=11 // pred_check
        %p647 = pneg %p393
      $region74: #{_lambda_.1} parent=11 // pred_check_branch
        %649 = sbr.rel (%p647) target = $region76
      $region75: #{_lambda_.1} parent=11 // pred_region
        _
      $region76: #{_lambda_.1} parent=11 // pred_fallthru
        _
      // Predicated region
      $region77: #{_lambda_.1} parent=11 // pred_check
        %p650 = pneg %p414
      $region78: #{_lambda_.1} parent=11 // pred_check_branch
        %652 = sbr.rel (%p650) target = $region80
      $region79: #{_lambda_.1} parent=11 // pred_region
        _
      $region80: #{_lambda_.1} parent=11 // pred_fallthru
        _
      // Predicated region
      $region81: #{_lambda_.1} parent=11 // pred_check
        %p653 = pneg %p435
      $region82: #{_lambda_.1} parent=11 // pred_check_branch
        %655 = sbr.rel (%p653) target = $region84
      $region83: #{_lambda_.1} parent=11 // pred_region
        _
      $region84: #{_lambda_.1} parent=11 // pred_fallthru
        _
      // Predicated region
      $region85: #{_lambda_.1} parent=11 // pred_check
        %p656 = pneg %p456
      $region86: #{_lambda_.1} parent=11 // pred_check_branch
        %658 = sbr.rel (%p656) target = $region88
      $region87: #{_lambda_.1} parent=11 // pred_region
        _
      $region88: #{_lambda_.1} parent=11 // pred_fallthru
        _
      // Predicated region
      $region89: #{_lambda_.1} parent=11 // pred_check
        %p659 = pneg %p477
      $region90: #{_lambda_.1} parent=11 // pred_check_branch
        %661 = sbr.rel (%p659) target = $region92
      $region91: #{_lambda_.1} parent=11 // pred_region
        _
      $region92: #{_lambda_.1} parent=11 // pred_fallthru
        _
      // Predicated region
      $region93: #{_lambda_.1} parent=11 // pred_check
        %p662 = pneg %p498
      $region94: #{_lambda_.1} parent=11 // pred_check_branch
        %664 = sbr.rel (%p662) target = $region96
      $region95: #{_lambda_.1} parent=11 // pred_region
        _
      $region96: #{_lambda_.1} parent=11 // pred_fallthru
        _
      // Predicated region
      $region97: #{_lambda_.1} parent=11 // pred_check
        %p665 = pneg %p519
      $region98: #{_lambda_.1} parent=11 // pred_check_branch
        %667 = sbr.rel (%p665) target = $region100
      $region99: #{_lambda_.1} parent=11 // pred_region
        _
      $region100: #{_lambda_.1} parent=11 // pred_fallthru
        _
      // Predicated region
      $region101: #{_lambda_.1} parent=11 // pred_check
        %p668 = pneg %p540
      $region102: #{_lambda_.1} parent=11 // pred_check_branch
        %670 = sbr.rel (%p668) target = $region104
      $region103: #{_lambda_.1} parent=11 // pred_region
        _
      $region104: #{_lambda_.1} parent=11 // pred_fallthru
        _
      // Predicated region
      $region105: #{_lambda_.1} parent=11 // pred_check
        %p671 = pneg %p561
      $region106: #{_lambda_.1} parent=11 // pred_check_branch
        %673 = sbr.rel (%p671) target = $region108
      $region107: #{_lambda_.1} parent=11 // pred_region
        _
      $region108: #{_lambda_.1} parent=11 // pred_fallthru
        _
    $region12: #{_lambda_.1} parent=5 // pred_fallthru
      _
    %p674 = scmp.lt.s32.totalorder %s31, 2
    // Predicated region
    $region109: #{_lambda_.1} parent=5 // pred_check
      %p675 = pneg %p674
    $region110: #{_lambda_.1} parent=5 // pred_check_branch
      %677 = sbr.rel (%p675) target = $region112
    $region111: #{_lambda_.1} parent=5 // pred_region
      // Predicated region
      $region113: #{_lambda_.1} parent=111 // pred_check
        %p678 = pneg %p51
      $region114: #{_lambda_.1} parent=111 // pred_check_branch
        %680 = sbr.rel (%p678) target = $region116
      $region115: #{_lambda_.1} parent=111 // pred_region
        %p681 = scmp.lt.s32.totalorder %s31, 1
        %s682 = scalar_select %p681, %s31, 1
        %s683 = smul.addr %s682, 3
        %s684 = smul.addr %s683, 8
        %s685 = scalar_lea.vmem %s0, %s684
      $region116: #{_lambda_.1} parent=111 // pred_fallthru
        _
    $region112: #{_lambda_.1} parent=5 // pred_fallthru
      _
    %p686 = scmp.le.s32.totalorder 1, %s31
    %p687 = scmp.lt.s32.totalorder %s31, 3
    %p688 = pnand %p686, %p687
    %p689 = pneg %p688
    // Predicated region
    $region117: #{_lambda_.1} parent=5 // pred_check
      _
    $region118: #{_lambda_.1} parent=5 // pred_check_branch
      %691 = sbr.rel (%p688) target = $region120
    $region119: #{_lambda_.1} parent=5 // pred_region
      %s692 = ssub.s32 %s31, 1
      %p693 = scmp.lt.s32.totalorder %s36, 1
      %s694 = scalar_select %p693, %s36, 1
      %s695 = smul.addr %s694, 3
      %s696 = smul.addr %s695, 8
      %s697 = scalar_lea.vmem %s0, %s696
      %p698 = pneg %p57
      %p699 = pneg %p54
      %p700 = pneg %p78
      %p701 = pneg %p75
      %p702 = pneg %p99
      %p703 = pneg %p96
      %p704 = pneg %p120
      %p705 = pneg %p117
      %p706 = pneg %p141
      %p707 = pneg %p138
      %p708 = pneg %p162
      %p709 = pneg %p159
      %p710 = pneg %p183
      %p711 = pneg %p180
      %p712 = pneg %p204
      %p713 = pneg %p201
      %p714 = pneg %p225
      %p715 = pneg %p222
      %p716 = pneg %p246
      %p717 = pneg %p243
      %p718 = pneg %p267
      %p719 = pneg %p264
      %p720 = pneg %p288
      %p721 = pneg %p285
      %p722 = pneg %p309
      %p723 = pneg %p306
      %p724 = pneg %p330
      %p725 = pneg %p327
      %p726 = pneg %p351
      %p727 = pneg %p348
      %p728 = pneg %p372
      %p729 = pneg %p369
      %p730 = pneg %p393
      %p731 = pneg %p390
      %p732 = pneg %p414
      %p733 = pneg %p411
      %p734 = pneg %p435
      %p735 = pneg %p432
      %p736 = pneg %p456
      %p737 = pneg %p453
      %p738 = pneg %p477
      %p739 = pneg %p474
      %p740 = pneg %p498
      %p741 = pneg %p495
      %p742 = pneg %p519
      %p743 = pneg %p516
      %p744 = pneg %p540
      %p745 = pneg %p537
      %p746 = pneg %p561
      %p747 = pneg %p558
      %p748 = pneg %p587
      %p749 = pneg %p584
      %p750 = scmp.lt.s32.totalorder %s36, 1
      %s751 = scalar_select %p750, %s36, 1
      %s752 = smul.addr %s751, 12
      %s753 = smul.addr %s752, 8
      %s754 = scalar_lea.vmem %s25, %s753
      %p755 = scmp.lt.s32.totalorder %s36, 1
      %s756 = scalar_select %p755, %s36, 1
      %s757 = smul.addr %s756, 3
      %s758 = smul.addr %s757, 8
      %s759 = scalar_lea.vmem %s0, %s758
      %p760 = scmp.lt.s32.totalorder %s36, 1
      %s761 = scalar_select %p760, %s36, 1
      %s762 = smul.addr %s761, 12
      %s763 = smul.addr %s762, 8
      %s764 = scalar_lea.vmem %s25, %s763
      %765 = vst [vmem:[#allocation2] sm:$0xff] 0.0
      %766 = vst [vmem:[#allocation2 + $0x20] sm:$0xff] 0.0
      %v767 = vld [vmem:[%s1] sm:$0x7]
      %v768 = vld [vmem:[%s759] sm:$0xff]
      %v769 = vld [vmem:[%s759 + $0x8] sm:$0xff]
      %v770 = vld [vmem:[%s759 + $0x10] sm:$0xff]
      %v771 = vld [vmem:[%s3] sm:$0xff]
      %v772 = vld [vmem:[%s3 + $0x8] sm:$0xff]
      %v773 = vld [vmem:[%s2] sm:$0xff]
      %v774 = vld [vmem:[%s2 + $0x8] sm:$0xff]
      %776 = vset.pattern.permute.xlu0 0
      %777 = vperm.xlu0 %776, %v773
      %v778 = vpop.permute.xlu0 %777
      %781 = vset.pattern.permute.xlu0 0
      %782 = vperm.xlu0 %781, %v774
      %v783 = vpop.permute.xlu0 %782
      %vm785 = vcmask 64512
      %v787 = vsel %vm785, %v771, 0
      %v790 = vsel %vm785, %v772, 0
      %792 = vmatprep.subr.mxu0 %v769
      %793 = vmatpush1.msra.mxu0 %v768
      %794 = vmatprep.subr.mxu0 0.0
      %795 = vmatpush1.msra.mxu0 0.0
      %796 = vmatprep.subr.mxu0 0.0
      %797 = vmatpush1.msra.mxu0 0.0
      %798 = vmatprep.subr.mxu0 0.0
      %799 = vmatpush1.msra.mxu0 0.0
      %800 = vmatprep.subr.mxu0 0.0
      %801 = vmatpush1.msra.mxu0 0.0
      %802 = vmatprep.subr.mxu0 0.0
      %803 = vmatpush1.msra.mxu0 0.0
      %804 = vmatprep.subr.mxu0 0.0
      %805 = vmatpush1.msra.mxu0 0.0
      %806 = vmatprep.subr.mxu0 0.0
      %807 = vmatpush1.msra.mxu0 0.0
      %808 = vmatprep.subr.mxu0 0.0
      %809 = vmatpush1.msra.mxu0 0.0
      %810 = vmatprep.subr.mxu0 0.0
      %811 = vmatpush1.msra.mxu0 0.0
      %812 = vmatprep.subr.mxu0 0.0
      %813 = vmatpush1.msra.mxu0 0.0
      %814 = vmatprep.subr.mxu0 0.0
      %815 = vmatpush1.msra.mxu0 0.0
      %816 = vmatprep.subr.mxu0 0.0
      %817 = vmatpush1.msra.mxu0 0.0
      %818 = vmatprep.subr.mxu0 0.0
      %819 = vmatpush1.msra.mxu0 0.0
      %820 = vmatprep.subr.mxu0 0.0
      %821 = vmatpush1.msra.mxu0 0.0
      %822 = vmatprep.subr.mxu0 0.0
      %823 = vmatpush1.msra.mxu0 0.0
      %824 = vmatprep.subr.mxu0 0.0
      %825 = vmatpush1.msra.mxu0 0.0
      %826 = vmatprep.subr.mxu0 0.0
      %827 = vmatpush1.msra.mxu0 0.0
      %828 = vmatprep.subr.mxu0 0.0
      %829 = vmatpush1.msra.mxu0 0.0
      %830 = vmatprep.subr.mxu0 0.0
      %831 = vmatpush1.msra.mxu0 0.0
      %832 = vmatprep.subr.mxu0 0.0
      %833 = vmatpush1.msra.mxu0 0.0
      %834 = vmatprep.subr.mxu0 0.0
      %835 = vmatpush1.msra.mxu0 0.0
      %836 = vmatprep.subr.mxu0 0.0
      %837 = vmatpush1.msra.mxu0 0.0
      %838 = vmatprep.subr.mxu0 0.0
      %839 = vmatpush1.msra.mxu0 0.0
      %840 = vmatprep.subr.mxu0 0.0
      %841 = vmatpush1.msra.mxu0 0.0
      %842 = vmatprep.subr.mxu0 0.0
      %843 = vmatpush1.msra.mxu0 0.0
      %844 = vmatprep.subr.mxu0 0.0
      %845 = vmatpush1.msra.mxu0 0.0
      %846 = vmatprep.subr.mxu0 0.0
      %847 = vmatpush1.msra.mxu0 0.0
      %848 = vmatprep.subr.mxu0 0.0
      %849 = vmatpush1.msra.mxu0 0.0
      %850 = vmatprep.subr.mxu0 0.0
      %851 = vmatpush1.msra.mxu0 0.0
      %852 = vmatprep.subr.mxu0 0.0
      %853 = vmatpush1.msra.mxu0 0.0
      %854 = vmatprep.subr.mxu0 0.0
      %855 = vmatpush1.msra.mxu0 0.0
      %856 = vmatprep.mubr.f32.mxu0 0.0
      %857 = vmatmul.mubr.f32.gmra.mrb[0].mxu0 %v787
      %v858 = vpop.f32.mrb[0].mxu0
      %v859 = vadd.f32 %v778, %v858
      %v860 = vpop.f32.mrb[0].mxu0
      %v861 = vadd.f32 %v778, %v860
      %862 = vmatprep.mubr.f32.mxu0 0.0
      %863 = vmatmul.mubr.f32.gmra.mrb[0].mxu0 %v790
      %v864 = vpop.f32.mrb[0].mxu0
      %v865 = vadd.f32 %v783, %v864
      %v866 = vpop.f32.mrb[0].mxu0
      %v867 = vadd.f32 %v783, %v866
      %868 = vdwg.mxu0
      %869 = vmatprep.subr.mxu0 0.0
      %870 = vmatpush1.msra.mxu0 %v770
      %871 = vmatprep.subr.mxu0 0.0
      %872 = vmatpush1.msra.mxu0 0.0
      %873 = vmatprep.subr.mxu0 0.0
      %874 = vmatpush1.msra.mxu0 0.0
      %875 = vmatprep.subr.mxu0 0.0
      %876 = vmatpush1.msra.mxu0 0.0
      %877 = vmatprep.subr.mxu0 0.0
      %878 = vmatpush1.msra.mxu0 0.0
      %879 = vmatprep.subr.mxu0 0.0
      %880 = vmatpush1.msra.mxu0 0.0
      %881 = vmatprep.subr.mxu0 0.0
      %882 = vmatpush1.msra.mxu0 0.0
      %883 = vmatprep.subr.mxu0 0.0
      %884 = vmatpush1.msra.mxu0 0.0
      %885 = vmatprep.subr.mxu0 0.0
      %886 = vmatpush1.msra.mxu0 0.0
      %887 = vmatprep.subr.mxu0 0.0
      %888 = vmatpush1.msra.mxu0 0.0
      %889 = vmatprep.subr.mxu0 0.0
      %890 = vmatpush1.msra.mxu0 0.0
      %891 = vmatprep.subr.mxu0 0.0
      %892 = vmatpush1.msra.mxu0 0.0
      %893 = vmatprep.subr.mxu0 0.0
      %894 = vmatpush1.msra.mxu0 0.0
      %895 = vmatprep.subr.mxu0 0.0
      %896 = vmatpush1.msra.mxu0 0.0
      %897 = vmatprep.subr.mxu0 0.0
      %898 = vmatpush1.msra.mxu0 0.0
      %899 = vmatprep.subr.mxu0 0.0
      %900 = vmatpush1.msra.mxu0 0.0
      %901 = vmatprep.subr.mxu0 0.0
      %902 = vmatpush1.msra.mxu0 0.0
      %903 = vmatprep.subr.mxu0 0.0
      %904 = vmatpush1.msra.mxu0 0.0
      %905 = vmatprep.subr.mxu0 0.0
      %906 = vmatpush1.msra.mxu0 0.0
      %907 = vmatprep.subr.mxu0 0.0
      %908 = vmatpush1.msra.mxu0 0.0
      %909 = vmatprep.subr.mxu0 0.0
      %910 = vmatpush1.msra.mxu0 0.0
      %911 = vmatprep.subr.mxu0 0.0
      %912 = vmatpush1.msra.mxu0 0.0
      %913 = vmatprep.subr.mxu0 0.0
      %914 = vmatpush1.msra.mxu0 0.0
      %915 = vmatprep.subr.mxu0 0.0
      %916 = vmatpush1.msra.mxu0 0.0
      %917 = vmatprep.subr.mxu0 0.0
      %918 = vmatpush1.msra.mxu0 0.0
      %919 = vmatprep.subr.mxu0 0.0
      %920 = vmatpush1.msra.mxu0 0.0
      %921 = vmatprep.subr.mxu0 0.0
      %922 = vmatpush1.msra.mxu0 0.0
      %923 = vmatprep.subr.mxu0 0.0
      %924 = vmatpush1.msra.mxu0 0.0
      %925 = vmatprep.subr.mxu0 0.0
      %926 = vmatpush1.msra.mxu0 0.0
      %927 = vmatprep.subr.mxu0 0.0
      %928 = vmatpush1.msra.mxu0 0.0
      %929 = vmatprep.subr.mxu0 0.0
      %930 = vmatpush1.msra.mxu0 0.0
      %931 = vmatprep.subr.mxu0 0.0
      %932 = vmatpush1.msra.mxu0 0.0
      %933 = vmatprep.mubr.f32.mxu0 0.0
      %934 = vmatmul.mubr.f32.gmra.mrb[0].mxu0 %v787
      %v935 = vpop.f32.mrb[0].mxu0
      %v936 = vadd.f32 %v778, %v935
      %v937 = vpop.f32.mrb[0].mxu0
      %938 = vmatprep.mubr.f32.mxu0 0.0
      %939 = vmatmul.mubr.f32.gmra.mrb[0].mxu0 %v790
      %v940 = vpop.f32.mrb[0].mxu0
      %v941 = vadd.f32 %v783, %v940
      %v942 = vpop.f32.mrb[0].mxu0
      %943 = vdwg.mxu0
      %v944 = vxor.u32 %v859, 2147483648
      %v945 = vxor.u32 %v861, 2147483648
      %v946 = vxor.u32 %v936, 2147483648
      %v947 = vxor.u32 %v865, 2147483648
      %v948 = vxor.u32 %v867, 2147483648
      %v949 = vxor.u32 %v941, 2147483648
      %v950 = vmul.f32 %v944, 1.442695
      %v951 = vpow.pop %v950
      %v952 = vmul.f32 %v945, 1.442695
      %v953 = vpow.pop %v952
      %v954 = vmul.f32 %v946, 1.442695
      %v955 = vpow.pop %v954
      %v956 = vmul.f32 %v947, 1.442695
      %v957 = vpow.pop %v956
      %v958 = vmul.f32 %v948, 1.442695
      %v959 = vpow.pop %v958
      %v960 = vmul.f32 %v949, 1.442695
      %v961 = vpow.pop %v960
      %v962 = vadd.f32 %v951, 1.0
      %v963 = vadd.f32 %v953, 1.0
      %v964 = vadd.f32 %v955, 1.0
      %v965 = vadd.f32 %v957, 1.0
      %v966 = vadd.f32 %v959, 1.0
      %v967 = vadd.f32 %v961, 1.0
      %v968 = vrcp.pop %v962
      %v969 = vmul.f32 1.0, %v968
      %v970 = vrcp.pop %v963
      %v971 = vmul.f32 1.0, %v970
      %v972 = vrcp.pop %v964
      %v973 = vmul.f32 1.0, %v972
      %v974 = vrcp.pop %v965
      %v975 = vmul.f32 1.0, %v974
      %v976 = vrcp.pop %v966
      %v977 = vmul.f32 1.0, %v976
      %v978 = vrcp.pop %v967
      %v979 = vmul.f32 1.0, %v978
      %v980 = vmul.f32 %v859, %v969
      %v981 = vmul.f32 %v861, %v971
      %v982 = vmul.f32 %v936, %v973
      %v983 = vmul.f32 %v865, %v975
      %v984 = vmul.f32 %v867, %v977
      %v985 = vmul.f32 %v941, %v979
      %v986 = vld [vmem:[%s5] sm:$0xff]
      %v987 = vld [vmem:[%s5 + $0x8] sm:$0xff]
      %v988 = vld [vmem:[%s4] sm:$0xff]
      %v989 = vld [vmem:[%s4 + $0x8] sm:$0xff]
      %991 = vset.pattern.permute.xlu0 0
      %992 = vperm.xlu0 %991, %v988
      %v993 = vpop.permute.xlu0 %992
      %996 = vset.pattern.permute.xlu0 0
      %997 = vperm.xlu0 %996, %v989
      %v998 = vpop.permute.xlu0 %997
      %v1001 = vsel %vm785, %v986, 0
      %v1004 = vsel %vm785, %v987, 0
      %1006 = vmatprep.subr.mxu0 %v769
      %1007 = vmatpush1.msra.mxu0 %v768
      %1008 = vmatprep.subr.mxu0 0.0
      %1009 = vmatpush1.msra.mxu0 0.0
      %1010 = vmatprep.subr.mxu0 0.0
      %1011 = vmatpush1.msra.mxu0 0.0
      %1012 = vmatprep.subr.mxu0 0.0
      %1013 = vmatpush1.msra.mxu0 0.0
      %1014 = vmatprep.subr.mxu0 0.0
      %1015 = vmatpush1.msra.mxu0 0.0
      %1016 = vmatprep.subr.mxu0 0.0
      %1017 = vmatpush1.msra.mxu0 0.0
      %1018 = vmatprep.subr.mxu0 0.0
      %1019 = vmatpush1.msra.mxu0 0.0
      %1020 = vmatprep.subr.mxu0 0.0
      %1021 = vmatpush1.msra.mxu0 0.0
      %1022 = vmatprep.subr.mxu0 0.0
      %1023 = vmatpush1.msra.mxu0 0.0
      %1024 = vmatprep.subr.mxu0 0.0
      %1025 = vmatpush1.msra.mxu0 0.0
      %1026 = vmatprep.subr.mxu0 0.0
      %1027 = vmatpush1.msra.mxu0 0.0
      %1028 = vmatprep.subr.mxu0 0.0
      %1029 = vmatpush1.msra.mxu0 0.0
      %1030 = vmatprep.subr.mxu0 0.0
      %1031 = vmatpush1.msra.mxu0 0.0
      %1032 = vmatprep.subr.mxu0 0.0
      %1033 = vmatpush1.msra.mxu0 0.0
      %1034 = vmatprep.subr.mxu0 0.0
      %1035 = vmatpush1.msra.mxu0 0.0
      %1036 = vmatprep.subr.mxu0 0.0
      %1037 = vmatpush1.msra.mxu0 0.0
      %1038 = vmatprep.subr.mxu0 0.0
      %1039 = vmatpush1.msra.mxu0 0.0
      %1040 = vmatprep.subr.mxu0 0.0
      %1041 = vmatpush1.msra.mxu0 0.0
      %1042 = vmatprep.subr.mxu0 0.0
      %1043 = vmatpush1.msra.mxu0 0.0
      %1044 = vmatprep.subr.mxu0 0.0
      %1045 = vmatpush1.msra.mxu0 0.0
      %1046 = vmatprep.subr.mxu0 0.0
      %1047 = vmatpush1.msra.mxu0 0.0
      %1048 = vmatprep.subr.mxu0 0.0
      %1049 = vmatpush1.msra.mxu0 0.0
      %1050 = vmatprep.subr.mxu0 0.0
      %1051 = vmatpush1.msra.mxu0 0.0
      %1052 = vmatprep.subr.mxu0 0.0
      %1053 = vmatpush1.msra.mxu0 0.0
      %1054 = vmatprep.subr.mxu0 0.0
      %1055 = vmatpush1.msra.mxu0 0.0
      %1056 = vmatprep.subr.mxu0 0.0
      %1057 = vmatpush1.msra.mxu0 0.0
      %1058 = vmatprep.subr.mxu0 0.0
      %1059 = vmatpush1.msra.mxu0 0.0
      %1060 = vmatprep.subr.mxu0 0.0
      %1061 = vmatpush1.msra.mxu0 0.0
      %1062 = vmatprep.subr.mxu0 0.0
      %1063 = vmatpush1.msra.mxu0 0.0
      %1064 = vmatprep.subr.mxu0 0.0
      %1065 = vmatpush1.msra.mxu0 0.0
      %1066 = vmatprep.subr.mxu0 0.0
      %1067 = vmatpush1.msra.mxu0 0.0
      %1068 = vmatprep.subr.mxu0 0.0
      %1069 = vmatpush1.msra.mxu0 0.0
      %1070 = vmatprep.mubr.f32.mxu0 0.0
      %1071 = vmatmul.mubr.f32.gmra.mrb[0].mxu0 %v1001
      %v1072 = vpop.f32.mrb[0].mxu0
      %v1073 = vadd.f32 %v993, %v1072
      %v1074 = vpop.f32.mrb[0].mxu0
      %v1075 = vadd.f32 %v993, %v1074
      %1076 = vmatprep.mubr.f32.mxu0 0.0
      %1077 = vmatmul.mubr.f32.gmra.mrb[0].mxu0 %v1004
      %v1078 = vpop.f32.mrb[0].mxu0
      %v1079 = vadd.f32 %v998, %v1078
      %v1080 = vpop.f32.mrb[0].mxu0
      %v1081 = vadd.f32 %v998, %v1080
      %1082 = vdwg.mxu0
      %1083 = vmatprep.subr.mxu0 0.0
      %1084 = vmatpush1.msra.mxu0 %v770
      %1085 = vmatprep.subr.mxu0 0.0
      %1086 = vmatpush1.msra.mxu0 0.0
      %1087 = vmatprep.subr.mxu0 0.0
      %1088 = vmatpush1.msra.mxu0 0.0
      %1089 = vmatprep.subr.mxu0 0.0
      %1090 = vmatpush1.msra.mxu0 0.0
      %1091 = vmatprep.subr.mxu0 0.0
      %1092 = vmatpush1.msra.mxu0 0.0
      %1093 = vmatprep.subr.mxu0 0.0
      %1094 = vmatpush1.msra.mxu0 0.0
      %1095 = vmatprep.subr.mxu0 0.0
      %1096 = vmatpush1.msra.mxu0 0.0
      %1097 = vmatprep.subr.mxu0 0.0
      %1098 = vmatpush1.msra.mxu0 0.0
      %1099 = vmatprep.subr.mxu0 0.0
      %1100 = vmatpush1.msra.mxu0 0.0
      %1101 = vmatprep.subr.mxu0 0.0
      %1102 = vmatpush1.msra.mxu0 0.0
      %1103 = vmatprep.subr.mxu0 0.0
      %1104 = vmatpush1.msra.mxu0 0.0
      %1105 = vmatprep.subr.mxu0 0.0
      %1106 = vmatpush1.msra.mxu0 0.0
      %1107 = vmatprep.subr.mxu0 0.0
      %1108 = vmatpush1.msra.mxu0 0.0
      %1109 = vmatprep.subr.mxu0 0.0
      %1110 = vmatpush1.msra.mxu0 0.0
      %1111 = vmatprep.subr.mxu0 0.0
      %1112 = vmatpush1.msra.mxu0 0.0
      %1113 = vmatprep.subr.mxu0 0.0
      %1114 = vmatpush1.msra.mxu0 0.0
      %1115 = vmatprep.subr.mxu0 0.0
      %1116 = vmatpush1.msra.mxu0 0.0
      %1117 = vmatprep.subr.mxu0 0.0
      %1118 = vmatpush1.msra.mxu0 0.0
      %1119 = vmatprep.subr.mxu0 0.0
      %1120 = vmatpush1.msra.mxu0 0.0
      %1121 = vmatprep.subr.mxu0 0.0
      %1122 = vmatpush1.msra.mxu0 0.0
      %1123 = vmatprep.subr.mxu0 0.0
      %1124 = vmatpush1.msra.mxu0 0.0
      %1125 = vmatprep.subr.mxu0 0.0
      %1126 = vmatpush1.msra.mxu0 0.0
      %1127 = vmatprep.subr.mxu0 0.0
      %1128 = vmatpush1.msra.mxu0 0.0
      %1129 = vmatprep.subr.mxu0 0.0
      %1130 = vmatpush1.msra.mxu0 0.0
      %1131 = vmatprep.subr.mxu0 0.0
      %1132 = vmatpush1.msra.mxu0 0.0
      %1133 = vmatprep.subr.mxu0 0.0
      %1134 = vmatpush1.msra.mxu0 0.0
      %1135 = vmatprep.subr.mxu0 0.0
      %1136 = vmatpush1.msra.mxu0 0.0
      %1137 = vmatprep.subr.mxu0 0.0
      %1138 = vmatpush1.msra.mxu0 0.0
      %1139 = vmatprep.subr.mxu0 0.0
      %1140 = vmatpush1.msra.mxu0 0.0
      %1141 = vmatprep.subr.mxu0 0.0
      %1142 = vmatpush1.msra.mxu0 0.0
      %1143 = vmatprep.subr.mxu0 0.0
      %1144 = vmatpush1.msra.mxu0 0.0
      %1145 = vmatprep.subr.mxu0 0.0
      %1146 = vmatpush1.msra.mxu0 0.0
      %1147 = vmatprep.mubr.f32.mxu0 0.0
      %1148 = vmatmul.mubr.f32.gmra.mrb[0].mxu0 %v1001
      %v1149 = vpop.f32.mrb[0].mxu0
      %v1150 = vadd.f32 %v993, %v1149
      %v1151 = vpop.f32.mrb[0].mxu0
      %1152 = vmatprep.mubr.f32.mxu0 0.0
      %1153 = vmatmul.mubr.f32.gmra.mrb[0].mxu0 %v1004
      %v1154 = vpop.f32.mrb[0].mxu0
      %v1155 = vadd.f32 %v998, %v1154
      %v1156 = vpop.f32.mrb[0].mxu0
      %1157 = vdwg.mxu0
      %v1158 = vxor.u32 %v1073, 2147483648
      %v1159 = vxor.u32 %v1075, 2147483648
      %v1160 = vxor.u32 %v1150, 2147483648
      %v1161 = vxor.u32 %v1079, 2147483648
      %v1162 = vxor.u32 %v1081, 2147483648
      %v1163 = vxor.u32 %v1155, 2147483648
      %v1164 = vmul.f32 %v1158, 1.442695
      %v1165 = vpow.pop %v1164
      %v1166 = vmul.f32 %v1159, 1.442695
      %v1167 = vpow.pop %v1166
      %v1168 = vmul.f32 %v1160, 1.442695
      %v1169 = vpow.pop %v1168
      %v1170 = vmul.f32 %v1161, 1.442695
      %v1171 = vpow.pop %v1170
      %v1172 = vmul.f32 %v1162, 1.442695
      %v1173 = vpow.pop %v1172
      %v1174 = vmul.f32 %v1163, 1.442695
      %v1175 = vpow.pop %v1174
      %v1176 = vadd.f32 %v1165, 1.0
      %v1177 = vadd.f32 %v1167, 1.0
      %v1178 = vadd.f32 %v1169, 1.0
      %v1179 = vadd.f32 %v1171, 1.0
      %v1180 = vadd.f32 %v1173, 1.0
      %v1181 = vadd.f32 %v1175, 1.0
      %v1182 = vrcp.pop %v1176
      %v1183 = vmul.f32 1.0, %v1182
      %v1184 = vrcp.pop %v1177
      %v1185 = vmul.f32 1.0, %v1184
      %v1186 = vrcp.pop %v1178
      %v1187 = vmul.f32 1.0, %v1186
      %v1188 = vrcp.pop %v1179
      %v1189 = vmul.f32 1.0, %v1188
      %v1190 = vrcp.pop %v1180
      %v1191 = vmul.f32 1.0, %v1190
      %v1192 = vrcp.pop %v1181
      %v1193 = vmul.f32 1.0, %v1192
      %v1194 = vmul.f32 %v1073, %v1183
      %v1195 = vmul.f32 %v1075, %v1185
      %v1196 = vmul.f32 %v1150, %v1187
      %v1197 = vmul.f32 %v1079, %v1189
      %v1198 = vmul.f32 %v1081, %v1191
      %v1199 = vmul.f32 %v1155, %v1193
      %v1200 = vld [vmem:[%s6] sm:$0xff]
      %v1201 = vld [vmem:[%s6 + $0x8] sm:$0xff]
      %v1202 = vld [vmem:[%s6 + $0x10] sm:$0xff]
      %v1203 = vld [vmem:[%s6 + $0x18] sm:$0xff]
      %v1204 = vld [vmem:[%s7] sm:$0xff]
      %v1205 = vld [vmem:[%s7 + $0x8] sm:$0xff]
      %v1206 = vld [vmem:[%s7 + $0x10] sm:$0xff]
      %v1207 = vld [vmem:[%s7 + $0x18] sm:$0xff]
      %vm1208 = vcmask 130048
      %v1210 = vsel %vm1208, %v1204, 0
      %v1213 = vsel %vm1208, %v1205, 0
      %v1216 = vsel %vm1208, %v1206, 0
      %v1219 = vsel %vm1208, %v1207, 0
      %1221 = vmatprep.subr.mxu0 %v981
      %1222 = vmatpush1.msra.mxu0 %v980
      %1223 = vmatprep.subr.mxu0 %v984
      %1224 = vmatpush1.msra.mxu0 %v983
      %1225 = vmatprep.subr.mxu0 0.0
      %1226 = vmatpush1.msra.mxu0 0.0
      %1227 = vmatprep.subr.mxu0 0.0
      %1228 = vmatpush1.msra.mxu0 0.0
      %1229 = vmatprep.subr.mxu0 0.0
      %1230 = vmatpush1.msra.mxu0 0.0
      %1231 = vmatprep.subr.mxu0 0.0
      %1232 = vmatpush1.msra.mxu0 0.0
      %1233 = vmatprep.subr.mxu0 0.0
      %1234 = vmatpush1.msra.mxu0 0.0
      %1235 = vmatprep.subr.mxu0 0.0
      %1236 = vmatpush1.msra.mxu0 0.0
      %1237 = vmatprep.subr.mxu0 0.0
      %1238 = vmatpush1.msra.mxu0 0.0
      %1239 = vmatprep.subr.mxu0 0.0
      %1240 = vmatpush1.msra.mxu0 0.0
      %1241 = vmatprep.subr.mxu0 0.0
      %1242 = vmatpush1.msra.mxu0 0.0
      %1243 = vmatprep.subr.mxu0 0.0
      %1244 = vmatpush1.msra.mxu0 0.0
      %1245 = vmatprep.subr.mxu0 0.0
      %1246 = vmatpush1.msra.mxu0 0.0
      %1247 = vmatprep.subr.mxu0 0.0
      %1248 = vmatpush1.msra.mxu0 0.0
      %1249 = vmatprep.subr.mxu0 0.0
      %1250 = vmatpush1.msra.mxu0 0.0
      %1251 = vmatprep.subr.mxu0 0.0
      %1252 = vmatpush1.msra.mxu0 0.0
      %1253 = vmatprep.subr.mxu0 0.0
      %1254 = vmatpush1.msra.mxu0 0.0
      %1255 = vmatprep.subr.mxu0 0.0
      %1256 = vmatpush1.msra.mxu0 0.0
      %1257 = vmatprep.subr.mxu0 0.0
      %1258 = vmatpush1.msra.mxu0 0.0
      %1259 = vmatprep.subr.mxu0 0.0
      %1260 = vmatpush1.msra.mxu0 0.0
      %1261 = vmatprep.subr.mxu0 0.0
      %1262 = vmatpush1.msra.mxu0 0.0
      %1263 = vmatprep.subr.mxu0 0.0
      %1264 = vmatpush1.msra.mxu0 0.0
      %1265 = vmatprep.subr.mxu0 0.0
      %1266 = vmatpush1.msra.mxu0 0.0
      %1267 = vmatprep.subr.mxu0 0.0
      %1268 = vmatpush1.msra.mxu0 0.0
      %1269 = vmatprep.subr.mxu0 0.0
      %1270 = vmatpush1.msra.mxu0 0.0
      %1271 = vmatprep.subr.mxu0 0.0
      %1272 = vmatpush1.msra.mxu0 0.0
      %1273 = vmatprep.subr.mxu0 0.0
      %1274 = vmatpush1.msra.mxu0 0.0
      %1275 = vmatprep.subr.mxu0 0.0
      %1276 = vmatpush1.msra.mxu0 0.0
      %1277 = vmatprep.subr.mxu0 0.0
      %1278 = vmatpush1.msra.mxu0 0.0
      %1279 = vmatprep.subr.mxu0 0.0
      %1280 = vmatpush1.msra.mxu0 0.0
      %1281 = vmatprep.subr.mxu0 0.0
      %1282 = vmatpush1.msra.mxu0 0.0
      %1283 = vmatprep.subr.mxu0 0.0
      %1284 = vmatpush1.msra.mxu0 0.0
      %1285 = vmatprep.mubr.f32.mxu0 0.0
      %1286 = vmatmul.mubr.f32.gmra.mrb[0].mxu0 %v1210
      %v1287 = vpop.f32.mrb[0].mxu0
      %v1288 = vadd.f32 0.0, %v1287
      %v1289 = vpop.f32.mrb[0].mxu0
      %v1290 = vadd.f32 0.0, %v1289
      %1291 = vmatprep.mubr.f32.mxu0 0.0
      %1292 = vmatmul.mubr.f32.gmra.mrb[0].mxu0 %v1213
      %v1293 = vpop.f32.mrb[0].mxu0
      %v1294 = vadd.f32 0.0, %v1293
      %v1295 = vpop.f32.mrb[0].mxu0
      %v1296 = vadd.f32 0.0, %v1295
      %1297 = vmatprep.mubr.f32.mxu0 0.0
      %1298 = vmatmul.mubr.f32.gmra.mrb[0].mxu0 %v1216
      %v1299 = vpop.f32.mrb[0].mxu0
      %v1300 = vadd.f32 0.0, %v1299
      %v1301 = vpop.f32.mrb[0].mxu0
      %v1302 = vadd.f32 0.0, %v1301
      %1303 = vmatprep.mubr.f32.mxu0 0.0
      %1304 = vmatmul.mubr.f32.gmra.mrb[0].mxu0 %v1219
      %v1305 = vpop.f32.mrb[0].mxu0
      %v1306 = vadd.f32 0.0, %v1305
      %v1307 = vpop.f32.mrb[0].mxu0
      %v1308 = vadd.f32 0.0, %v1307
      %1309 = vdwg.mxu0
      %1310 = vmatprep.subr.mxu0 0.0
      %1311 = vmatpush1.msra.mxu0 %v982
      %1312 = vmatprep.subr.mxu0 0.0
      %1313 = vmatpush1.msra.mxu0 %v985
      %1314 = vmatprep.subr.mxu0 0.0
      %1315 = vmatpush1.msra.mxu0 0.0
      %1316 = vmatprep.subr.mxu0 0.0
      %1317 = vmatpush1.msra.mxu0 0.0
      %1318 = vmatprep.subr.mxu0 0.0
      %1319 = vmatpush1.msra.mxu0 0.0
      %1320 = vmatprep.subr.mxu0 0.0
      %1321 = vmatpush1.msra.mxu0 0.0
      %1322 = vmatprep.subr.mxu0 0.0
      %1323 = vmatpush1.msra.mxu0 0.0
      %1324 = vmatprep.subr.mxu0 0.0
      %1325 = vmatpush1.msra.mxu0 0.0
      %1326 = vmatprep.subr.mxu0 0.0
      %1327 = vmatpush1.msra.mxu0 0.0
      %1328 = vmatprep.subr.mxu0 0.0
      %1329 = vmatpush1.msra.mxu0 0.0
      %1330 = vmatprep.subr.mxu0 0.0
      %1331 = vmatpush1.msra.mxu0 0.0
      %1332 = vmatprep.subr.mxu0 0.0
      %1333 = vmatpush1.msra.mxu0 0.0
      %1334 = vmatprep.subr.mxu0 0.0
      %1335 = vmatpush1.msra.mxu0 0.0
      %1336 = vmatprep.subr.mxu0 0.0
      %1337 = vmatpush1.msra.mxu0 0.0
      %1338 = vmatprep.subr.mxu0 0.0
      %1339 = vmatpush1.msra.mxu0 0.0
      %1340 = vmatprep.subr.mxu0 0.0
      %1341 = vmatpush1.msra.mxu0 0.0
      %1342 = vmatprep.subr.mxu0 0.0
      %1343 = vmatpush1.msra.mxu0 0.0
      %1344 = vmatprep.subr.mxu0 0.0
      %1345 = vmatpush1.msra.mxu0 0.0
      %1346 = vmatprep.subr.mxu0 0.0
      %1347 = vmatpush1.msra.mxu0 0.0
      %1348 = vmatprep.subr.mxu0 0.0
      %1349 = vmatpush1.msra.mxu0 0.0
      %1350 = vmatprep.subr.mxu0 0.0
      %1351 = vmatpush1.msra.mxu0 0.0
      %1352 = vmatprep.subr.mxu0 0.0
      %1353 = vmatpush1.msra.mxu0 0.0
      %1354 = vmatprep.subr.mxu0 0.0
      %1355 = vmatpush1.msra.mxu0 0.0
      %1356 = vmatprep.subr.mxu0 0.0
      %1357 = vmatpush1.msra.mxu0 0.0
      %1358 = vmatprep.subr.mxu0 0.0
      %1359 = vmatpush1.msra.mxu0 0.0
      %1360 = vmatprep.subr.mxu0 0.0
      %1361 = vmatpush1.msra.mxu0 0.0
      %1362 = vmatprep.subr.mxu0 0.0
      %1363 = vmatpush1.msra.mxu0 0.0
      %1364 = vmatprep.subr.mxu0 0.0
      %1365 = vmatpush1.msra.mxu0 0.0
      %1366 = vmatprep.subr.mxu0 0.0
      %1367 = vmatpush1.msra.mxu0 0.0
      %1368 = vmatprep.subr.mxu0 0.0
      %1369 = vmatpush1.msra.mxu0 0.0
      %1370 = vmatprep.subr.mxu0 0.0
      %1371 = vmatpush1.msra.mxu0 0.0
      %1372 = vmatprep.subr.mxu0 0.0
      %1373 = vmatpush1.msra.mxu0 0.0
      %1374 = vmatprep.mubr.f32.mxu0 0.0
      %1375 = vmatmul.mubr.f32.gmra.mrb[0].mxu0 %v1210
      %v1376 = vpop.f32.mrb[0].mxu0
      %v1377 = vadd.f32 0.0, %v1376
      %v1378 = vpop.f32.mrb[0].mxu0
      %1379 = vmatprep.mubr.f32.mxu0 0.0
      %1380 = vmatmul.mubr.f32.gmra.mrb[0].mxu0 %v1213
      %v1381 = vpop.f32.mrb[0].mxu0
      %v1382 = vadd.f32 0.0, %v1381
      %v1383 = vpop.f32.mrb[0].mxu0
      %1384 = vmatprep.mubr.f32.mxu0 0.0
      %1385 = vmatmul.mubr.f32.gmra.mrb[0].mxu0 %v1216
      %v1386 = vpop.f32.mrb[0].mxu0
      %v1387 = vadd.f32 0.0, %v1386
      %v1388 = vpop.f32.mrb[0].mxu0
      %1389 = vmatprep.mubr.f32.mxu0 0.0
      %1390 = vmatmul.mubr.f32.gmra.mrb[0].mxu0 %v1219
      %v1391 = vpop.f32.mrb[0].mxu0
      %v1392 = vadd.f32 0.0, %v1391
      %v1393 = vpop.f32.mrb[0].mxu0
      %1394 = vdwg.mxu0
      %1396 = vset.pattern.permute.xlu0 0
      %1397 = vperm.xlu0 %1396, %v1200
      %v1398 = vpop.permute.xlu0 %1397
      %1401 = vset.pattern.permute.xlu0 0
      %1402 = vperm.xlu0 %1401, %v1201
      %v1403 = vpop.permute.xlu0 %1402
      %1406 = vset.pattern.permute.xlu0 0
      %1407 = vperm.xlu0 %1406, %v1202
      %v1408 = vpop.permute.xlu0 %1407
      %1411 = vset.pattern.permute.xlu0 0
      %1412 = vperm.xlu0 %1411, %v1203
      %v1413 = vpop.permute.xlu0 %1412
      %v1415 = vadd.f32 %v1398, %v1288
      %v1416 = vadd.f32 %v1398, %v1290
      %v1417 = vadd.f32 %v1398, %v1377
      %v1418 = vadd.f32 %v1403, %v1294
      %v1419 = vadd.f32 %v1403, %v1296
      %v1420 = vadd.f32 %v1403, %v1382
      %v1421 = vadd.f32 %v1408, %v1300
      %v1422 = vadd.f32 %v1408, %v1302
      %v1423 = vadd.f32 %v1408, %v1387
      %v1424 = vadd.f32 %v1413, %v1306
      %v1425 = vadd.f32 %v1413, %v1308
      %v1426 = vadd.f32 %v1413, %v1392
      %v1427 = vld [vmem:[%s8] sm:$0xff]
      %v1428 = vld [vmem:[%s8 + $0x8] sm:$0xff]
      %v1429 = vld [vmem:[%s8 + $0x10] sm:$0xff]
      %v1430 = vld [vmem:[%s8 + $0x18] sm:$0xff]
      %v1432 = vsel %vm1208, %v1427, 0
      %v1435 = vsel %vm1208, %v1428, 0
      %v1438 = vsel %vm1208, %v1429, 0
      %v1441 = vsel %vm1208, %v1430, 0
      %1443 = vmatprep.subr.mxu0 %v1195
      %1444 = vmatpush1.msra.mxu0 %v1194
      %1445 = vmatprep.subr.mxu0 %v1198
      %1446 = vmatpush1.msra.mxu0 %v1197
      %1447 = vmatprep.subr.mxu0 0.0
      %1448 = vmatpush1.msra.mxu0 0.0
      %1449 = vmatprep.subr.mxu0 0.0
      %1450 = vmatpush1.msra.mxu0 0.0
      %1451 = vmatprep.subr.mxu0 0.0
      %1452 = vmatpush1.msra.mxu0 0.0
      %1453 = vmatprep.subr.mxu0 0.0
      %1454 = vmatpush1.msra.mxu0 0.0
      %1455 = vmatprep.subr.mxu0 0.0
      %1456 = vmatpush1.msra.mxu0 0.0
      %1457 = vmatprep.subr.mxu0 0.0
      %1458 = vmatpush1.msra.mxu0 0.0
      %1459 = vmatprep.subr.mxu0 0.0
      %1460 = vmatpush1.msra.mxu0 0.0
      %1461 = vmatprep.subr.mxu0 0.0
      %1462 = vmatpush1.msra.mxu0 0.0
      %1463 = vmatprep.subr.mxu0 0.0
      %1464 = vmatpush1.msra.mxu0 0.0
      %1465 = vmatprep.subr.mxu0 0.0
      %1466 = vmatpush1.msra.mxu0 0.0
      %1467 = vmatprep.subr.mxu0 0.0
      %1468 = vmatpush1.msra.mxu0 0.0
      %1469 = vmatprep.subr.mxu0 0.0
      %1470 = vmatpush1.msra.mxu0 0.0
      %1471 = vmatprep.subr.mxu0 0.0
      %1472 = vmatpush1.msra.mxu0 0.0
      %1473 = vmatprep.subr.mxu0 0.0
      %1474 = vmatpush1.msra.mxu0 0.0
      %1475 = vmatprep.subr.mxu0 0.0
      %1476 = vmatpush1.msra.mxu0 0.0
      %1477 = vmatprep.subr.mxu0 0.0
      %1478 = vmatpush1.msra.mxu0 0.0
      %1479 = vmatprep.subr.mxu0 0.0
      %1480 = vmatpush1.msra.mxu0 0.0
      %1481 = vmatprep.subr.mxu0 0.0
      %1482 = vmatpush1.msra.mxu0 0.0
      %1483 = vmatprep.subr.mxu0 0.0
      %1484 = vmatpush1.msra.mxu0 0.0
      %1485 = vmatprep.subr.mxu0 0.0
      %1486 = vmatpush1.msra.mxu0 0.0
      %1487 = vmatprep.subr.mxu0 0.0
      %1488 = vmatpush1.msra.mxu0 0.0
      %1489 = vmatprep.subr.mxu0 0.0
      %1490 = vmatpush1.msra.mxu0 0.0
      %1491 = vmatprep.subr.mxu0 0.0
      %1492 = vmatpush1.msra.mxu0 0.0
      %1493 = vmatprep.subr.mxu0 0.0
      %1494 = vmatpush1.msra.mxu0 0.0
      %1495 = vmatprep.subr.mxu0 0.0
      %1496 = vmatpush1.msra.mxu0 0.0
      %1497 = vmatprep.subr.mxu0 0.0
      %1498 = vmatpush1.msra.mxu0 0.0
      %1499 = vmatprep.subr.mxu0 0.0
      %1500 = vmatpush1.msra.mxu0 0.0
      %1501 = vmatprep.subr.mxu0 0.0
      %1502 = vmatpush1.msra.mxu0 0.0
      %1503 = vmatprep.subr.mxu0 0.0
      %1504 = vmatpush1.msra.mxu0 0.0
      %1505 = vmatprep.subr.mxu0 0.0
      %1506 = vmatpush1.msra.mxu0 0.0
      %1507 = vmatprep.mubr.f32.mxu0 0.0
      %1508 = vmatmul.mubr.f32.gmra.mrb[0].mxu0 %v1432
      %v1509 = vpop.f32.mrb[0].mxu0
      %v1510 = vadd.f32 0.0, %v1509
      %v1511 = vpop.f32.mrb[0].mxu0
      %v1512 = vadd.f32 0.0, %v1511
      %1513 = vmatprep.mubr.f32.mxu0 0.0
      %1514 = vmatmul.mubr.f32.gmra.mrb[0].mxu0 %v1435
      %v1515 = vpop.f32.mrb[0].mxu0
      %v1516 = vadd.f32 0.0, %v1515
      %v1517 = vpop.f32.mrb[0].mxu0
      %v1518 = vadd.f32 0.0, %v1517
      %1519 = vmatprep.mubr.f32.mxu0 0.0
      %1520 = vmatmul.mubr.f32.gmra.mrb[0].mxu0 %v1438
      %v1521 = vpop.f32.mrb[0].mxu0
      %v1522 = vadd.f32 0.0, %v1521
      %v1523 = vpop.f32.mrb[0].mxu0
      %v1524 = vadd.f32 0.0, %v1523
      %1525 = vmatprep.mubr.f32.mxu0 0.0
      %1526 = vmatmul.mubr.f32.gmra.mrb[0].mxu0 %v1441
      %v1527 = vpop.f32.mrb[0].mxu0
      %v1528 = vadd.f32 0.0, %v1527
      %v1529 = vpop.f32.mrb[0].mxu0
      %v1530 = vadd.f32 0.0, %v1529
      %1531 = vdwg.mxu0
      %1532 = vmatprep.subr.mxu0 0.0
      %1533 = vmatpush1.msra.mxu0 %v1196
      %1534 = vmatprep.subr.mxu0 0.0
      %1535 = vmatpush1.msra.mxu0 %v1199
      %1536 = vmatprep.subr.mxu0 0.0
      %1537 = vmatpush1.msra.mxu0 0.0
      %1538 = vmatprep.subr.mxu0 0.0
      %1539 = vmatpush1.msra.mxu0 0.0
      %1540 = vmatprep.subr.mxu0 0.0
      %1541 = vmatpush1.msra.mxu0 0.0
      %1542 = vmatprep.subr.mxu0 0.0
      %1543 = vmatpush1.msra.mxu0 0.0
      %1544 = vmatprep.subr.mxu0 0.0
      %1545 = vmatpush1.msra.mxu0 0.0
      %1546 = vmatprep.subr.mxu0 0.0
      %1547 = vmatpush1.msra.mxu0 0.0
      %1548 = vmatprep.subr.mxu0 0.0
      %1549 = vmatpush1.msra.mxu0 0.0
      %1550 = vmatprep.subr.mxu0 0.0
      %1551 = vmatpush1.msra.mxu0 0.0
      %1552 = vmatprep.subr.mxu0 0.0
      %1553 = vmatpush1.msra.mxu0 0.0
      %1554 = vmatprep.subr.mxu0 0.0
      %1555 = vmatpush1.msra.mxu0 0.0
      %1556 = vmatprep.subr.mxu0 0.0
      %1557 = vmatpush1.msra.mxu0 0.0
      %1558 = vmatprep.subr.mxu0 0.0
      %1559 = vmatpush1.msra.mxu0 0.0
      %1560 = vmatprep.subr.mxu0 0.0
      %1561 = vmatpush1.msra.mxu0 0.0
      %1562 = vmatprep.subr.mxu0 0.0
      %1563 = vmatpush1.msra.mxu0 0.0
      %1564 = vmatprep.subr.mxu0 0.0
      %1565 = vmatpush1.msra.mxu0 0.0
      %1566 = vmatprep.subr.mxu0 0.0
      %1567 = vmatpush1.msra.mxu0 0.0
      %1568 = vmatprep.subr.mxu0 0.0
      %1569 = vmatpush1.msra.mxu0 0.0
      %1570 = vmatprep.subr.mxu0 0.0
      %1571 = vmatpush1.msra.mxu0 0.0
      %1572 = vmatprep.subr.mxu0 0.0
      %1573 = vmatpush1.msra.mxu0 0.0
      %1574 = vmatprep.subr.mxu0 0.0
      %1575 = vmatpush1.msra.mxu0 0.0
      %1576 = vmatprep.subr.mxu0 0.0
      %1577 = vmatpush1.msra.mxu0 0.0
      %1578 = vmatprep.subr.mxu0 0.0
      %1579 = vmatpush1.msra.mxu0 0.0
      %1580 = vmatprep.subr.mxu0 0.0
      %1581 = vmatpush1.msra.mxu0 0.0
      %1582 = vmatprep.subr.mxu0 0.0
      %1583 = vmatpush1.msra.mxu0 0.0
      %1584 = vmatprep.subr.mxu0 0.0
      %1585 = vmatpush1.msra.mxu0 0.0
      %1586 = vmatprep.subr.mxu0 0.0
      %1587 = vmatpush1.msra.mxu0 0.0
      %1588 = vmatprep.subr.mxu0 0.0
      %1589 = vmatpush1.msra.mxu0 0.0
      %1590 = vmatprep.subr.mxu0 0.0
      %1591 = vmatpush1.msra.mxu0 0.0
      %1592 = vmatprep.subr.mxu0 0.0
      %1593 = vmatpush1.msra.mxu0 0.0
      %1594 = vmatprep.subr.mxu0 0.0
      %1595 = vmatpush1.msra.mxu0 0.0
      %1596 = vmatprep.mubr.f32.mxu0 0.0
      %1597 = vmatmul.mubr.f32.gmra.mrb[0].mxu0 %v1432
      %v1598 = vpop.f32.mrb[0].mxu0
      %v1599 = vadd.f32 0.0, %v1598
      %v1600 = vpop.f32.mrb[0].mxu0
      %1601 = vmatprep.mubr.f32.mxu0 0.0
      %1602 = vmatmul.mubr.f32.gmra.mrb[0].mxu0 %v1435
      %v1603 = vpop.f32.mrb[0].mxu0
      %v1604 = vadd.f32 0.0, %v1603
      %v1605 = vpop.f32.mrb[0].mxu0
      %1606 = vmatprep.mubr.f32.mxu0 0.0
      %1607 = vmatmul.mubr.f32.gmra.mrb[0].mxu0 %v1438
      %v1608 = vpop.f32.mrb[0].mxu0
      %v1609 = vadd.f32 0.0, %v1608
      %v1610 = vpop.f32.mrb[0].mxu0
      %1611 = vmatprep.mubr.f32.mxu0 0.0
      %1612 = vmatmul.mubr.f32.gmra.mrb[0].mxu0 %v1441
      %v1613 = vpop.f32.mrb[0].mxu0
      %v1614 = vadd.f32 0.0, %v1613
      %v1615 = vpop.f32.mrb[0].mxu0
      %1616 = vdwg.mxu0
      %v1617 = vadd.f32 %v1415, %v1510
      %v1618 = vadd.f32 %v1416, %v1512
      %v1619 = vadd.f32 %v1417, %v1599
      %v1620 = vadd.f32 %v1418, %v1516
      %v1621 = vadd.f32 %v1419, %v1518
      %v1622 = vadd.f32 %v1420, %v1604
      %v1623 = vadd.f32 %v1421, %v1522
      %v1624 = vadd.f32 %v1422, %v1524
      %v1625 = vadd.f32 %v1423, %v1609
      %v1626 = vadd.f32 %v1424, %v1528
      %v1627 = vadd.f32 %v1425, %v1530
      %v1628 = vadd.f32 %v1426, %v1614
      %v1629 = vld [vmem:[%s11] sm:$0xff]
      %v1630 = vld [vmem:[%s10] sm:$0xff]
      %1632 = vset.pattern.permute.xlu0 0
      %1633 = vperm.xlu0 %1632, %v1630
      %v1634 = vpop.permute.xlu0 %1633
      %v1637 = vsel %vm1208, %v1629, 0
      %1639 = vmatprep.subr.mxu0 %v1195
      %1640 = vmatpush1.msra.mxu0 %v1194
      %1641 = vmatprep.subr.mxu0 %v1198
      %1642 = vmatpush1.msra.mxu0 %v1197
      %1643 = vmatprep.subr.mxu0 0.0
      %1644 = vmatpush1.msra.mxu0 0.0
      %1645 = vmatprep.subr.mxu0 0.0
      %1646 = vmatpush1.msra.mxu0 0.0
      %1647 = vmatprep.subr.mxu0 0.0
      %1648 = vmatpush1.msra.mxu0 0.0
      %1649 = vmatprep.subr.mxu0 0.0
      %1650 = vmatpush1.msra.mxu0 0.0
      %1651 = vmatprep.subr.mxu0 0.0
      %1652 = vmatpush1.msra.mxu0 0.0
      %1653 = vmatprep.subr.mxu0 0.0
      %1654 = vmatpush1.msra.mxu0 0.0
      %1655 = vmatprep.subr.mxu0 0.0
      %1656 = vmatpush1.msra.mxu0 0.0
      %1657 = vmatprep.subr.mxu0 0.0
      %1658 = vmatpush1.msra.mxu0 0.0
      %1659 = vmatprep.subr.mxu0 0.0
      %1660 = vmatpush1.msra.mxu0 0.0
      %1661 = vmatprep.subr.mxu0 0.0
      %1662 = vmatpush1.msra.mxu0 0.0
      %1663 = vmatprep.subr.mxu0 0.0
      %1664 = vmatpush1.msra.mxu0 0.0
      %1665 = vmatprep.subr.mxu0 0.0
      %1666 = vmatpush1.msra.mxu0 0.0
      %1667 = vmatprep.subr.mxu0 0.0
      %1668 = vmatpush1.msra.mxu0 0.0
      %1669 = vmatprep.subr.mxu0 0.0
      %1670 = vmatpush1.msra.mxu0 0.0
      %1671 = vmatprep.subr.mxu0 0.0
      %1672 = vmatpush1.msra.mxu0 0.0
      %1673 = vmatprep.subr.mxu0 0.0
      %1674 = vmatpush1.msra.mxu0 0.0
      %1675 = vmatprep.subr.mxu0 0.0
      %1676 = vmatpush1.msra.mxu0 0.0
      %1677 = vmatprep.subr.mxu0 0.0
      %1678 = vmatpush1.msra.mxu0 0.0
      %1679 = vmatprep.subr.mxu0 0.0
      %1680 = vmatpush1.msra.mxu0 0.0
      %1681 = vmatprep.subr.mxu0 0.0
      %1682 = vmatpush1.msra.mxu0 0.0
      %1683 = vmatprep.subr.mxu0 0.0
      %1684 = vmatpush1.msra.mxu0 0.0
      %1685 = vmatprep.subr.mxu0 0.0
      %1686 = vmatpush1.msra.mxu0 0.0
      %1687 = vmatprep.subr.mxu0 0.0
      %1688 = vmatpush1.msra.mxu0 0.0
      %1689 = vmatprep.subr.mxu0 0.0
      %1690 = vmatpush1.msra.mxu0 0.0
      %1691 = vmatprep.subr.mxu0 0.0
      %1692 = vmatpush1.msra.mxu0 0.0
      %1693 = vmatprep.subr.mxu0 0.0
      %1694 = vmatpush1.msra.mxu0 0.0
      %1695 = vmatprep.subr.mxu0 0.0
      %1696 = vmatpush1.msra.mxu0 0.0
      %1697 = vmatprep.subr.mxu0 0.0
      %1698 = vmatpush1.msra.mxu0 0.0
      %1699 = vmatprep.subr.mxu0 0.0
      %1700 = vmatpush1.msra.mxu0 0.0
      %1701 = vmatprep.subr.mxu0 0.0
      %1702 = vmatpush1.msra.mxu0 0.0
      %1703 = vmatprep.mubr.f32.mxu0 0.0
      %1704 = vmatmul.mubr.f32.gmra.mrb[0].mxu0 %v1637
      %v1705 = vpop.f32.mrb[0].mxu0
      %v1706 = vadd.f32 %v1634, %v1705
      %v1707 = vpop.f32.mrb[0].mxu0
      %v1708 = vadd.f32 %v1634, %v1707
      %1709 = vdwg.mxu0
      %1710 = vmatprep.subr.mxu0 0.0
      %1711 = vmatpush1.msra.mxu0 %v1196
      %1712 = vmatprep.subr.mxu0 0.0
      %1713 = vmatpush1.msra.mxu0 %v1199
      %1714 = vmatprep.subr.mxu0 0.0
      %1715 = vmatpush1.msra.mxu0 0.0
      %1716 = vmatprep.subr.mxu0 0.0
      %1717 = vmatpush1.msra.mxu0 0.0
      %1718 = vmatprep.subr.mxu0 0.0
      %1719 = vmatpush1.msra.mxu0 0.0
      %1720 = vmatprep.subr.mxu0 0.0
      %1721 = vmatpush1.msra.mxu0 0.0
      %1722 = vmatprep.subr.mxu0 0.0
      %1723 = vmatpush1.msra.mxu0 0.0
      %1724 = vmatprep.subr.mxu0 0.0
      %1725 = vmatpush1.msra.mxu0 0.0
      %1726 = vmatprep.subr.mxu0 0.0
      %1727 = vmatpush1.msra.mxu0 0.0
      %1728 = vmatprep.subr.mxu0 0.0
      %1729 = vmatpush1.msra.mxu0 0.0
      %1730 = vmatprep.subr.mxu0 0.0
      %1731 = vmatpush1.msra.mxu0 0.0
      %1732 = vmatprep.subr.mxu0 0.0
      %1733 = vmatpush1.msra.mxu0 0.0
      %1734 = vmatprep.subr.mxu0 0.0
      %1735 = vmatpush1.msra.mxu0 0.0
      %1736 = vmatprep.subr.mxu0 0.0
      %1737 = vmatpush1.msra.mxu0 0.0
      %1738 = vmatprep.subr.mxu0 0.0
      %1739 = vmatpush1.msra.mxu0 0.0
      %1740 = vmatprep.subr.mxu0 0.0
      %1741 = vmatpush1.msra.mxu0 0.0
      %1742 = vmatprep.subr.mxu0 0.0
      %1743 = vmatpush1.msra.mxu0 0.0
      %1744 = vmatprep.subr.mxu0 0.0
      %1745 = vmatpush1.msra.mxu0 0.0
      %1746 = vmatprep.subr.mxu0 0.0
      %1747 = vmatpush1.msra.mxu0 0.0
      %1748 = vmatprep.subr.mxu0 0.0
      %1749 = vmatpush1.msra.mxu0 0.0
      %1750 = vmatprep.subr.mxu0 0.0
      %1751 = vmatpush1.msra.mxu0 0.0
      %1752 = vmatprep.subr.mxu0 0.0
      %1753 = vmatpush1.msra.mxu0 0.0
      %1754 = vmatprep.subr.mxu0 0.0
      %1755 = vmatpush1.msra.mxu0 0.0
      %1756 = vmatprep.subr.mxu0 0.0
      %1757 = vmatpush1.msra.mxu0 0.0
      %1758 = vmatprep.subr.mxu0 0.0
      %1759 = vmatpush1.msra.mxu0 0.0
      %1760 = vmatprep.subr.mxu0 0.0
      %1761 = vmatpush1.msra.mxu0 0.0
      %1762 = vmatprep.subr.mxu0 0.0
      %1763 = vmatpush1.msra.mxu0 0.0
      %1764 = vmatprep.subr.mxu0 0.0
      %1765 = vmatpush1.msra.mxu0 0.0
      %1766 = vmatprep.subr.mxu0 0.0
      %1767 = vmatpush1.msra.mxu0 0.0
      %1768 = vmatprep.subr.mxu0 0.0
      %1769 = vmatpush1.msra.mxu0 0.0
      %1770 = vmatprep.subr.mxu0 0.0
      %1771 = vmatpush1.msra.mxu0 0.0
      %1772 = vmatprep.subr.mxu0 0.0
      %1773 = vmatpush1.msra.mxu0 0.0
      %1774 = vmatprep.mubr.f32.mxu0 0.0
      %1775 = vmatmul.mubr.f32.gmra.mrb[0].mxu0 %v1637
      %v1776 = vpop.f32.mrb[0].mxu0
      %v1777 = vadd.f32 %v1634, %v1776
      %v1778 = vpop.f32.mrb[0].mxu0
      %1779 = vdwg.mxu0
      %v1780 = vxor.u32 %v1706, 2147483648
      %v1781 = vxor.u32 %v1708, 2147483648
      %v1782 = vxor.u32 %v1777, 2147483648
      %v1783 = vmul.f32 %v1780, 1.442695
      %v1784 = vpow.pop %v1783
      %v1785 = vmul.f32 %v1781, 1.442695
      %v1786 = vpow.pop %v1785
      %v1787 = vmul.f32 %v1782, 1.442695
      %v1788 = vpow.pop %v1787
      %v1789 = vadd.f32 %v1784, 1.0
      %v1790 = vadd.f32 %v1786, 1.0
      %v1791 = vadd.f32 %v1788, 1.0
      %v1792 = vrcp.pop %v1789
      %v1793 = vmul.f32 1.0, %v1792
      %v1794 = vrcp.pop %v1790
      %v1795 = vmul.f32 1.0, %v1794
      %v1796 = vrcp.pop %v1791
      %v1797 = vmul.f32 1.0, %v1796
      %v1798 = vmul.f32 %v1706, %v1793
      %v1799 = vmul.f32 %v1708, %v1795
      %v1800 = vmul.f32 %v1777, %v1797
      %v1801 = vld [vmem:[%s13] sm:$0xff]
      %v1802 = vld [vmem:[%s12] sm:$0xff]
      %1804 = vset.pattern.permute.xlu0 0
      %1805 = vperm.xlu0 %1804, %v1802
      %v1806 = vpop.permute.xlu0 %1805
      %v1809 = vsel %vm1208, %v1801, 0
      %1811 = vmatprep.subr.mxu0 %v1195
      %1812 = vmatpush1.msra.mxu0 %v1194
      %1813 = vmatprep.subr.mxu0 %v1198
      %1814 = vmatpush1.msra.mxu0 %v1197
      %1815 = vmatprep.subr.mxu0 0.0
      %1816 = vmatpush1.msra.mxu0 0.0
      %1817 = vmatprep.subr.mxu0 0.0
      %1818 = vmatpush1.msra.mxu0 0.0
      %1819 = vmatprep.subr.mxu0 0.0
      %1820 = vmatpush1.msra.mxu0 0.0
      %1821 = vmatprep.subr.mxu0 0.0
      %1822 = vmatpush1.msra.mxu0 0.0
      %1823 = vmatprep.subr.mxu0 0.0
      %1824 = vmatpush1.msra.mxu0 0.0
      %1825 = vmatprep.subr.mxu0 0.0
      %1826 = vmatpush1.msra.mxu0 0.0
      %1827 = vmatprep.subr.mxu0 0.0
      %1828 = vmatpush1.msra.mxu0 0.0
      %1829 = vmatprep.subr.mxu0 0.0
      %1830 = vmatpush1.msra.mxu0 0.0
      %1831 = vmatprep.subr.mxu0 0.0
      %1832 = vmatpush1.msra.mxu0 0.0
      %1833 = vmatprep.subr.mxu0 0.0
      %1834 = vmatpush1.msra.mxu0 0.0
      %1835 = vmatprep.subr.mxu0 0.0
      %1836 = vmatpush1.msra.mxu0 0.0
      %1837 = vmatprep.subr.mxu0 0.0
      %1838 = vmatpush1.msra.mxu0 0.0
      %1839 = vmatprep.subr.mxu0 0.0
      %1840 = vmatpush1.msra.mxu0 0.0
      %1841 = vmatprep.subr.mxu0 0.0
      %1842 = vmatpush1.msra.mxu0 0.0
      %1843 = vmatprep.subr.mxu0 0.0
      %1844 = vmatpush1.msra.mxu0 0.0
      %1845 = vmatprep.subr.mxu0 0.0
      %1846 = vmatpush1.msra.mxu0 0.0
      %1847 = vmatprep.subr.mxu0 0.0
      %1848 = vmatpush1.msra.mxu0 0.0
      %1849 = vmatprep.subr.mxu0 0.0
      %1850 = vmatpush1.msra.mxu0 0.0
      %1851 = vmatprep.subr.mxu0 0.0
      %1852 = vmatpush1.msra.mxu0 0.0
      %1853 = vmatprep.subr.mxu0 0.0
      %1854 = vmatpush1.msra.mxu0 0.0
      %1855 = vmatprep.subr.mxu0 0.0
      %1856 = vmatpush1.msra.mxu0 0.0
      %1857 = vmatprep.subr.mxu0 0.0
      %1858 = vmatpush1.msra.mxu0 0.0
      %1859 = vmatprep.subr.mxu0 0.0
      %1860 = vmatpush1.msra.mxu0 0.0
      %1861 = vmatprep.subr.mxu0 0.0
      %1862 = vmatpush1.msra.mxu0 0.0
      %1863 = vmatprep.subr.mxu0 0.0
      %1864 = vmatpush1.msra.mxu0 0.0
      %1865 = vmatprep.subr.mxu0 0.0
      %1866 = vmatpush1.msra.mxu0 0.0
      %1867 = vmatprep.subr.mxu0 0.0
      %1868 = vmatpush1.msra.mxu0 0.0
      %1869 = vmatprep.subr.mxu0 0.0
      %1870 = vmatpush1.msra.mxu0 0.0
      %1871 = vmatprep.subr.mxu0 0.0
      %1872 = vmatpush1.msra.mxu0 0.0
      %1873 = vmatprep.subr.mxu0 0.0
      %1874 = vmatpush1.msra.mxu0 0.0
      %1875 = vmatprep.mubr.f32.mxu0 0.0
      %1876 = vmatmul.mubr.f32.gmra.mrb[0].mxu0 %v1809
      %v1877 = vpop.f32.mrb[0].mxu0
      %v1878 = vadd.f32 %v1806, %v1877
      %v1879 = vpop.f32.mrb[0].mxu0
      %v1880 = vadd.f32 %v1806, %v1879
      %1881 = vdwg.mxu0
      %1882 = vmatprep.subr.mxu0 0.0
      %1883 = vmatpush1.msra.mxu0 %v1196
      %1884 = vmatprep.subr.mxu0 0.0
      %1885 = vmatpush1.msra.mxu0 %v1199
      %1886 = vmatprep.subr.mxu0 0.0
      %1887 = vmatpush1.msra.mxu0 0.0
      %1888 = vmatprep.subr.mxu0 0.0
      %1889 = vmatpush1.msra.mxu0 0.0
      %1890 = vmatprep.subr.mxu0 0.0
      %1891 = vmatpush1.msra.mxu0 0.0
      %1892 = vmatprep.subr.mxu0 0.0
      %1893 = vmatpush1.msra.mxu0 0.0
      %1894 = vmatprep.subr.mxu0 0.0
      %1895 = vmatpush1.msra.mxu0 0.0
      %1896 = vmatprep.subr.mxu0 0.0
      %1897 = vmatpush1.msra.mxu0 0.0
      %1898 = vmatprep.subr.mxu0 0.0
      %1899 = vmatpush1.msra.mxu0 0.0
      %1900 = vmatprep.subr.mxu0 0.0
      %1901 = vmatpush1.msra.mxu0 0.0
      %1902 = vmatprep.subr.mxu0 0.0
      %1903 = vmatpush1.msra.mxu0 0.0
      %1904 = vmatprep.subr.mxu0 0.0
      %1905 = vmatpush1.msra.mxu0 0.0
      %1906 = vmatprep.subr.mxu0 0.0
      %1907 = vmatpush1.msra.mxu0 0.0
      %1908 = vmatprep.subr.mxu0 0.0
      %1909 = vmatpush1.msra.mxu0 0.0
      %1910 = vmatprep.subr.mxu0 0.0
      %1911 = vmatpush1.msra.mxu0 0.0
      %1912 = vmatprep.subr.mxu0 0.0
      %1913 = vmatpush1.msra.mxu0 0.0
      %1914 = vmatprep.subr.mxu0 0.0
      %1915 = vmatpush1.msra.mxu0 0.0
      %1916 = vmatprep.subr.mxu0 0.0
      %1917 = vmatpush1.msra.mxu0 0.0
      %1918 = vmatprep.subr.mxu0 0.0
      %1919 = vmatpush1.msra.mxu0 0.0
      %1920 = vmatprep.subr.mxu0 0.0
      %1921 = vmatpush1.msra.mxu0 0.0
      %1922 = vmatprep.subr.mxu0 0.0
      %1923 = vmatpush1.msra.mxu0 0.0
      %1924 = vmatprep.subr.mxu0 0.0
      %1925 = vmatpush1.msra.mxu0 0.0
      %1926 = vmatprep.subr.mxu0 0.0
      %1927 = vmatpush1.msra.mxu0 0.0
      %1928 = vmatprep.subr.mxu0 0.0
      %1929 = vmatpush1.msra.mxu0 0.0
      %1930 = vmatprep.subr.mxu0 0.0
      %1931 = vmatpush1.msra.mxu0 0.0
      %1932 = vmatprep.subr.mxu0 0.0
      %1933 = vmatpush1.msra.mxu0 0.0
      %1934 = vmatprep.subr.mxu0 0.0
      %1935 = vmatpush1.msra.mxu0 0.0
      %1936 = vmatprep.subr.mxu0 0.0
      %1937 = vmatpush1.msra.mxu0 0.0
      %1938 = vmatprep.subr.mxu0 0.0
      %1939 = vmatpush1.msra.mxu0 0.0
      %1940 = vmatprep.subr.mxu0 0.0
      %1941 = vmatpush1.msra.mxu0 0.0
      %1942 = vmatprep.subr.mxu0 0.0
      %1943 = vmatpush1.msra.mxu0 0.0
      %1944 = vmatprep.subr.mxu0 0.0
      %1945 = vmatpush1.msra.mxu0 0.0
      %1946 = vmatprep.mubr.f32.mxu0 0.0
      %1947 = vmatmul.mubr.f32.gmra.mrb[0].mxu0 %v1809
      %v1948 = vpop.f32.mrb[0].mxu0
      %v1949 = vadd.f32 %v1806, %v1948
      %v1950 = vpop.f32.mrb[0].mxu0
      %1951 = vdwg.mxu0
      %v1952 = vxor.u32 %v1878, 2147483648
      %v1953 = vxor.u32 %v1880, 2147483648
      %v1954 = vxor.u32 %v1949, 2147483648
      %v1955 = vmul.f32 %v1952, 1.442695
      %v1956 = vpow.pop %v1955
      %v1957 = vmul.f32 %v1953, 1.442695
      %v1958 = vpow.pop %v1957
      %v1959 = vmul.f32 %v1954, 1.442695
      %v1960 = vpow.pop %v1959
      %v1961 = vadd.f32 %v1956, 1.0
      %v1962 = vadd.f32 %v1958, 1.0
      %v1963 = vadd.f32 %v1960, 1.0
      %v1964 = vrcp.pop %v1961
      %v1965 = vmul.f32 1.0, %v1964
      %v1966 = vrcp.pop %v1962
      %v1967 = vmul.f32 1.0, %v1966
      %v1968 = vrcp.pop %v1963
      %v1969 = vmul.f32 1.0, %v1968
      %v1970 = vmul.f32 %v1878, %v1965
      %v1971 = vmul.f32 %v1880, %v1967
      %v1972 = vmul.f32 %v1949, %v1969
      %v1974 = vlaneseq
      %v1975 = vshrl.u32 %v1974, 7
      %v1976 = vsub.s32 0, %v1975
      %v1977 = vrot.slane %v767, %v1976
      %v1978 = vlaneseq
      %v1979 = vshrl.u32 %v1978, 7
      %v1980 = vsub.s32 1, %v1979
      %v1981 = vrot.slane %v767, %v1980
      %v1982 = vlaneseq
      %v1983 = vshrl.u32 %v1982, 7
      %v1984 = vsub.s32 2, %v1983
      %v1985 = vrot.slane %v767, %v1984
      %v1989 = vmul.f32 %v1798, %v1977
      %v1990 = vmul.f32 %v1799, %v1981
      %v1991 = vmul.f32 %v1800, %v1985
      %1992 = vst [vmem:[#allocation2 + $0x8] sm:$0xff] %v1989
      %1993 = vst [vmem:[#allocation2 + $0x10] sm:$0xff] %v1990
      %1994 = vst [vmem:[#allocation2 + $0x18] sm:$0xff] %v1991
      %v1995 = vld [vmem:[#allocation2] sm:$0xff]
      %v1996 = vld [vmem:[#allocation2 + $0x8] sm:$0xff]
      %v1997 = vld [vmem:[#allocation2 + $0x10] sm:$0xff]
      %v1998 = vld [vmem:[#allocation2 + $0x18] sm:$0xff]
      %2003 = vrot.lane.b32.xlu0 %v1995, 19
      %v2004 = vpop.permute.xlu0 %2003
      %2005 = vrot.lane.b32.xlu0 %v1996, 19
      %v2006 = vpop.permute.xlu0 %2005
      %2007 = vrot.lane.b32.xlu0 %v1997, 19
      %v2008 = vpop.permute.xlu0 %2007
      %2009 = vrot.lane.b32.xlu0 %v1998, 19
      %v2010 = vpop.permute.xlu0 %2009
      %vm2011 = vcmask 154624
      %v2012 = vsel %vm2011, %v2004, %v2006
      %v2013 = vsel %vm2011, %v2006, %v2008
      %v2014 = vsel %vm2011, %v2008, %v2010
      %2018 = vst [vmem:[#allocation3] sm:$0xff] %v2012
      %2019 = vst [vmem:[#allocation3 + $0x8] sm:$0xff] %v2013
      %2020 = vst [vmem:[#allocation3 + $0x10] sm:$0xff] %v2014
      %v2021 = vld [vmem:[#allocation2] sm:$0xff]
      %v2022 = vld [vmem:[#allocation2 + $0x8] sm:$0xff]
      %v2023 = vld [vmem:[#allocation2 + $0x10] sm:$0xff]
      %v2024 = vld [vmem:[#allocation2 + $0x18] sm:$0xff]
      %2029 = vrot.lane.b32.xlu0 %v2021, 18
      %v2030 = vpop.permute.xlu0 %2029
      %2031 = vrot.lane.b32.xlu0 %v2022, 18
      %v2032 = vpop.permute.xlu0 %2031
      %2033 = vrot.lane.b32.xlu0 %v2023, 18
      %v2034 = vpop.permute.xlu0 %2033
      %2035 = vrot.lane.b32.xlu0 %v2024, 18
      %v2036 = vpop.permute.xlu0 %2035
      %vm2037 = vcmask 146432
      %v2038 = vsel %vm2037, %v2030, %v2032
      %v2039 = vsel %vm2037, %v2032, %v2034
      %v2040 = vsel %vm2037, %v2034, %v2036
      %2044 = vst [vmem:[#allocation3 + $0x18] sm:$0xff] %v2038
      %2045 = vst [vmem:[#allocation3 + $0x20] sm:$0xff] %v2039
      %2046 = vst [vmem:[#allocation3 + $0x28] sm:$0xff] %v2040
      %v2047 = vld [vmem:[#allocation2] sm:$0xff]
      %v2048 = vld [vmem:[#allocation2 + $0x8] sm:$0xff]
      %v2049 = vld [vmem:[#allocation2 + $0x10] sm:$0xff]
      %v2050 = vld [vmem:[#allocation2 + $0x18] sm:$0xff]
      %2055 = vrot.lane.b32.xlu0 %v2047, 17
      %v2056 = vpop.permute.xlu0 %2055
      %2057 = vrot.lane.b32.xlu0 %v2048, 17
      %v2058 = vpop.permute.xlu0 %2057
      %2059 = vrot.lane.b32.xlu0 %v2049, 17
      %v2060 = vpop.permute.xlu0 %2059
      %2061 = vrot.lane.b32.xlu0 %v2050, 17
      %v2062 = vpop.permute.xlu0 %2061
      %vm2063 = vcmask 138240
      %v2064 = vsel %vm2063, %v2056, %v2058
      %v2065 = vsel %vm2063, %v2058, %v2060
      %v2066 = vsel %vm2063, %v2060, %v2062
      %2070 = vst [vmem:[#allocation3 + $0x30] sm:$0xff] %v2064
      %2071 = vst [vmem:[#allocation3 + $0x38] sm:$0xff] %v2065
      %2072 = vst [vmem:[#allocation3 + $0x40] sm:$0xff] %v2066
      %v2073 = vld [vmem:[#allocation2] sm:$0xff]
      %v2074 = vld [vmem:[#allocation2 + $0x8] sm:$0xff]
      %v2075 = vld [vmem:[#allocation2 + $0x10] sm:$0xff]
      %v2076 = vld [vmem:[#allocation2 + $0x18] sm:$0xff]
      %2081 = vrot.lane.b32.xlu0 %v2073, 1
      %v2082 = vpop.permute.xlu0 %2081
      %2083 = vrot.lane.b32.xlu0 %v2074, 1
      %v2084 = vpop.permute.xlu0 %2083
      %2085 = vrot.lane.b32.xlu0 %v2075, 1
      %v2086 = vpop.permute.xlu0 %2085
      %2087 = vrot.lane.b32.xlu0 %v2076, 1
      %v2088 = vpop.permute.xlu0 %2087
      %vm2089 = vcmask 7168
      %v2090 = vsel %vm2089, %v2082, %v2084
      %v2091 = vsel %vm2089, %v2084, %v2086
      %v2092 = vsel %vm2089, %v2086, %v2088
      %2096 = vst [vmem:[#allocation3 + $0x48] sm:$0xff] %v2090
      %2097 = vst [vmem:[#allocation3 + $0x50] sm:$0xff] %v2091
      %2098 = vst [vmem:[#allocation3 + $0x58] sm:$0xff] %v2092
      %v2099 = vld [vmem:[#allocation2 + $0x8] sm:$0xff]
      %v2100 = vld [vmem:[#allocation2 + $0x10] sm:$0xff]
      %v2101 = vld [vmem:[#allocation2 + $0x18] sm:$0xff]
      %2102 = vst [vmem:[#allocation3 + $0x60] sm:$0xff] %v2099
      %2103 = vst [vmem:[#allocation3 + $0x68] sm:$0xff] %v2100
      %2104 = vst [vmem:[#allocation3 + $0x70] sm:$0xff] %v2101
      %v2105 = vld [vmem:[#allocation2 + $0x8] sm:$0xff]
      %v2106 = vld [vmem:[#allocation2 + $0x10] sm:$0xff]
      %v2107 = vld [vmem:[#allocation2 + $0x18] sm:$0xff]
      %v2108 = vld [vmem:[#allocation2 + $0x20] sm:$0xff]
      %2113 = vrot.lane.b32.xlu0 %v2105, 127
      %v2114 = vpop.permute.xlu0 %2113
      %2115 = vrot.lane.b32.xlu0 %v2106, 127
      %v2116 = vpop.permute.xlu0 %2115
      %2117 = vrot.lane.b32.xlu0 %v2107, 127
      %v2118 = vpop.permute.xlu0 %2117
      %2119 = vrot.lane.b32.xlu0 %v2108, 127
      %v2120 = vpop.permute.xlu0 %2119
      %vm2121 = vcmask 1039360
      %v2122 = vsel %vm2121, %v2114, %v2116
      %v2123 = vsel %vm2121, %v2116, %v2118
      %v2124 = vsel %vm2121, %v2118, %v2120
      %2128 = vst [vmem:[#allocation3 + $0x78] sm:$0xff] %v2122
      %2129 = vst [vmem:[#allocation3 + $0x80] sm:$0xff] %v2123
      %2130 = vst [vmem:[#allocation3 + $0x88] sm:$0xff] %v2124
      %v2131 = vld [vmem:[#allocation2 + $0x8] sm:$0xff]
      %v2132 = vld [vmem:[#allocation2 + $0x10] sm:$0xff]
      %v2133 = vld [vmem:[#allocation2 + $0x18] sm:$0xff]
      %v2134 = vld [vmem:[#allocation2 + $0x20] sm:$0xff]
      %2139 = vrot.lane.b32.xlu0 %v2131, 111
      %v2140 = vpop.permute.xlu0 %2139
      %2141 = vrot.lane.b32.xlu0 %v2132, 111
      %v2142 = vpop.permute.xlu0 %2141
      %2143 = vrot.lane.b32.xlu0 %v2133, 111
      %v2144 = vpop.permute.xlu0 %2143
      %2145 = vrot.lane.b32.xlu0 %v2134, 111
      %v2146 = vpop.permute.xlu0 %2145
      %vm2147 = vcmask 908288
      %v2148 = vsel %vm2147, %v2140, %v2142
      %v2149 = vsel %vm2147, %v2142, %v2144
      %v2150 = vsel %vm2147, %v2144, %v2146
      %2154 = vst [vmem:[#allocation3 + $0x90] sm:$0xff] %v2148
      %2155 = vst [vmem:[#allocation3 + $0x98] sm:$0xff] %v2149
      %2156 = vst [vmem:[#allocation3 + $0xa0] sm:$0xff] %v2150
      %v2157 = vld [vmem:[#allocation2 + $0x8] sm:$0xff]
      %v2158 = vld [vmem:[#allocation2 + $0x10] sm:$0xff]
      %v2159 = vld [vmem:[#allocation2 + $0x18] sm:$0xff]
      %v2160 = vld [vmem:[#allocation2 + $0x20] sm:$0xff]
      %2165 = vrot.lane.b32.xlu0 %v2157, 110
      %v2166 = vpop.permute.xlu0 %2165
      %2167 = vrot.lane.b32.xlu0 %v2158, 110
      %v2168 = vpop.permute.xlu0 %2167
      %2169 = vrot.lane.b32.xlu0 %v2159, 110
      %v2170 = vpop.permute.xlu0 %2169
      %2171 = vrot.lane.b32.xlu0 %v2160, 110
      %v2172 = vpop.permute.xlu0 %2171
      %vm2173 = vcmask 900096
      %v2174 = vsel %vm2173, %v2166, %v2168
      %v2175 = vsel %vm2173, %v2168, %v2170
      %v2176 = vsel %vm2173, %v2170, %v2172
      %2180 = vst [vmem:[#allocation3 + $0xa8] sm:$0xff] %v2174
      %2181 = vst [vmem:[#allocation3 + $0xb0] sm:$0xff] %v2175
      %2182 = vst [vmem:[#allocation3 + $0xb8] sm:$0xff] %v2176
      %v2183 = vld [vmem:[#allocation2 + $0x8] sm:$0xff]
      %v2184 = vld [vmem:[#allocation2 + $0x10] sm:$0xff]
      %v2185 = vld [vmem:[#allocation2 + $0x18] sm:$0xff]
      %v2186 = vld [vmem:[#allocation2 + $0x20] sm:$0xff]
      %2191 = vrot.lane.b32.xlu0 %v2183, 109
      %v2192 = vpop.permute.xlu0 %2191
      %2193 = vrot.lane.b32.xlu0 %v2184, 109
      %v2194 = vpop.permute.xlu0 %2193
      %2195 = vrot.lane.b32.xlu0 %v2185, 109
      %v2196 = vpop.permute.xlu0 %2195
      %2197 = vrot.lane.b32.xlu0 %v2186, 109
      %v2198 = vpop.permute.xlu0 %2197
      %vm2199 = vcmask 891904
      %v2200 = vsel %vm2199, %v2192, %v2194
      %v2201 = vsel %vm2199, %v2194, %v2196
      %v2202 = vsel %vm2199, %v2196, %v2198
      %2206 = vst [vmem:[#allocation3 + $0xc0] sm:$0xff] %v2200
      %2207 = vst [vmem:[#allocation3 + $0xc8] sm:$0xff] %v2201
      %2208 = vst [vmem:[#allocation3 + $0xd0] sm:$0xff] %v2202
      %v2209 = vld [vmem:[%s18] sm:$0xff]
      %v2210 = vld [vmem:[#allocation3] sm:$0xff]
      %v2211 = vld [vmem:[#allocation3 + $0x8] sm:$0xff]
      %v2212 = vld [vmem:[#allocation3 + $0x10] sm:$0xff]
      %v2213 = vld [vmem:[#allocation3 + $0x18] sm:$0xff]
      %v2214 = vld [vmem:[#allocation3 + $0x20] sm:$0xff]
      %v2215 = vld [vmem:[#allocation3 + $0x28] sm:$0xff]
      %v2216 = vld [vmem:[#allocation3 + $0x30] sm:$0xff]
      %v2217 = vld [vmem:[#allocation3 + $0x38] sm:$0xff]
      %v2218 = vld [vmem:[#allocation3 + $0x40] sm:$0xff]
      %v2219 = vld [vmem:[#allocation3 + $0x48] sm:$0xff]
      %v2220 = vld [vmem:[#allocation3 + $0x50] sm:$0xff]
      %v2221 = vld [vmem:[#allocation3 + $0x58] sm:$0xff]
      %v2222 = vld [vmem:[#allocation3 + $0x60] sm:$0xff]
      %v2223 = vld [vmem:[#allocation3 + $0x68] sm:$0xff]
      %v2224 = vld [vmem:[#allocation3 + $0x70] sm:$0xff]
      %v2225 = vld [vmem:[#allocation3 + $0x78] sm:$0xff]
      %v2226 = vld [vmem:[#allocation3 + $0x80] sm:$0xff]
      %v2227 = vld [vmem:[#allocation3 + $0x88] sm:$0xff]
      %v2228 = vld [vmem:[#allocation3 + $0x90] sm:$0xff]
      %v2229 = vld [vmem:[#allocation3 + $0x98] sm:$0xff]
      %v2230 = vld [vmem:[#allocation3 + $0xa0] sm:$0xff]
      %v2231 = vld [vmem:[#allocation3 + $0xa8] sm:$0xff]
      %v2232 = vld [vmem:[#allocation3 + $0xb0] sm:$0xff]
      %v2233 = vld [vmem:[#allocation3 + $0xb8] sm:$0xff]
      %v2234 = vld [vmem:[#allocation3 + $0xc0] sm:$0xff]
      %v2235 = vld [vmem:[#allocation3 + $0xc8] sm:$0xff]
      %v2236 = vld [vmem:[#allocation3 + $0xd0] sm:$0xff]
      %v2237 = vld [vmem:[%s17] sm:$0xff]
      %2239 = vset.pattern.permute.xlu0 0
      %2240 = vperm.xlu0 %2239, %v2237
      %v2241 = vpop.permute.xlu0 %2240
      %vm2243 = vcmask 588800
      %v2245 = vsel %vm2243, %v2209, 0
      %2247 = vmatprep.subr.mxu0 %v2211
      %2248 = vmatpush1.msra.mxu0 %v2210
      %2249 = vmatprep.subr.mxu0 %v2214
      %2250 = vmatpush1.msra.mxu0 %v2213
      %2251 = vmatprep.subr.mxu0 %v2217
      %2252 = vmatpush1.msra.mxu0 %v2216
      %2253 = vmatprep.subr.mxu0 %v2220
      %2254 = vmatpush1.msra.mxu0 %v2219
      %2255 = vmatprep.subr.mxu0 %v2223
      %2256 = vmatpush1.msra.mxu0 %v2222
      %2257 = vmatprep.subr.mxu0 %v2226
      %2258 = vmatpush1.msra.mxu0 %v2225
      %2259 = vmatprep.subr.mxu0 %v2229
      %2260 = vmatpush1.msra.mxu0 %v2228
      %2261 = vmatprep.subr.mxu0 %v2232
      %2262 = vmatpush1.msra.mxu0 %v2231
      %2263 = vmatprep.subr.mxu0 %v2235
      %2264 = vmatpush1.msra.mxu0 %v2234
      %2265 = vmatprep.subr.mxu0 0.0
      %2266 = vmatpush1.msra.mxu0 0.0
      %2267 = vmatprep.subr.mxu0 0.0
      %2268 = vmatpush1.msra.mxu0 0.0
      %2269 = vmatprep.subr.mxu0 0.0
      %2270 = vmatpush1.msra.mxu0 0.0
      %2271 = vmatprep.subr.mxu0 0.0
      %2272 = vmatpush1.msra.mxu0 0.0
      %2273 = vmatprep.subr.mxu0 0.0
      %2274 = vmatpush1.msra.mxu0 0.0
      %2275 = vmatprep.subr.mxu0 0.0
      %2276 = vmatpush1.msra.mxu0 0.0
      %2277 = vmatprep.subr.mxu0 0.0
      %2278 = vmatpush1.msra.mxu0 0.0
      %2279 = vmatprep.subr.mxu0 0.0
      %2280 = vmatpush1.msra.mxu0 0.0
      %2281 = vmatprep.subr.mxu0 0.0
      %2282 = vmatpush1.msra.mxu0 0.0
      %2283 = vmatprep.subr.mxu0 0.0
      %2284 = vmatpush1.msra.mxu0 0.0
      %2285 = vmatprep.subr.mxu0 0.0
      %2286 = vmatpush1.msra.mxu0 0.0
      %2287 = vmatprep.subr.mxu0 0.0
      %2288 = vmatpush1.msra.mxu0 0.0
      %2289 = vmatprep.subr.mxu0 0.0
      %2290 = vmatpush1.msra.mxu0 0.0
      %2291 = vmatprep.subr.mxu0 0.0
      %2292 = vmatpush1.msra.mxu0 0.0
      %2293 = vmatprep.subr.mxu0 0.0
      %2294 = vmatpush1.msra.mxu0 0.0
      %2295 = vmatprep.subr.mxu0 0.0
      %2296 = vmatpush1.msra.mxu0 0.0
      %2297 = vmatprep.subr.mxu0 0.0
      %2298 = vmatpush1.msra.mxu0 0.0
      %2299 = vmatprep.subr.mxu0 0.0
      %2300 = vmatpush1.msra.mxu0 0.0
      %2301 = vmatprep.subr.mxu0 0.0
      %2302 = vmatpush1.msra.mxu0 0.0
      %2303 = vmatprep.subr.mxu0 0.0
      %2304 = vmatpush1.msra.mxu0 0.0
      %2305 = vmatprep.subr.mxu0 0.0
      %2306 = vmatpush1.msra.mxu0 0.0
      %2307 = vmatprep.subr.mxu0 0.0
      %2308 = vmatpush1.msra.mxu0 0.0
      %2309 = vmatprep.subr.mxu0 0.0
      %2310 = vmatpush1.msra.mxu0 0.0
      %2311 = vmatprep.mubr.f32.mxu0 0.0
      %2312 = vmatmul.mubr.f32.gmra.mrb[0].mxu0 %v2245
      %v2313 = vpop.f32.mrb[0].mxu0
      %v2314 = vadd.f32 %v2241, %v2313
      %v2315 = vpop.f32.mrb[0].mxu0
      %v2316 = vadd.f32 %v2241, %v2315
      %2317 = vdwg.mxu0
      %2318 = vmatprep.subr.mxu0 0.0
      %2319 = vmatpush1.msra.mxu0 %v2212
      %2320 = vmatprep.subr.mxu0 0.0
      %2321 = vmatpush1.msra.mxu0 %v2215
      %2322 = vmatprep.subr.mxu0 0.0
      %2323 = vmatpush1.msra.mxu0 %v2218
      %2324 = vmatprep.subr.mxu0 0.0
      %2325 = vmatpush1.msra.mxu0 %v2221
      %2326 = vmatprep.subr.mxu0 0.0
      %2327 = vmatpush1.msra.mxu0 %v2224
      %2328 = vmatprep.subr.mxu0 0.0
      %2329 = vmatpush1.msra.mxu0 %v2227
      %2330 = vmatprep.subr.mxu0 0.0
      %2331 = vmatpush1.msra.mxu0 %v2230
      %2332 = vmatprep.subr.mxu0 0.0
      %2333 = vmatpush1.msra.mxu0 %v2233
      %2334 = vmatprep.subr.mxu0 0.0
      %2335 = vmatpush1.msra.mxu0 %v2236
      %2336 = vmatprep.subr.mxu0 0.0
      %2337 = vmatpush1.msra.mxu0 0.0
      %2338 = vmatprep.subr.mxu0 0.0
      %2339 = vmatpush1.msra.mxu0 0.0
      %2340 = vmatprep.subr.mxu0 0.0
      %2341 = vmatpush1.msra.mxu0 0.0
      %2342 = vmatprep.subr.mxu0 0.0
      %2343 = vmatpush1.msra.mxu0 0.0
      %2344 = vmatprep.subr.mxu0 0.0
      %2345 = vmatpush1.msra.mxu0 0.0
      %2346 = vmatprep.subr.mxu0 0.0
      %2347 = vmatpush1.msra.mxu0 0.0
      %2348 = vmatprep.subr.mxu0 0.0
      %2349 = vmatpush1.msra.mxu0 0.0
      %2350 = vmatprep.subr.mxu0 0.0
      %2351 = vmatpush1.msra.mxu0 0.0
      %2352 = vmatprep.subr.mxu0 0.0
      %2353 = vmatpush1.msra.mxu0 0.0
      %2354 = vmatprep.subr.mxu0 0.0
      %2355 = vmatpush1.msra.mxu0 0.0
      %2356 = vmatprep.subr.mxu0 0.0
      %2357 = vmatpush1.msra.mxu0 0.0
      %2358 = vmatprep.subr.mxu0 0.0
      %2359 = vmatpush1.msra.mxu0 0.0
      %2360 = vmatprep.subr.mxu0 0.0
      %2361 = vmatpush1.msra.mxu0 0.0
      %2362 = vmatprep.subr.mxu0 0.0
      %2363 = vmatpush1.msra.mxu0 0.0
      %2364 = vmatprep.subr.mxu0 0.0
      %2365 = vmatpush1.msra.mxu0 0.0
      %2366 = vmatprep.subr.mxu0 0.0
      %2367 = vmatpush1.msra.mxu0 0.0
      %2368 = vmatprep.subr.mxu0 0.0
      %2369 = vmatpush1.msra.mxu0 0.0
      %2370 = vmatprep.subr.mxu0 0.0
      %2371 = vmatpush1.msra.mxu0 0.0
      %2372 = vmatprep.subr.mxu0 0.0
      %2373 = vmatpush1.msra.mxu0 0.0
      %2374 = vmatprep.subr.mxu0 0.0
      %2375 = vmatpush1.msra.mxu0 0.0
      %2376 = vmatprep.subr.mxu0 0.0
      %2377 = vmatpush1.msra.mxu0 0.0
      %2378 = vmatprep.subr.mxu0 0.0
      %2379 = vmatpush1.msra.mxu0 0.0
      %2380 = vmatprep.subr.mxu0 0.0
      %2381 = vmatpush1.msra.mxu0 0.0
      %2382 = vmatprep.mubr.f32.mxu0 0.0
      %2383 = vmatmul.mubr.f32.gmra.mrb[0].mxu0 %v2245
      %v2384 = vpop.f32.mrb[0].mxu0
      %v2385 = vadd.f32 %v2241, %v2384
      %v2386 = vpop.f32.mrb[0].mxu0
      %2387 = vdwg.mxu0
      %v2388 = vxor.u32 %v2314, 2147483648
      %v2389 = vxor.u32 %v2316, 2147483648
      %v2390 = vxor.u32 %v2385, 2147483648
      %v2391 = vmul.f32 %v2388, 1.442695
      %v2392 = vpow.pop %v2391
      %v2393 = vmul.f32 %v2389, 1.442695
      %v2394 = vpow.pop %v2393
      %v2395 = vmul.f32 %v2390, 1.442695
      %v2396 = vpow.pop %v2395
      %v2397 = vadd.f32 %v2392, 1.0
      %v2398 = vadd.f32 %v2394, 1.0
      %v2399 = vadd.f32 %v2396, 1.0
      %v2400 = vrcp.pop %v2397
      %v2401 = vmul.f32 1.0, %v2400
      %v2402 = vrcp.pop %v2398
      %v2403 = vmul.f32 1.0, %v2402
      %v2404 = vrcp.pop %v2399
      %v2405 = vmul.f32 1.0, %v2404
      %v2406 = vmul.f32 %v2314, %v2401
      %v2407 = vmul.f32 %v2316, %v2403
      %v2408 = vmul.f32 %v2385, %v2405
      %v2409 = vmul.f32 %v2406, %v1977
      %v2410 = vmul.f32 %v2407, %v1981
      %v2411 = vmul.f32 %v2408, %v1985
      %2412 = vst [vmem:[#allocation2 + $0x8] sm:$0xff] %v2409
      %2413 = vst [vmem:[#allocation2 + $0x10] sm:$0xff] %v2410
      %2414 = vst [vmem:[#allocation2 + $0x18] sm:$0xff] %v2411
      %v2415 = vld [vmem:[#allocation2] sm:$0xff]
      %v2416 = vld [vmem:[#allocation2 + $0x8] sm:$0xff]
      %v2417 = vld [vmem:[#allocation2 + $0x10] sm:$0xff]
      %v2418 = vld [vmem:[#allocation2 + $0x18] sm:$0xff]
      %2423 = vrot.lane.b32.xlu0 %v2415, 19
      %v2424 = vpop.permute.xlu0 %2423
      %2425 = vrot.lane.b32.xlu0 %v2416, 19
      %v2426 = vpop.permute.xlu0 %2425
      %2427 = vrot.lane.b32.xlu0 %v2417, 19
      %v2428 = vpop.permute.xlu0 %2427
      %2429 = vrot.lane.b32.xlu0 %v2418, 19
      %v2430 = vpop.permute.xlu0 %2429
      %v2431 = vsel %vm2011, %v2424, %v2426
      %v2432 = vsel %vm2011, %v2426, %v2428
      %v2433 = vsel %vm2011, %v2428, %v2430
      %2437 = vst [vmem:[#allocation3] sm:$0xff] %v2431
      %2438 = vst [vmem:[#allocation3 + $0x8] sm:$0xff] %v2432
      %2439 = vst [vmem:[#allocation3 + $0x10] sm:$0xff] %v2433
      %v2440 = vld [vmem:[#allocation2] sm:$0xff]
      %v2441 = vld [vmem:[#allocation2 + $0x8] sm:$0xff]
      %v2442 = vld [vmem:[#allocation2 + $0x10] sm:$0xff]
      %v2443 = vld [vmem:[#allocation2 + $0x18] sm:$0xff]
      %2448 = vrot.lane.b32.xlu0 %v2440, 18
      %v2449 = vpop.permute.xlu0 %2448
      %2450 = vrot.lane.b32.xlu0 %v2441, 18
      %v2451 = vpop.permute.xlu0 %2450
      %2452 = vrot.lane.b32.xlu0 %v2442, 18
      %v2453 = vpop.permute.xlu0 %2452
      %2454 = vrot.lane.b32.xlu0 %v2443, 18
      %v2455 = vpop.permute.xlu0 %2454
      %v2456 = vsel %vm2037, %v2449, %v2451
      %v2457 = vsel %vm2037, %v2451, %v2453
      %v2458 = vsel %vm2037, %v2453, %v2455
      %2462 = vst [vmem:[#allocation3 + $0x18] sm:$0xff] %v2456
      %2463 = vst [vmem:[#allocation3 + $0x20] sm:$0xff] %v2457
      %2464 = vst [vmem:[#allocation3 + $0x28] sm:$0xff] %v2458
      %v2465 = vld [vmem:[#allocation2] sm:$0xff]
      %v2466 = vld [vmem:[#allocation2 + $0x8] sm:$0xff]
      %v2467 = vld [vmem:[#allocation2 + $0x10] sm:$0xff]
      %v2468 = vld [vmem:[#allocation2 + $0x18] sm:$0xff]
      %2473 = vrot.lane.b32.xlu0 %v2465, 17
      %v2474 = vpop.permute.xlu0 %2473
      %2475 = vrot.lane.b32.xlu0 %v2466, 17
      %v2476 = vpop.permute.xlu0 %2475
      %2477 = vrot.lane.b32.xlu0 %v2467, 17
      %v2478 = vpop.permute.xlu0 %2477
      %2479 = vrot.lane.b32.xlu0 %v2468, 17
      %v2480 = vpop.permute.xlu0 %2479
      %v2481 = vsel %vm2063, %v2474, %v2476
      %v2482 = vsel %vm2063, %v2476, %v2478
      %v2483 = vsel %vm2063, %v2478, %v2480
      %2487 = vst [vmem:[#allocation3 + $0x30] sm:$0xff] %v2481
      %2488 = vst [vmem:[#allocation3 + $0x38] sm:$0xff] %v2482
      %2489 = vst [vmem:[#allocation3 + $0x40] sm:$0xff] %v2483
      %v2490 = vld [vmem:[#allocation2] sm:$0xff]
      %v2491 = vld [vmem:[#allocation2 + $0x8] sm:$0xff]
      %v2492 = vld [vmem:[#allocation2 + $0x10] sm:$0xff]
      %v2493 = vld [vmem:[#allocation2 + $0x18] sm:$0xff]
      %2498 = vrot.lane.b32.xlu0 %v2490, 1
      %v2499 = vpop.permute.xlu0 %2498
      %2500 = vrot.lane.b32.xlu0 %v2491, 1
      %v2501 = vpop.permute.xlu0 %2500
      %2502 = vrot.lane.b32.xlu0 %v2492, 1
      %v2503 = vpop.permute.xlu0 %2502
      %2504 = vrot.lane.b32.xlu0 %v2493, 1
      %v2505 = vpop.permute.xlu0 %2504
      %v2506 = vsel %vm2089, %v2499, %v2501
      %v2507 = vsel %vm2089, %v2501, %v2503
      %v2508 = vsel %vm2089, %v2503, %v2505
      %2512 = vst [vmem:[#allocation3 + $0x48] sm:$0xff] %v2506
      %2513 = vst [vmem:[#allocation3 + $0x50] sm:$0xff] %v2507
      %2514 = vst [vmem:[#allocation3 + $0x58] sm:$0xff] %v2508
      %v2515 = vld [vmem:[#allocation2 + $0x8] sm:$0xff]
      %v2516 = vld [vmem:[#allocation2 + $0x10] sm:$0xff]
      %v2517 = vld [vmem:[#allocation2 + $0x18] sm:$0xff]
      %2518 = vst [vmem:[#allocation3 + $0x60] sm:$0xff] %v2515
      %2519 = vst [vmem:[#allocation3 + $0x68] sm:$0xff] %v2516
      %2520 = vst [vmem:[#allocation3 + $0x70] sm:$0xff] %v2517
      %v2521 = vld [vmem:[#allocation2 + $0x8] sm:$0xff]
      %v2522 = vld [vmem:[#allocation2 + $0x10] sm:$0xff]
      %v2523 = vld [vmem:[#allocation2 + $0x18] sm:$0xff]
      %v2524 = vld [vmem:[#allocation2 + $0x20] sm:$0xff]
      %2529 = vrot.lane.b32.xlu0 %v2521, 127
      %v2530 = vpop.permute.xlu0 %2529
      %2531 = vrot.lane.b32.xlu0 %v2522, 127
      %v2532 = vpop.permute.xlu0 %2531
      %2533 = vrot.lane.b32.xlu0 %v2523, 127
      %v2534 = vpop.permute.xlu0 %2533
      %2535 = vrot.lane.b32.xlu0 %v2524, 127
      %v2536 = vpop.permute.xlu0 %2535
      %v2537 = vsel %vm2121, %v2530, %v2532
      %v2538 = vsel %vm2121, %v2532, %v2534
      %v2539 = vsel %vm2121, %v2534, %v2536
      %2543 = vst [vmem:[#allocation3 + $0x78] sm:$0xff] %v2537
      %2544 = vst [vmem:[#allocation3 + $0x80] sm:$0xff] %v2538
      %2545 = vst [vmem:[#allocation3 + $0x88] sm:$0xff] %v2539
      %v2546 = vld [vmem:[#allocation2 + $0x8] sm:$0xff]
      %v2547 = vld [vmem:[#allocation2 + $0x10] sm:$0xff]
      %v2548 = vld [vmem:[#allocation2 + $0x18] sm:$0xff]
      %v2549 = vld [vmem:[#allocation2 + $0x20] sm:$0xff]
      %2554 = vrot.lane.b32.xlu0 %v2546, 111
      %v2555 = vpop.permute.xlu0 %2554
      %2556 = vrot.lane.b32.xlu0 %v2547, 111
      %v2557 = vpop.permute.xlu0 %2556
      %2558 = vrot.lane.b32.xlu0 %v2548, 111
      %v2559 = vpop.permute.xlu0 %2558
      %2560 = vrot.lane.b32.xlu0 %v2549, 111
      %v2561 = vpop.permute.xlu0 %2560
      %v2562 = vsel %vm2147, %v2555, %v2557
      %v2563 = vsel %vm2147, %v2557, %v2559
      %v2564 = vsel %vm2147, %v2559, %v2561
      %2568 = vst [vmem:[#allocation3 + $0x90] sm:$0xff] %v2562
      %2569 = vst [vmem:[#allocation3 + $0x98] sm:$0xff] %v2563
      %2570 = vst [vmem:[#allocation3 + $0xa0] sm:$0xff] %v2564
      %v2571 = vld [vmem:[#allocation2 + $0x8] sm:$0xff]
      %v2572 = vld [vmem:[#allocation2 + $0x10] sm:$0xff]
      %v2573 = vld [vmem:[#allocation2 + $0x18] sm:$0xff]
      %v2574 = vld [vmem:[#allocation2 + $0x20] sm:$0xff]
      %2579 = vrot.lane.b32.xlu0 %v2571, 110
      %v2580 = vpop.permute.xlu0 %2579
      %2581 = vrot.lane.b32.xlu0 %v2572, 110
      %v2582 = vpop.permute.xlu0 %2581
      %2583 = vrot.lane.b32.xlu0 %v2573, 110
      %v2584 = vpop.permute.xlu0 %2583
      %2585 = vrot.lane.b32.xlu0 %v2574, 110
      %v2586 = vpop.permute.xlu0 %2585
      %v2587 = vsel %vm2173, %v2580, %v2582
      %v2588 = vsel %vm2173, %v2582, %v2584
      %v2589 = vsel %vm2173, %v2584, %v2586
      %2593 = vst [vmem:[#allocation3 + $0xa8] sm:$0xff] %v2587
      %2594 = vst [vmem:[#allocation3 + $0xb0] sm:$0xff] %v2588
      %2595 = vst [vmem:[#allocation3 + $0xb8] sm:$0xff] %v2589
      %v2596 = vld [vmem:[#allocation2 + $0x8] sm:$0xff]
      %v2597 = vld [vmem:[#allocation2 + $0x10] sm:$0xff]
      %v2598 = vld [vmem:[#allocation2 + $0x18] sm:$0xff]
      %v2599 = vld [vmem:[#allocation2 + $0x20] sm:$0xff]
      %2604 = vrot.lane.b32.xlu0 %v2596, 109
      %v2605 = vpop.permute.xlu0 %2604
      %2606 = vrot.lane.b32.xlu0 %v2597, 109
      %v2607 = vpop.permute.xlu0 %2606
      %2608 = vrot.lane.b32.xlu0 %v2598, 109
      %v2609 = vpop.permute.xlu0 %2608
      %2610 = vrot.lane.b32.xlu0 %v2599, 109
      %v2611 = vpop.permute.xlu0 %2610
      %v2612 = vsel %vm2199, %v2605, %v2607
      %v2613 = vsel %vm2199, %v2607, %v2609
      %v2614 = vsel %vm2199, %v2609, %v2611
      %2618 = vst [vmem:[#allocation3 + $0xc0] sm:$0xff] %v2612
      %2619 = vst [vmem:[#allocation3 + $0xc8] sm:$0xff] %v2613
      %2620 = vst [vmem:[#allocation3 + $0xd0] sm:$0xff] %v2614
      %v2621 = vld [vmem:[%s20] sm:$0xff]
      %v2622 = vld [vmem:[#allocation3] sm:$0xff]
      %v2623 = vld [vmem:[#allocation3 + $0x8] sm:$0xff]
      %v2624 = vld [vmem:[#allocation3 + $0x10] sm:$0xff]
      %v2625 = vld [vmem:[#allocation3 + $0x18] sm:$0xff]
      %v2626 = vld [vmem:[#allocation3 + $0x20] sm:$0xff]
      %v2627 = vld [vmem:[#allocation3 + $0x28] sm:$0xff]
      %v2628 = vld [vmem:[#allocation3 + $0x30] sm:$0xff]
      %v2629 = vld [vmem:[#allocation3 + $0x38] sm:$0xff]
      %v2630 = vld [vmem:[#allocation3 + $0x40] sm:$0xff]
      %v2631 = vld [vmem:[#allocation3 + $0x48] sm:$0xff]
      %v2632 = vld [vmem:[#allocation3 + $0x50] sm:$0xff]
      %v2633 = vld [vmem:[#allocation3 + $0x58] sm:$0xff]
      %v2634 = vld [vmem:[#allocation3 + $0x60] sm:$0xff]
      %v2635 = vld [vmem:[#allocation3 + $0x68] sm:$0xff]
      %v2636 = vld [vmem:[#allocation3 + $0x70] sm:$0xff]
      %v2637 = vld [vmem:[#allocation3 + $0x78] sm:$0xff]
      %v2638 = vld [vmem:[#allocation3 + $0x80] sm:$0xff]
      %v2639 = vld [vmem:[#allocation3 + $0x88] sm:$0xff]
      %v2640 = vld [vmem:[#allocation3 + $0x90] sm:$0xff]
      %v2641 = vld [vmem:[#allocation3 + $0x98] sm:$0xff]
      %v2642 = vld [vmem:[#allocation3 + $0xa0] sm:$0xff]
      %v2643 = vld [vmem:[#allocation3 + $0xa8] sm:$0xff]
      %v2644 = vld [vmem:[#allocation3 + $0xb0] sm:$0xff]
      %v2645 = vld [vmem:[#allocation3 + $0xb8] sm:$0xff]
      %v2646 = vld [vmem:[#allocation3 + $0xc0] sm:$0xff]
      %v2647 = vld [vmem:[#allocation3 + $0xc8] sm:$0xff]
      %v2648 = vld [vmem:[#allocation3 + $0xd0] sm:$0xff]
      %v2649 = vld [vmem:[%s19] sm:$0xff]
      %2651 = vset.pattern.permute.xlu0 0
      %2652 = vperm.xlu0 %2651, %v2649
      %v2653 = vpop.permute.xlu0 %2652
      %v2656 = vsel %vm2243, %v2621, 0
      %2658 = vmatprep.subr.mxu0 %v2623
      %2659 = vmatpush1.msra.mxu0 %v2622
      %2660 = vmatprep.subr.mxu0 %v2626
      %2661 = vmatpush1.msra.mxu0 %v2625
      %2662 = vmatprep.subr.mxu0 %v2629
      %2663 = vmatpush1.msra.mxu0 %v2628
      %2664 = vmatprep.subr.mxu0 %v2632
      %2665 = vmatpush1.msra.mxu0 %v2631
      %2666 = vmatprep.subr.mxu0 %v2635
      %2667 = vmatpush1.msra.mxu0 %v2634
      %2668 = vmatprep.subr.mxu0 %v2638
      %2669 = vmatpush1.msra.mxu0 %v2637
      %2670 = vmatprep.subr.mxu0 %v2641
      %2671 = vmatpush1.msra.mxu0 %v2640
      %2672 = vmatprep.subr.mxu0 %v2644
      %2673 = vmatpush1.msra.mxu0 %v2643
      %2674 = vmatprep.subr.mxu0 %v2647
      %2675 = vmatpush1.msra.mxu0 %v2646
      %2676 = vmatprep.subr.mxu0 0.0
      %2677 = vmatpush1.msra.mxu0 0.0
      %2678 = vmatprep.subr.mxu0 0.0
      %2679 = vmatpush1.msra.mxu0 0.0
      %2680 = vmatprep.subr.mxu0 0.0
      %2681 = vmatpush1.msra.mxu0 0.0
      %2682 = vmatprep.subr.mxu0 0.0
      %2683 = vmatpush1.msra.mxu0 0.0
      %2684 = vmatprep.subr.mxu0 0.0
      %2685 = vmatpush1.msra.mxu0 0.0
      %2686 = vmatprep.subr.mxu0 0.0
      %2687 = vmatpush1.msra.mxu0 0.0
      %2688 = vmatprep.subr.mxu0 0.0
      %2689 = vmatpush1.msra.mxu0 0.0
      %2690 = vmatprep.subr.mxu0 0.0
      %2691 = vmatpush1.msra.mxu0 0.0
      %2692 = vmatprep.subr.mxu0 0.0
      %2693 = vmatpush1.msra.mxu0 0.0
      %2694 = vmatprep.subr.mxu0 0.0
      %2695 = vmatpush1.msra.mxu0 0.0
      %2696 = vmatprep.subr.mxu0 0.0
      %2697 = vmatpush1.msra.mxu0 0.0
      %2698 = vmatprep.subr.mxu0 0.0
      %2699 = vmatpush1.msra.mxu0 0.0
      %2700 = vmatprep.subr.mxu0 0.0
      %2701 = vmatpush1.msra.mxu0 0.0
      %2702 = vmatprep.subr.mxu0 0.0
      %2703 = vmatpush1.msra.mxu0 0.0
      %2704 = vmatprep.subr.mxu0 0.0
      %2705 = vmatpush1.msra.mxu0 0.0
      %2706 = vmatprep.subr.mxu0 0.0
      %2707 = vmatpush1.msra.mxu0 0.0
      %2708 = vmatprep.subr.mxu0 0.0
      %2709 = vmatpush1.msra.mxu0 0.0
      %2710 = vmatprep.subr.mxu0 0.0
      %2711 = vmatpush1.msra.mxu0 0.0
      %2712 = vmatprep.subr.mxu0 0.0
      %2713 = vmatpush1.msra.mxu0 0.0
      %2714 = vmatprep.subr.mxu0 0.0
      %2715 = vmatpush1.msra.mxu0 0.0
      %2716 = vmatprep.subr.mxu0 0.0
      %2717 = vmatpush1.msra.mxu0 0.0
      %2718 = vmatprep.subr.mxu0 0.0
      %2719 = vmatpush1.msra.mxu0 0.0
      %2720 = vmatprep.subr.mxu0 0.0
      %2721 = vmatpush1.msra.mxu0 0.0
      %2722 = vmatprep.mubr.f32.mxu0 0.0
      %2723 = vmatmul.mubr.f32.gmra.mrb[0].mxu0 %v2656
      %v2724 = vpop.f32.mrb[0].mxu0
      %v2725 = vadd.f32 %v2653, %v2724
      %v2726 = vpop.f32.mrb[0].mxu0
      %v2727 = vadd.f32 %v2653, %v2726
      %2728 = vdwg.mxu0
      %2729 = vmatprep.subr.mxu0 0.0
      %2730 = vmatpush1.msra.mxu0 %v2624
      %2731 = vmatprep.subr.mxu0 0.0
      %2732 = vmatpush1.msra.mxu0 %v2627
      %2733 = vmatprep.subr.mxu0 0.0
      %2734 = vmatpush1.msra.mxu0 %v2630
      %2735 = vmatprep.subr.mxu0 0.0
      %2736 = vmatpush1.msra.mxu0 %v2633
      %2737 = vmatprep.subr.mxu0 0.0
      %2738 = vmatpush1.msra.mxu0 %v2636
      %2739 = vmatprep.subr.mxu0 0.0
      %2740 = vmatpush1.msra.mxu0 %v2639
      %2741 = vmatprep.subr.mxu0 0.0
      %2742 = vmatpush1.msra.mxu0 %v2642
      %2743 = vmatprep.subr.mxu0 0.0
      %2744 = vmatpush1.msra.mxu0 %v2645
      %2745 = vmatprep.subr.mxu0 0.0
      %2746 = vmatpush1.msra.mxu0 %v2648
      %2747 = vmatprep.subr.mxu0 0.0
      %2748 = vmatpush1.msra.mxu0 0.0
      %2749 = vmatprep.subr.mxu0 0.0
      %2750 = vmatpush1.msra.mxu0 0.0
      %2751 = vmatprep.subr.mxu0 0.0
      %2752 = vmatpush1.msra.mxu0 0.0
      %2753 = vmatprep.subr.mxu0 0.0
      %2754 = vmatpush1.msra.mxu0 0.0
      %2755 = vmatprep.subr.mxu0 0.0
      %2756 = vmatpush1.msra.mxu0 0.0
      %2757 = vmatprep.subr.mxu0 0.0
      %2758 = vmatpush1.msra.mxu0 0.0
      %2759 = vmatprep.subr.mxu0 0.0
      %2760 = vmatpush1.msra.mxu0 0.0
      %2761 = vmatprep.subr.mxu0 0.0
      %2762 = vmatpush1.msra.mxu0 0.0
      %2763 = vmatprep.subr.mxu0 0.0
      %2764 = vmatpush1.msra.mxu0 0.0
      %2765 = vmatprep.subr.mxu0 0.0
      %2766 = vmatpush1.msra.mxu0 0.0
      %2767 = vmatprep.subr.mxu0 0.0
      %2768 = vmatpush1.msra.mxu0 0.0
      %2769 = vmatprep.subr.mxu0 0.0
      %2770 = vmatpush1.msra.mxu0 0.0
      %2771 = vmatprep.subr.mxu0 0.0
      %2772 = vmatpush1.msra.mxu0 0.0
      %2773 = vmatprep.subr.mxu0 0.0
      %2774 = vmatpush1.msra.mxu0 0.0
      %2775 = vmatprep.subr.mxu0 0.0
      %2776 = vmatpush1.msra.mxu0 0.0
      %2777 = vmatprep.subr.mxu0 0.0
      %2778 = vmatpush1.msra.mxu0 0.0
      %2779 = vmatprep.subr.mxu0 0.0
      %2780 = vmatpush1.msra.mxu0 0.0
      %2781 = vmatprep.subr.mxu0 0.0
      %2782 = vmatpush1.msra.mxu0 0.0
      %2783 = vmatprep.subr.mxu0 0.0
      %2784 = vmatpush1.msra.mxu0 0.0
      %2785 = vmatprep.subr.mxu0 0.0
      %2786 = vmatpush1.msra.mxu0 0.0
      %2787 = vmatprep.subr.mxu0 0.0
      %2788 = vmatpush1.msra.mxu0 0.0
      %2789 = vmatprep.subr.mxu0 0.0
      %2790 = vmatpush1.msra.mxu0 0.0
      %2791 = vmatprep.subr.mxu0 0.0
      %2792 = vmatpush1.msra.mxu0 0.0
      %2793 = vmatprep.mubr.f32.mxu0 0.0
      %2794 = vmatmul.mubr.f32.gmra.mrb[0].mxu0 %v2656
      %v2795 = vpop.f32.mrb[0].mxu0
      %v2796 = vadd.f32 %v2653, %v2795
      %v2797 = vpop.f32.mrb[0].mxu0
      %2798 = vdwg.mxu0
      %v2799 = vxor.u32 %v2725, 2147483648
      %v2800 = vxor.u32 %v2727, 2147483648
      %v2801 = vxor.u32 %v2796, 2147483648
      %v2802 = vmul.f32 %v2799, 1.442695
      %v2803 = vpow.pop %v2802
      %v2804 = vmul.f32 %v2800, 1.442695
      %v2805 = vpow.pop %v2804
      %v2806 = vmul.f32 %v2801, 1.442695
      %v2807 = vpow.pop %v2806
      %v2808 = vadd.f32 %v2803, 1.0
      %v2809 = vadd.f32 %v2805, 1.0
      %v2810 = vadd.f32 %v2807, 1.0
      %v2811 = vrcp.pop %v2808
      %v2812 = vmul.f32 1.0, %v2811
      %v2813 = vrcp.pop %v2809
      %v2814 = vmul.f32 1.0, %v2813
      %v2815 = vrcp.pop %v2810
      %v2816 = vmul.f32 1.0, %v2815
      %v2817 = vmul.f32 %v2725, %v2812
      %v2818 = vmul.f32 %v2727, %v2814
      %v2819 = vmul.f32 %v2796, %v2816
      %v2820 = vadd.f32 %v2817, %v1798
      %v2821 = vadd.f32 %v2818, %v1799
      %v2822 = vadd.f32 %v2819, %v1800
      %v2823 = vmul.f32 %v2820, %v1977
      %v2824 = vmul.f32 %v2821, %v1981
      %v2825 = vmul.f32 %v2822, %v1985
      %2826 = vst [vmem:[#allocation2 + $0x8] sm:$0xff] %v2823
      %2827 = vst [vmem:[#allocation2 + $0x10] sm:$0xff] %v2824
      %2828 = vst [vmem:[#allocation2 + $0x18] sm:$0xff] %v2825
      %v2829 = vld [vmem:[#allocation2] sm:$0xff]
      %v2830 = vld [vmem:[#allocation2 + $0x8] sm:$0xff]
      %v2831 = vld [vmem:[#allocation2 + $0x10] sm:$0xff]
      %v2832 = vld [vmem:[#allocation2 + $0x18] sm:$0xff]
      %2837 = vrot.lane.b32.xlu0 %v2829, 19
      %v2838 = vpop.permute.xlu0 %2837
      %2839 = vrot.lane.b32.xlu0 %v2830, 19
      %v2840 = vpop.permute.xlu0 %2839
      %2841 = vrot.lane.b32.xlu0 %v2831, 19
      %v2842 = vpop.permute.xlu0 %2841
      %2843 = vrot.lane.b32.xlu0 %v2832, 19
      %v2844 = vpop.permute.xlu0 %2843
      %v2845 = vsel %vm2011, %v2838, %v2840
      %v2846 = vsel %vm2011, %v2840, %v2842
      %v2847 = vsel %vm2011, %v2842, %v2844
      %2851 = vst [vmem:[#allocation3] sm:$0xff] %v2845
      %2852 = vst [vmem:[#allocation3 + $0x8] sm:$0xff] %v2846
      %2853 = vst [vmem:[#allocation3 + $0x10] sm:$0xff] %v2847
      %v2854 = vld [vmem:[#allocation2] sm:$0xff]
      %v2855 = vld [vmem:[#allocation2 + $0x8] sm:$0xff]
      %v2856 = vld [vmem:[#allocation2 + $0x10] sm:$0xff]
      %v2857 = vld [vmem:[#allocation2 + $0x18] sm:$0xff]
      %2862 = vrot.lane.b32.xlu0 %v2854, 18
      %v2863 = vpop.permute.xlu0 %2862
      %2864 = vrot.lane.b32.xlu0 %v2855, 18
      %v2865 = vpop.permute.xlu0 %2864
      %2866 = vrot.lane.b32.xlu0 %v2856, 18
      %v2867 = vpop.permute.xlu0 %2866
      %2868 = vrot.lane.b32.xlu0 %v2857, 18
      %v2869 = vpop.permute.xlu0 %2868
      %v2870 = vsel %vm2037, %v2863, %v2865
      %v2871 = vsel %vm2037, %v2865, %v2867
      %v2872 = vsel %vm2037, %v2867, %v2869
      %2876 = vst [vmem:[#allocation3 + $0x18] sm:$0xff] %v2870
      %2877 = vst [vmem:[#allocation3 + $0x20] sm:$0xff] %v2871
      %2878 = vst [vmem:[#allocation3 + $0x28] sm:$0xff] %v2872
      %v2879 = vld [vmem:[#allocation2] sm:$0xff]
      %v2880 = vld [vmem:[#allocation2 + $0x8] sm:$0xff]
      %v2881 = vld [vmem:[#allocation2 + $0x10] sm:$0xff]
      %v2882 = vld [vmem:[#allocation2 + $0x18] sm:$0xff]
      %2887 = vrot.lane.b32.xlu0 %v2879, 17
      %v2888 = vpop.permute.xlu0 %2887
      %2889 = vrot.lane.b32.xlu0 %v2880, 17
      %v2890 = vpop.permute.xlu0 %2889
      %2891 = vrot.lane.b32.xlu0 %v2881, 17
      %v2892 = vpop.permute.xlu0 %2891
      %2893 = vrot.lane.b32.xlu0 %v2882, 17
      %v2894 = vpop.permute.xlu0 %2893
      %v2895 = vsel %vm2063, %v2888, %v2890
      %v2896 = vsel %vm2063, %v2890, %v2892
      %v2897 = vsel %vm2063, %v2892, %v2894
      %2901 = vst [vmem:[#allocation3 + $0x30] sm:$0xff] %v2895
      %2902 = vst [vmem:[#allocation3 + $0x38] sm:$0xff] %v2896
      %2903 = vst [vmem:[#allocation3 + $0x40] sm:$0xff] %v2897
      %v2904 = vld [vmem:[#allocation2] sm:$0xff]
      %v2905 = vld [vmem:[#allocation2 + $0x8] sm:$0xff]
      %v2906 = vld [vmem:[#allocation2 + $0x10] sm:$0xff]
      %v2907 = vld [vmem:[#allocation2 + $0x18] sm:$0xff]
      %2912 = vrot.lane.b32.xlu0 %v2904, 1
      %v2913 = vpop.permute.xlu0 %2912
      %2914 = vrot.lane.b32.xlu0 %v2905, 1
      %v2915 = vpop.permute.xlu0 %2914
      %2916 = vrot.lane.b32.xlu0 %v2906, 1
      %v2917 = vpop.permute.xlu0 %2916
      %2918 = vrot.lane.b32.xlu0 %v2907, 1
      %v2919 = vpop.permute.xlu0 %2918
      %v2920 = vsel %vm2089, %v2913, %v2915
      %v2921 = vsel %vm2089, %v2915, %v2917
      %v2922 = vsel %vm2089, %v2917, %v2919
      %2926 = vst [vmem:[#allocation3 + $0x48] sm:$0xff] %v2920
      %2927 = vst [vmem:[#allocation3 + $0x50] sm:$0xff] %v2921
      %2928 = vst [vmem:[#allocation3 + $0x58] sm:$0xff] %v2922
      %v2929 = vld [vmem:[#allocation2 + $0x8] sm:$0xff]
      %v2930 = vld [vmem:[#allocation2 + $0x10] sm:$0xff]
      %v2931 = vld [vmem:[#allocation2 + $0x18] sm:$0xff]
      %2932 = vst [vmem:[#allocation3 + $0x60] sm:$0xff] %v2929
      %2933 = vst [vmem:[#allocation3 + $0x68] sm:$0xff] %v2930
      %2934 = vst [vmem:[#allocation3 + $0x70] sm:$0xff] %v2931
      %v2935 = vld [vmem:[#allocation2 + $0x8] sm:$0xff]
      %v2936 = vld [vmem:[#allocation2 + $0x10] sm:$0xff]
      %v2937 = vld [vmem:[#allocation2 + $0x18] sm:$0xff]
      %v2938 = vld [vmem:[#allocation2 + $0x20] sm:$0xff]
      %2943 = vrot.lane.b32.xlu0 %v2935, 127
      %v2944 = vpop.permute.xlu0 %2943
      %2945 = vrot.lane.b32.xlu0 %v2936, 127
      %v2946 = vpop.permute.xlu0 %2945
      %2947 = vrot.lane.b32.xlu0 %v2937, 127
      %v2948 = vpop.permute.xlu0 %2947
      %2949 = vrot.lane.b32.xlu0 %v2938, 127
      %v2950 = vpop.permute.xlu0 %2949
      %v2951 = vsel %vm2121, %v2944, %v2946
      %v2952 = vsel %vm2121, %v2946, %v2948
      %v2953 = vsel %vm2121, %v2948, %v2950
      %2957 = vst [vmem:[#allocation3 + $0x78] sm:$0xff] %v2951
      %2958 = vst [vmem:[#allocation3 + $0x80] sm:$0xff] %v2952
      %2959 = vst [vmem:[#allocation3 + $0x88] sm:$0xff] %v2953
      %v2960 = vld [vmem:[#allocation2 + $0x8] sm:$0xff]
      %v2961 = vld [vmem:[#allocation2 + $0x10] sm:$0xff]
      %v2962 = vld [vmem:[#allocation2 + $0x18] sm:$0xff]
      %v2963 = vld [vmem:[#allocation2 + $0x20] sm:$0xff]
      %2968 = vrot.lane.b32.xlu0 %v2960, 111
      %v2969 = vpop.permute.xlu0 %2968
      %2970 = vrot.lane.b32.xlu0 %v2961, 111
      %v2971 = vpop.permute.xlu0 %2970
      %2972 = vrot.lane.b32.xlu0 %v2962, 111
      %v2973 = vpop.permute.xlu0 %2972
      %2974 = vrot.lane.b32.xlu0 %v2963, 111
      %v2975 = vpop.permute.xlu0 %2974
      %v2976 = vsel %vm2147, %v2969, %v2971
      %v2977 = vsel %vm2147, %v2971, %v2973
      %v2978 = vsel %vm2147, %v2973, %v2975
      %2982 = vst [vmem:[#allocation3 + $0x90] sm:$0xff] %v2976
      %2983 = vst [vmem:[#allocation3 + $0x98] sm:$0xff] %v2977
      %2984 = vst [vmem:[#allocation3 + $0xa0] sm:$0xff] %v2978
      %v2985 = vld [vmem:[#allocation2 + $0x8] sm:$0xff]
      %v2986 = vld [vmem:[#allocation2 + $0x10] sm:$0xff]
      %v2987 = vld [vmem:[#allocation2 + $0x18] sm:$0xff]
      %v2988 = vld [vmem:[#allocation2 + $0x20] sm:$0xff]
      %2993 = vrot.lane.b32.xlu0 %v2985, 110
      %v2994 = vpop.permute.xlu0 %2993
      %2995 = vrot.lane.b32.xlu0 %v2986, 110
      %v2996 = vpop.permute.xlu0 %2995
      %2997 = vrot.lane.b32.xlu0 %v2987, 110
      %v2998 = vpop.permute.xlu0 %2997
      %2999 = vrot.lane.b32.xlu0 %v2988, 110
      %v3000 = vpop.permute.xlu0 %2999
      %v3001 = vsel %vm2173, %v2994, %v2996
      %v3002 = vsel %vm2173, %v2996, %v2998
      %v3003 = vsel %vm2173, %v2998, %v3000
      %3007 = vst [vmem:[#allocation3 + $0xa8] sm:$0xff] %v3001
      %3008 = vst [vmem:[#allocation3 + $0xb0] sm:$0xff] %v3002
      %3009 = vst [vmem:[#allocation3 + $0xb8] sm:$0xff] %v3003
      %v3010 = vld [vmem:[#allocation2 + $0x8] sm:$0xff]
      %v3011 = vld [vmem:[#allocation2 + $0x10] sm:$0xff]
      %v3012 = vld [vmem:[#allocation2 + $0x18] sm:$0xff]
      %v3013 = vld [vmem:[#allocation2 + $0x20] sm:$0xff]
      %3018 = vrot.lane.b32.xlu0 %v3010, 109
      %v3019 = vpop.permute.xlu0 %3018
      %3020 = vrot.lane.b32.xlu0 %v3011, 109
      %v3021 = vpop.permute.xlu0 %3020
      %3022 = vrot.lane.b32.xlu0 %v3012, 109
      %v3023 = vpop.permute.xlu0 %3022
      %3024 = vrot.lane.b32.xlu0 %v3013, 109
      %v3025 = vpop.permute.xlu0 %3024
      %v3026 = vsel %vm2199, %v3019, %v3021
      %v3027 = vsel %vm2199, %v3021, %v3023
      %v3028 = vsel %vm2199, %v3023, %v3025
      %3032 = vst [vmem:[#allocation3 + $0xc0] sm:$0xff] %v3026
      %3033 = vst [vmem:[#allocation3 + $0xc8] sm:$0xff] %v3027
      %3034 = vst [vmem:[#allocation3 + $0xd0] sm:$0xff] %v3028
      %v3035 = vld [vmem:[%s22] sm:$0xff]
      %v3036 = vld [vmem:[#allocation3] sm:$0xff]
      %v3037 = vld [vmem:[#allocation3 + $0x8] sm:$0xff]
      %v3038 = vld [vmem:[#allocation3 + $0x10] sm:$0xff]
      %v3039 = vld [vmem:[#allocation3 + $0x18] sm:$0xff]
      %v3040 = vld [vmem:[#allocation3 + $0x20] sm:$0xff]
      %v3041 = vld [vmem:[#allocation3 + $0x28] sm:$0xff]
      %v3042 = vld [vmem:[#allocation3 + $0x30] sm:$0xff]
      %v3043 = vld [vmem:[#allocation3 + $0x38] sm:$0xff]
      %v3044 = vld [vmem:[#allocation3 + $0x40] sm:$0xff]
      %v3045 = vld [vmem:[#allocation3 + $0x48] sm:$0xff]
      %v3046 = vld [vmem:[#allocation3 + $0x50] sm:$0xff]
      %v3047 = vld [vmem:[#allocation3 + $0x58] sm:$0xff]
      %v3048 = vld [vmem:[#allocation3 + $0x60] sm:$0xff]
      %v3049 = vld [vmem:[#allocation3 + $0x68] sm:$0xff]
      %v3050 = vld [vmem:[#allocation3 + $0x70] sm:$0xff]
      %v3051 = vld [vmem:[#allocation3 + $0x78] sm:$0xff]
      %v3052 = vld [vmem:[#allocation3 + $0x80] sm:$0xff]
      %v3053 = vld [vmem:[#allocation3 + $0x88] sm:$0xff]
      %v3054 = vld [vmem:[#allocation3 + $0x90] sm:$0xff]
      %v3055 = vld [vmem:[#allocation3 + $0x98] sm:$0xff]
      %v3056 = vld [vmem:[#allocation3 + $0xa0] sm:$0xff]
      %v3057 = vld [vmem:[#allocation3 + $0xa8] sm:$0xff]
      %v3058 = vld [vmem:[#allocation3 + $0xb0] sm:$0xff]
      %v3059 = vld [vmem:[#allocation3 + $0xb8] sm:$0xff]
      %v3060 = vld [vmem:[#allocation3 + $0xc0] sm:$0xff]
      %v3061 = vld [vmem:[#allocation3 + $0xc8] sm:$0xff]
      %v3062 = vld [vmem:[#allocation3 + $0xd0] sm:$0xff]
      %v3063 = vld [vmem:[%s21] sm:$0xff]
      %3065 = vset.pattern.permute.xlu0 0
      %3066 = vperm.xlu0 %3065, %v3063
      %v3067 = vpop.permute.xlu0 %3066
      %v3070 = vsel %vm2243, %v3035, 0
      %3072 = vmatprep.subr.mxu0 %v3037
      %3073 = vmatpush1.msra.mxu0 %v3036
      %3074 = vmatprep.subr.mxu0 %v3040
      %3075 = vmatpush1.msra.mxu0 %v3039
      %3076 = vmatprep.subr.mxu0 %v3043
      %3077 = vmatpush1.msra.mxu0 %v3042
      %3078 = vmatprep.subr.mxu0 %v3046
      %3079 = vmatpush1.msra.mxu0 %v3045
      %3080 = vmatprep.subr.mxu0 %v3049
      %3081 = vmatpush1.msra.mxu0 %v3048
      %3082 = vmatprep.subr.mxu0 %v3052
      %3083 = vmatpush1.msra.mxu0 %v3051
      %3084 = vmatprep.subr.mxu0 %v3055
      %3085 = vmatpush1.msra.mxu0 %v3054
      %3086 = vmatprep.subr.mxu0 %v3058
      %3087 = vmatpush1.msra.mxu0 %v3057
      %3088 = vmatprep.subr.mxu0 %v3061
      %3089 = vmatpush1.msra.mxu0 %v3060
      %3090 = vmatprep.subr.mxu0 0.0
      %3091 = vmatpush1.msra.mxu0 0.0
      %3092 = vmatprep.subr.mxu0 0.0
      %3093 = vmatpush1.msra.mxu0 0.0
      %3094 = vmatprep.subr.mxu0 0.0
      %3095 = vmatpush1.msra.mxu0 0.0
      %3096 = vmatprep.subr.mxu0 0.0
      %3097 = vmatpush1.msra.mxu0 0.0
      %3098 = vmatprep.subr.mxu0 0.0
      %3099 = vmatpush1.msra.mxu0 0.0
      %3100 = vmatprep.subr.mxu0 0.0
      %3101 = vmatpush1.msra.mxu0 0.0
      %3102 = vmatprep.subr.mxu0 0.0
      %3103 = vmatpush1.msra.mxu0 0.0
      %3104 = vmatprep.subr.mxu0 0.0
      %3105 = vmatpush1.msra.mxu0 0.0
      %3106 = vmatprep.subr.mxu0 0.0
      %3107 = vmatpush1.msra.mxu0 0.0
      %3108 = vmatprep.subr.mxu0 0.0
      %3109 = vmatpush1.msra.mxu0 0.0
      %3110 = vmatprep.subr.mxu0 0.0
      %3111 = vmatpush1.msra.mxu0 0.0
      %3112 = vmatprep.subr.mxu0 0.0
      %3113 = vmatpush1.msra.mxu0 0.0
      %3114 = vmatprep.subr.mxu0 0.0
      %3115 = vmatpush1.msra.mxu0 0.0
      %3116 = vmatprep.subr.mxu0 0.0
      %3117 = vmatpush1.msra.mxu0 0.0
      %3118 = vmatprep.subr.mxu0 0.0
      %3119 = vmatpush1.msra.mxu0 0.0
      %3120 = vmatprep.subr.mxu0 0.0
      %3121 = vmatpush1.msra.mxu0 0.0
      %3122 = vmatprep.subr.mxu0 0.0
      %3123 = vmatpush1.msra.mxu0 0.0
      %3124 = vmatprep.subr.mxu0 0.0
      %3125 = vmatpush1.msra.mxu0 0.0
      %3126 = vmatprep.subr.mxu0 0.0
      %3127 = vmatpush1.msra.mxu0 0.0
      %3128 = vmatprep.subr.mxu0 0.0
      %3129 = vmatpush1.msra.mxu0 0.0
      %3130 = vmatprep.subr.mxu0 0.0
      %3131 = vmatpush1.msra.mxu0 0.0
      %3132 = vmatprep.subr.mxu0 0.0
      %3133 = vmatpush1.msra.mxu0 0.0
      %3134 = vmatprep.subr.mxu0 0.0
      %3135 = vmatpush1.msra.mxu0 0.0
      %3136 = vmatprep.mubr.f32.mxu0 0.0
      %3137 = vmatmul.mubr.f32.gmra.mrb[0].mxu0 %v3070
      %v3138 = vpop.f32.mrb[0].mxu0
      %v3139 = vadd.f32 %v3067, %v3138
      %v3140 = vpop.f32.mrb[0].mxu0
      %v3141 = vadd.f32 %v3067, %v3140
      %3142 = vdwg.mxu0
      %3143 = vmatprep.subr.mxu0 0.0
      %3144 = vmatpush1.msra.mxu0 %v3038
      %3145 = vmatprep.subr.mxu0 0.0
      %3146 = vmatpush1.msra.mxu0 %v3041
      %3147 = vmatprep.subr.mxu0 0.0
      %3148 = vmatpush1.msra.mxu0 %v3044
      %3149 = vmatprep.subr.mxu0 0.0
      %3150 = vmatpush1.msra.mxu0 %v3047
      %3151 = vmatprep.subr.mxu0 0.0
      %3152 = vmatpush1.msra.mxu0 %v3050
      %3153 = vmatprep.subr.mxu0 0.0
      %3154 = vmatpush1.msra.mxu0 %v3053
      %3155 = vmatprep.subr.mxu0 0.0
      %3156 = vmatpush1.msra.mxu0 %v3056
      %3157 = vmatprep.subr.mxu0 0.0
      %3158 = vmatpush1.msra.mxu0 %v3059
      %3159 = vmatprep.subr.mxu0 0.0
      %3160 = vmatpush1.msra.mxu0 %v3062
      %3161 = vmatprep.subr.mxu0 0.0
      %3162 = vmatpush1.msra.mxu0 0.0
      %3163 = vmatprep.subr.mxu0 0.0
      %3164 = vmatpush1.msra.mxu0 0.0
      %3165 = vmatprep.subr.mxu0 0.0
      %3166 = vmatpush1.msra.mxu0 0.0
      %3167 = vmatprep.subr.mxu0 0.0
      %3168 = vmatpush1.msra.mxu0 0.0
      %3169 = vmatprep.subr.mxu0 0.0
      %3170 = vmatpush1.msra.mxu0 0.0
      %3171 = vmatprep.subr.mxu0 0.0
      %3172 = vmatpush1.msra.mxu0 0.0
      %3173 = vmatprep.subr.mxu0 0.0
      %3174 = vmatpush1.msra.mxu0 0.0
      %3175 = vmatprep.subr.mxu0 0.0
      %3176 = vmatpush1.msra.mxu0 0.0
      %3177 = vmatprep.subr.mxu0 0.0
      %3178 = vmatpush1.msra.mxu0 0.0
      %3179 = vmatprep.subr.mxu0 0.0
      %3180 = vmatpush1.msra.mxu0 0.0
      %3181 = vmatprep.subr.mxu0 0.0
      %3182 = vmatpush1.msra.mxu0 0.0
      %3183 = vmatprep.subr.mxu0 0.0
      %3184 = vmatpush1.msra.mxu0 0.0
      %3185 = vmatprep.subr.mxu0 0.0
      %3186 = vmatpush1.msra.mxu0 0.0
      %3187 = vmatprep.subr.mxu0 0.0
      %3188 = vmatpush1.msra.mxu0 0.0
      %3189 = vmatprep.subr.mxu0 0.0
      %3190 = vmatpush1.msra.mxu0 0.0
      %3191 = vmatprep.subr.mxu0 0.0
      %3192 = vmatpush1.msra.mxu0 0.0
      %3193 = vmatprep.subr.mxu0 0.0
      %3194 = vmatpush1.msra.mxu0 0.0
      %3195 = vmatprep.subr.mxu0 0.0
      %3196 = vmatpush1.msra.mxu0 0.0
      %3197 = vmatprep.subr.mxu0 0.0
      %3198 = vmatpush1.msra.mxu0 0.0
      %3199 = vmatprep.subr.mxu0 0.0
      %3200 = vmatpush1.msra.mxu0 0.0
      %3201 = vmatprep.subr.mxu0 0.0
      %3202 = vmatpush1.msra.mxu0 0.0
      %3203 = vmatprep.subr.mxu0 0.0
      %3204 = vmatpush1.msra.mxu0 0.0
      %3205 = vmatprep.subr.mxu0 0.0
      %3206 = vmatpush1.msra.mxu0 0.0
      %3207 = vmatprep.mubr.f32.mxu0 0.0
      %3208 = vmatmul.mubr.f32.gmra.mrb[0].mxu0 %v3070
      %v3209 = vpop.f32.mrb[0].mxu0
      %v3210 = vadd.f32 %v3067, %v3209
      %v3211 = vpop.f32.mrb[0].mxu0
      %3212 = vdwg.mxu0
      %v3213 = vxor.u32 %v3139, 2147483648
      %v3214 = vxor.u32 %v3141, 2147483648
      %v3215 = vxor.u32 %v3210, 2147483648
      %v3216 = vmul.f32 %v3213, 1.442695
      %v3217 = vpow.pop %v3216
      %v3218 = vmul.f32 %v3214, 1.442695
      %v3219 = vpow.pop %v3218
      %v3220 = vmul.f32 %v3215, 1.442695
      %v3221 = vpow.pop %v3220
      %v3222 = vadd.f32 %v3217, 1.0
      %v3223 = vadd.f32 %v3219, 1.0
      %v3224 = vadd.f32 %v3221, 1.0
      %v3225 = vrcp.pop %v3222
      %v3226 = vmul.f32 1.0, %v3225
      %v3227 = vrcp.pop %v3223
      %v3228 = vmul.f32 1.0, %v3227
      %v3229 = vrcp.pop %v3224
      %v3230 = vmul.f32 1.0, %v3229
      %v3231 = vmul.f32 %v3139, %v3226
      %v3232 = vmul.f32 %v3141, %v3228
      %v3233 = vmul.f32 %v3210, %v3230
      %v3234 = vmul.f32 %v3231, %v1977
      %v3235 = vmul.f32 %v3232, %v1981
      %v3236 = vmul.f32 %v3233, %v1985
      %3237 = vst [vmem:[#allocation2 + $0x8] sm:$0xff] %v3234
      %3238 = vst [vmem:[#allocation2 + $0x10] sm:$0xff] %v3235
      %3239 = vst [vmem:[#allocation2 + $0x18] sm:$0xff] %v3236
      %v3240 = vld [vmem:[#allocation2] sm:$0xff]
      %v3241 = vld [vmem:[#allocation2 + $0x8] sm:$0xff]
      %v3242 = vld [vmem:[#allocation2 + $0x10] sm:$0xff]
      %v3243 = vld [vmem:[#allocation2 + $0x18] sm:$0xff]
      %3248 = vrot.lane.b32.xlu0 %v3240, 19
      %v3249 = vpop.permute.xlu0 %3248
      %3250 = vrot.lane.b32.xlu0 %v3241, 19
      %v3251 = vpop.permute.xlu0 %3250
      %3252 = vrot.lane.b32.xlu0 %v3242, 19
      %v3253 = vpop.permute.xlu0 %3252
      %3254 = vrot.lane.b32.xlu0 %v3243, 19
      %v3255 = vpop.permute.xlu0 %3254
      %v3256 = vsel %vm2011, %v3249, %v3251
      %v3257 = vsel %vm2011, %v3251, %v3253
      %v3258 = vsel %vm2011, %v3253, %v3255
      %3262 = vst [vmem:[#allocation3] sm:$0xff] %v3256
      %3263 = vst [vmem:[#allocation3 + $0x8] sm:$0xff] %v3257
      %3264 = vst [vmem:[#allocation3 + $0x10] sm:$0xff] %v3258
      %v3265 = vld [vmem:[#allocation2] sm:$0xff]
      %v3266 = vld [vmem:[#allocation2 + $0x8] sm:$0xff]
      %v3267 = vld [vmem:[#allocation2 + $0x10] sm:$0xff]
      %v3268 = vld [vmem:[#allocation2 + $0x18] sm:$0xff]
      %3273 = vrot.lane.b32.xlu0 %v3265, 18
      %v3274 = vpop.permute.xlu0 %3273
      %3275 = vrot.lane.b32.xlu0 %v3266, 18
      %v3276 = vpop.permute.xlu0 %3275
      %3277 = vrot.lane.b32.xlu0 %v3267, 18
      %v3278 = vpop.permute.xlu0 %3277
      %3279 = vrot.lane.b32.xlu0 %v3268, 18
      %v3280 = vpop.permute.xlu0 %3279
      %v3281 = vsel %vm2037, %v3274, %v3276
      %v3282 = vsel %vm2037, %v3276, %v3278
      %v3283 = vsel %vm2037, %v3278, %v3280
      %3287 = vst [vmem:[#allocation3 + $0x18] sm:$0xff] %v3281
      %3288 = vst [vmem:[#allocation3 + $0x20] sm:$0xff] %v3282
      %3289 = vst [vmem:[#allocation3 + $0x28] sm:$0xff] %v3283
      %v3290 = vld [vmem:[#allocation2] sm:$0xff]
      %v3291 = vld [vmem:[#allocation2 + $0x8] sm:$0xff]
      %v3292 = vld [vmem:[#allocation2 + $0x10] sm:$0xff]
      %v3293 = vld [vmem:[#allocation2 + $0x18] sm:$0xff]
      %3298 = vrot.lane.b32.xlu0 %v3290, 17
      %v3299 = vpop.permute.xlu0 %3298
      %3300 = vrot.lane.b32.xlu0 %v3291, 17
      %v3301 = vpop.permute.xlu0 %3300
      %3302 = vrot.lane.b32.xlu0 %v3292, 17
      %v3303 = vpop.permute.xlu0 %3302
      %3304 = vrot.lane.b32.xlu0 %v3293, 17
      %v3305 = vpop.permute.xlu0 %3304
      %v3306 = vsel %vm2063, %v3299, %v3301
      %v3307 = vsel %vm2063, %v3301, %v3303
      %v3308 = vsel %vm2063, %v3303, %v3305
      %3312 = vst [vmem:[#allocation3 + $0x30] sm:$0xff] %v3306
      %3313 = vst [vmem:[#allocation3 + $0x38] sm:$0xff] %v3307
      %3314 = vst [vmem:[#allocation3 + $0x40] sm:$0xff] %v3308
      %v3315 = vld [vmem:[#allocation2] sm:$0xff]
      %v3316 = vld [vmem:[#allocation2 + $0x8] sm:$0xff]
      %v3317 = vld [vmem:[#allocation2 + $0x10] sm:$0xff]
      %v3318 = vld [vmem:[#allocation2 + $0x18] sm:$0xff]
      %3323 = vrot.lane.b32.xlu0 %v3315, 1
      %v3324 = vpop.permute.xlu0 %3323
      %3325 = vrot.lane.b32.xlu0 %v3316, 1
      %v3326 = vpop.permute.xlu0 %3325
      %3327 = vrot.lane.b32.xlu0 %v3317, 1
      %v3328 = vpop.permute.xlu0 %3327
      %3329 = vrot.lane.b32.xlu0 %v3318, 1
      %v3330 = vpop.permute.xlu0 %3329
      %v3331 = vsel %vm2089, %v3324, %v3326
      %v3332 = vsel %vm2089, %v3326, %v3328
      %v3333 = vsel %vm2089, %v3328, %v3330
      %3337 = vst [vmem:[#allocation3 + $0x48] sm:$0xff] %v3331
      %3338 = vst [vmem:[#allocation3 + $0x50] sm:$0xff] %v3332
      %3339 = vst [vmem:[#allocation3 + $0x58] sm:$0xff] %v3333
      %v3340 = vld [vmem:[#allocation2 + $0x8] sm:$0xff]
      %v3341 = vld [vmem:[#allocation2 + $0x10] sm:$0xff]
      %v3342 = vld [vmem:[#allocation2 + $0x18] sm:$0xff]
      %3343 = vst [vmem:[#allocation3 + $0x60] sm:$0xff] %v3340
      %3344 = vst [vmem:[#allocation3 + $0x68] sm:$0xff] %v3341
      %3345 = vst [vmem:[#allocation3 + $0x70] sm:$0xff] %v3342
      %v3346 = vld [vmem:[#allocation2 + $0x8] sm:$0xff]
      %v3347 = vld [vmem:[#allocation2 + $0x10] sm:$0xff]
      %v3348 = vld [vmem:[#allocation2 + $0x18] sm:$0xff]
      %v3349 = vld [vmem:[#allocation2 + $0x20] sm:$0xff]
      %3354 = vrot.lane.b32.xlu0 %v3346, 127
      %v3355 = vpop.permute.xlu0 %3354
      %3356 = vrot.lane.b32.xlu0 %v3347, 127
      %v3357 = vpop.permute.xlu0 %3356
      %3358 = vrot.lane.b32.xlu0 %v3348, 127
      %v3359 = vpop.permute.xlu0 %3358
      %3360 = vrot.lane.b32.xlu0 %v3349, 127
      %v3361 = vpop.permute.xlu0 %3360
      %v3362 = vsel %vm2121, %v3355, %v3357
      %v3363 = vsel %vm2121, %v3357, %v3359
      %v3364 = vsel %vm2121, %v3359, %v3361
      %3368 = vst [vmem:[#allocation3 + $0x78] sm:$0xff] %v3362
      %3369 = vst [vmem:[#allocation3 + $0x80] sm:$0xff] %v3363
      %3370 = vst [vmem:[#allocation3 + $0x88] sm:$0xff] %v3364
      %v3371 = vld [vmem:[#allocation2 + $0x8] sm:$0xff]
      %v3372 = vld [vmem:[#allocation2 + $0x10] sm:$0xff]
      %v3373 = vld [vmem:[#allocation2 + $0x18] sm:$0xff]
      %v3374 = vld [vmem:[#allocation2 + $0x20] sm:$0xff]
      %3379 = vrot.lane.b32.xlu0 %v3371, 111
      %v3380 = vpop.permute.xlu0 %3379
      %3381 = vrot.lane.b32.xlu0 %v3372, 111
      %v3382 = vpop.permute.xlu0 %3381
      %3383 = vrot.lane.b32.xlu0 %v3373, 111
      %v3384 = vpop.permute.xlu0 %3383
      %3385 = vrot.lane.b32.xlu0 %v3374, 111
      %v3386 = vpop.permute.xlu0 %3385
      %v3387 = vsel %vm2147, %v3380, %v3382
      %v3388 = vsel %vm2147, %v3382, %v3384
      %v3389 = vsel %vm2147, %v3384, %v3386
      %3393 = vst [vmem:[#allocation3 + $0x90] sm:$0xff] %v3387
      %3394 = vst [vmem:[#allocation3 + $0x98] sm:$0xff] %v3388
      %3395 = vst [vmem:[#allocation3 + $0xa0] sm:$0xff] %v3389
      %v3396 = vld [vmem:[#allocation2 + $0x8] sm:$0xff]
      %v3397 = vld [vmem:[#allocation2 + $0x10] sm:$0xff]
      %v3398 = vld [vmem:[#allocation2 + $0x18] sm:$0xff]
      %v3399 = vld [vmem:[#allocation2 + $0x20] sm:$0xff]
      %3404 = vrot.lane.b32.xlu0 %v3396, 110
      %v3405 = vpop.permute.xlu0 %3404
      %3406 = vrot.lane.b32.xlu0 %v3397, 110
      %v3407 = vpop.permute.xlu0 %3406
      %3408 = vrot.lane.b32.xlu0 %v3398, 110
      %v3409 = vpop.permute.xlu0 %3408
      %3410 = vrot.lane.b32.xlu0 %v3399, 110
      %v3411 = vpop.permute.xlu0 %3410
      %v3412 = vsel %vm2173, %v3405, %v3407
      %v3413 = vsel %vm2173, %v3407, %v3409
      %v3414 = vsel %vm2173, %v3409, %v3411
      %3418 = vst [vmem:[#allocation3 + $0xa8] sm:$0xff] %v3412
      %3419 = vst [vmem:[#allocation3 + $0xb0] sm:$0xff] %v3413
      %3420 = vst [vmem:[#allocation3 + $0xb8] sm:$0xff] %v3414
      %v3421 = vld [vmem:[#allocation2 + $0x8] sm:$0xff]
      %v3422 = vld [vmem:[#allocation2 + $0x10] sm:$0xff]
      %v3423 = vld [vmem:[#allocation2 + $0x18] sm:$0xff]
      %v3424 = vld [vmem:[#allocation2 + $0x20] sm:$0xff]
      %3429 = vrot.lane.b32.xlu0 %v3421, 109
      %v3430 = vpop.permute.xlu0 %3429
      %3431 = vrot.lane.b32.xlu0 %v3422, 109
      %v3432 = vpop.permute.xlu0 %3431
      %3433 = vrot.lane.b32.xlu0 %v3423, 109
      %v3434 = vpop.permute.xlu0 %3433
      %3435 = vrot.lane.b32.xlu0 %v3424, 109
      %v3436 = vpop.permute.xlu0 %3435
      %v3437 = vsel %vm2199, %v3430, %v3432
      %v3438 = vsel %vm2199, %v3432, %v3434
      %v3439 = vsel %vm2199, %v3434, %v3436
      %3443 = vst [vmem:[#allocation3 + $0xc0] sm:$0xff] %v3437
      %3444 = vst [vmem:[#allocation3 + $0xc8] sm:$0xff] %v3438
      %3445 = vst [vmem:[#allocation3 + $0xd0] sm:$0xff] %v3439
      %v3446 = vld [vmem:[%s24] sm:$0xff]
      %v3447 = vld [vmem:[#allocation3] sm:$0xff]
      %v3448 = vld [vmem:[#allocation3 + $0x8] sm:$0xff]
      %v3449 = vld [vmem:[#allocation3 + $0x10] sm:$0xff]
      %v3450 = vld [vmem:[#allocation3 + $0x18] sm:$0xff]
      %v3451 = vld [vmem:[#allocation3 + $0x20] sm:$0xff]
      %v3452 = vld [vmem:[#allocation3 + $0x28] sm:$0xff]
      %v3453 = vld [vmem:[#allocation3 + $0x30] sm:$0xff]
      %v3454 = vld [vmem:[#allocation3 + $0x38] sm:$0xff]
      %v3455 = vld [vmem:[#allocation3 + $0x40] sm:$0xff]
      %v3456 = vld [vmem:[#allocation3 + $0x48] sm:$0xff]
      %v3457 = vld [vmem:[#allocation3 + $0x50] sm:$0xff]
      %v3458 = vld [vmem:[#allocation3 + $0x58] sm:$0xff]
      %v3459 = vld [vmem:[#allocation3 + $0x60] sm:$0xff]
      %v3460 = vld [vmem:[#allocation3 + $0x68] sm:$0xff]
      %v3461 = vld [vmem:[#allocation3 + $0x70] sm:$0xff]
      %v3462 = vld [vmem:[#allocation3 + $0x78] sm:$0xff]
      %v3463 = vld [vmem:[#allocation3 + $0x80] sm:$0xff]
      %v3464 = vld [vmem:[#allocation3 + $0x88] sm:$0xff]
      %v3465 = vld [vmem:[#allocation3 + $0x90] sm:$0xff]
      %v3466 = vld [vmem:[#allocation3 + $0x98] sm:$0xff]
      %v3467 = vld [vmem:[#allocation3 + $0xa0] sm:$0xff]
      %v3468 = vld [vmem:[#allocation3 + $0xa8] sm:$0xff]
      %v3469 = vld [vmem:[#allocation3 + $0xb0] sm:$0xff]
      %v3470 = vld [vmem:[#allocation3 + $0xb8] sm:$0xff]
      %v3471 = vld [vmem:[#allocation3 + $0xc0] sm:$0xff]
      %v3472 = vld [vmem:[#allocation3 + $0xc8] sm:$0xff]
      %v3473 = vld [vmem:[#allocation3 + $0xd0] sm:$0xff]
      %v3474 = vld [vmem:[%s23] sm:$0xff]
      %3476 = vset.pattern.permute.xlu0 0
      %3477 = vperm.xlu0 %3476, %v3474
      %v3478 = vpop.permute.xlu0 %3477
      %v3481 = vsel %vm2243, %v3446, 0
      %3483 = vmatprep.subr.mxu0 %v3448
      %3484 = vmatpush1.msra.mxu0 %v3447
      %3485 = vmatprep.subr.mxu0 %v3451
      %3486 = vmatpush1.msra.mxu0 %v3450
      %3487 = vmatprep.subr.mxu0 %v3454
      %3488 = vmatpush1.msra.mxu0 %v3453
      %3489 = vmatprep.subr.mxu0 %v3457
      %3490 = vmatpush1.msra.mxu0 %v3456
      %3491 = vmatprep.subr.mxu0 %v3460
      %3492 = vmatpush1.msra.mxu0 %v3459
      %3493 = vmatprep.subr.mxu0 %v3463
      %3494 = vmatpush1.msra.mxu0 %v3462
      %3495 = vmatprep.subr.mxu0 %v3466
      %3496 = vmatpush1.msra.mxu0 %v3465
      %3497 = vmatprep.subr.mxu0 %v3469
      %3498 = vmatpush1.msra.mxu0 %v3468
      %3499 = vmatprep.subr.mxu0 %v3472
      %3500 = vmatpush1.msra.mxu0 %v3471
      %3501 = vmatprep.subr.mxu0 0.0
      %3502 = vmatpush1.msra.mxu0 0.0
      %3503 = vmatprep.subr.mxu0 0.0
      %3504 = vmatpush1.msra.mxu0 0.0
      %3505 = vmatprep.subr.mxu0 0.0
      %3506 = vmatpush1.msra.mxu0 0.0
      %3507 = vmatprep.subr.mxu0 0.0
      %3508 = vmatpush1.msra.mxu0 0.0
      %3509 = vmatprep.subr.mxu0 0.0
      %3510 = vmatpush1.msra.mxu0 0.0
      %3511 = vmatprep.subr.mxu0 0.0
      %3512 = vmatpush1.msra.mxu0 0.0
      %3513 = vmatprep.subr.mxu0 0.0
      %3514 = vmatpush1.msra.mxu0 0.0
      %3515 = vmatprep.subr.mxu0 0.0
      %3516 = vmatpush1.msra.mxu0 0.0
      %3517 = vmatprep.subr.mxu0 0.0
      %3518 = vmatpush1.msra.mxu0 0.0
      %3519 = vmatprep.subr.mxu0 0.0
      %3520 = vmatpush1.msra.mxu0 0.0
      %3521 = vmatprep.subr.mxu0 0.0
      %3522 = vmatpush1.msra.mxu0 0.0
      %3523 = vmatprep.subr.mxu0 0.0
      %3524 = vmatpush1.msra.mxu0 0.0
      %3525 = vmatprep.subr.mxu0 0.0
      %3526 = vmatpush1.msra.mxu0 0.0
      %3527 = vmatprep.subr.mxu0 0.0
      %3528 = vmatpush1.msra.mxu0 0.0
      %3529 = vmatprep.subr.mxu0 0.0
      %3530 = vmatpush1.msra.mxu0 0.0
      %3531 = vmatprep.subr.mxu0 0.0
      %3532 = vmatpush1.msra.mxu0 0.0
      %3533 = vmatprep.subr.mxu0 0.0
      %3534 = vmatpush1.msra.mxu0 0.0
      %3535 = vmatprep.subr.mxu0 0.0
      %3536 = vmatpush1.msra.mxu0 0.0
      %3537 = vmatprep.subr.mxu0 0.0
      %3538 = vmatpush1.msra.mxu0 0.0
      %3539 = vmatprep.subr.mxu0 0.0
      %3540 = vmatpush1.msra.mxu0 0.0
      %3541 = vmatprep.subr.mxu0 0.0
      %3542 = vmatpush1.msra.mxu0 0.0
      %3543 = vmatprep.subr.mxu0 0.0
      %3544 = vmatpush1.msra.mxu0 0.0
      %3545 = vmatprep.subr.mxu0 0.0
      %3546 = vmatpush1.msra.mxu0 0.0
      %3547 = vmatprep.mubr.f32.mxu0 0.0
      %3548 = vmatmul.mubr.f32.gmra.mrb[0].mxu0 %v3481
      %v3549 = vpop.f32.mrb[0].mxu0
      %v3550 = vadd.f32 %v3478, %v3549
      %v3551 = vpop.f32.mrb[0].mxu0
      %v3552 = vadd.f32 %v3478, %v3551
      %3553 = vdwg.mxu0
      %3554 = vmatprep.subr.mxu0 0.0
      %3555 = vmatpush1.msra.mxu0 %v3449
      %3556 = vmatprep.subr.mxu0 0.0
      %3557 = vmatpush1.msra.mxu0 %v3452
      %3558 = vmatprep.subr.mxu0 0.0
      %3559 = vmatpush1.msra.mxu0 %v3455
      %3560 = vmatprep.subr.mxu0 0.0
      %3561 = vmatpush1.msra.mxu0 %v3458
      %3562 = vmatprep.subr.mxu0 0.0
      %3563 = vmatpush1.msra.mxu0 %v3461
      %3564 = vmatprep.subr.mxu0 0.0
      %3565 = vmatpush1.msra.mxu0 %v3464
      %3566 = vmatprep.subr.mxu0 0.0
      %3567 = vmatpush1.msra.mxu0 %v3467
      %3568 = vmatprep.subr.mxu0 0.0
      %3569 = vmatpush1.msra.mxu0 %v3470
      %3570 = vmatprep.subr.mxu0 0.0
      %3571 = vmatpush1.msra.mxu0 %v3473
      %3572 = vmatprep.subr.mxu0 0.0
      %3573 = vmatpush1.msra.mxu0 0.0
      %3574 = vmatprep.subr.mxu0 0.0
      %3575 = vmatpush1.msra.mxu0 0.0
      %3576 = vmatprep.subr.mxu0 0.0
      %3577 = vmatpush1.msra.mxu0 0.0
      %3578 = vmatprep.subr.mxu0 0.0
      %3579 = vmatpush1.msra.mxu0 0.0
      %3580 = vmatprep.subr.mxu0 0.0
      %3581 = vmatpush1.msra.mxu0 0.0
      %3582 = vmatprep.subr.mxu0 0.0
      %3583 = vmatpush1.msra.mxu0 0.0
      %3584 = vmatprep.subr.mxu0 0.0
      %3585 = vmatpush1.msra.mxu0 0.0
      %3586 = vmatprep.subr.mxu0 0.0
      %3587 = vmatpush1.msra.mxu0 0.0
      %3588 = vmatprep.subr.mxu0 0.0
      %3589 = vmatpush1.msra.mxu0 0.0
      %3590 = vmatprep.subr.mxu0 0.0
      %3591 = vmatpush1.msra.mxu0 0.0
      %3592 = vmatprep.subr.mxu0 0.0
      %3593 = vmatpush1.msra.mxu0 0.0
      %3594 = vmatprep.subr.mxu0 0.0
      %3595 = vmatpush1.msra.mxu0 0.0
      %3596 = vmatprep.subr.mxu0 0.0
      %3597 = vmatpush1.msra.mxu0 0.0
      %3598 = vmatprep.subr.mxu0 0.0
      %3599 = vmatpush1.msra.mxu0 0.0
      %3600 = vmatprep.subr.mxu0 0.0
      %3601 = vmatpush1.msra.mxu0 0.0
      %3602 = vmatprep.subr.mxu0 0.0
      %3603 = vmatpush1.msra.mxu0 0.0
      %3604 = vmatprep.subr.mxu0 0.0
      %3605 = vmatpush1.msra.mxu0 0.0
      %3606 = vmatprep.subr.mxu0 0.0
      %3607 = vmatpush1.msra.mxu0 0.0
      %3608 = vmatprep.subr.mxu0 0.0
      %3609 = vmatpush1.msra.mxu0 0.0
      %3610 = vmatprep.subr.mxu0 0.0
      %3611 = vmatpush1.msra.mxu0 0.0
      %3612 = vmatprep.subr.mxu0 0.0
      %3613 = vmatpush1.msra.mxu0 0.0
      %3614 = vmatprep.subr.mxu0 0.0
      %3615 = vmatpush1.msra.mxu0 0.0
      %3616 = vmatprep.subr.mxu0 0.0
      %3617 = vmatpush1.msra.mxu0 0.0
      %3618 = vmatprep.mubr.f32.mxu0 0.0
      %3619 = vmatmul.mubr.f32.gmra.mrb[0].mxu0 %v3481
      %v3620 = vpop.f32.mrb[0].mxu0
      %v3621 = vadd.f32 %v3478, %v3620
      %v3622 = vpop.f32.mrb[0].mxu0
      %3623 = vdwg.mxu0
      %v3624 = vxor.u32 %v3550, 2147483648
      %v3625 = vxor.u32 %v3552, 2147483648
      %v3626 = vxor.u32 %v3621, 2147483648
      %v3627 = vmul.f32 %v3624, 1.442695
      %v3628 = vpow.pop %v3627
      %v3629 = vmul.f32 %v3625, 1.442695
      %v3630 = vpow.pop %v3629
      %v3631 = vmul.f32 %v3626, 1.442695
      %v3632 = vpow.pop %v3631
      %v3633 = vadd.f32 %v3628, 1.0
      %v3634 = vadd.f32 %v3630, 1.0
      %v3635 = vadd.f32 %v3632, 1.0
      %v3636 = vrcp.pop %v3633
      %v3637 = vmul.f32 1.0, %v3636
      %v3638 = vrcp.pop %v3634
      %v3639 = vmul.f32 1.0, %v3638
      %v3640 = vrcp.pop %v3635
      %v3641 = vmul.f32 1.0, %v3640
      %v3642 = vmul.f32 %v3550, %v3637
      %v3643 = vmul.f32 %v3552, %v3639
      %v3644 = vmul.f32 %v3621, %v3641
      %v3645 = vadd.f32 %v3642, %v2820
      %v3646 = vadd.f32 %v3643, %v2821
      %v3647 = vadd.f32 %v3644, %v2822
      %v3648 = vld [vmem:[%s15] sm:$0xff]
      %v3649 = vld [vmem:[%s15 + $0x8] sm:$0xff]
      %v3650 = vld [vmem:[%s16] sm:$0xff]
      %v3651 = vld [vmem:[%s16 + $0x8] sm:$0xff]
      %v3653 = vsel %vm785, %v3650, 0
      %v3656 = vsel %vm785, %v3651, 0
      %3658 = vmatprep.subr.mxu0 %v1971
      %3659 = vmatpush1.msra.mxu0 %v1970
      %3660 = vmatprep.subr.mxu0 0.0
      %3661 = vmatpush1.msra.mxu0 0.0
      %3662 = vmatprep.subr.mxu0 0.0
      %3663 = vmatpush1.msra.mxu0 0.0
      %3664 = vmatprep.subr.mxu0 0.0
      %3665 = vmatpush1.msra.mxu0 0.0
      %3666 = vmatprep.subr.mxu0 0.0
      %3667 = vmatpush1.msra.mxu0 0.0
      %3668 = vmatprep.subr.mxu0 0.0
      %3669 = vmatpush1.msra.mxu0 0.0
      %3670 = vmatprep.subr.mxu0 0.0
      %3671 = vmatpush1.msra.mxu0 0.0
      %3672 = vmatprep.subr.mxu0 0.0
      %3673 = vmatpush1.msra.mxu0 0.0
      %3674 = vmatprep.subr.mxu0 0.0
      %3675 = vmatpush1.msra.mxu0 0.0
      %3676 = vmatprep.subr.mxu0 0.0
      %3677 = vmatpush1.msra.mxu0 0.0
      %3678 = vmatprep.subr.mxu0 0.0
      %3679 = vmatpush1.msra.mxu0 0.0
      %3680 = vmatprep.subr.mxu0 0.0
      %3681 = vmatpush1.msra.mxu0 0.0
      %3682 = vmatprep.subr.mxu0 0.0
      %3683 = vmatpush1.msra.mxu0 0.0
      %3684 = vmatprep.subr.mxu0 0.0
      %3685 = vmatpush1.msra.mxu0 0.0
      %3686 = vmatprep.subr.mxu0 0.0
      %3687 = vmatpush1.msra.mxu0 0.0
      %3688 = vmatprep.subr.mxu0 0.0
      %3689 = vmatpush1.msra.mxu0 0.0
      %3690 = vmatprep.subr.mxu0 0.0
      %3691 = vmatpush1.msra.mxu0 0.0
      %3692 = vmatprep.subr.mxu0 0.0
      %3693 = vmatpush1.msra.mxu0 0.0
      %3694 = vmatprep.subr.mxu0 0.0
      %3695 = vmatpush1.msra.mxu0 0.0
      %3696 = vmatprep.subr.mxu0 0.0
      %3697 = vmatpush1.msra.mxu0 0.0
      %3698 = vmatprep.subr.mxu0 0.0
      %3699 = vmatpush1.msra.mxu0 0.0
      %3700 = vmatprep.subr.mxu0 0.0
      %3701 = vmatpush1.msra.mxu0 0.0
      %3702 = vmatprep.subr.mxu0 0.0
      %3703 = vmatpush1.msra.mxu0 0.0
      %3704 = vmatprep.subr.mxu0 0.0
      %3705 = vmatpush1.msra.mxu0 0.0
      %3706 = vmatprep.subr.mxu0 0.0
      %3707 = vmatpush1.msra.mxu0 0.0
      %3708 = vmatprep.subr.mxu0 0.0
      %3709 = vmatpush1.msra.mxu0 0.0
      %3710 = vmatprep.subr.mxu0 0.0
      %3711 = vmatpush1.msra.mxu0 0.0
      %3712 = vmatprep.subr.mxu0 0.0
      %3713 = vmatpush1.msra.mxu0 0.0
      %3714 = vmatprep.subr.mxu0 0.0
      %3715 = vmatpush1.msra.mxu0 0.0
      %3716 = vmatprep.subr.mxu0 0.0
      %3717 = vmatpush1.msra.mxu0 0.0
      %3718 = vmatprep.subr.mxu0 0.0
      %3719 = vmatpush1.msra.mxu0 0.0
      %3720 = vmatprep.subr.mxu0 0.0
      %3721 = vmatpush1.msra.mxu0 0.0
      %3722 = vmatprep.mubr.f32.mxu0 0.0
      %3723 = vmatmul.mubr.f32.gmra.mrb[0].mxu0 %v3653
      %v3724 = vpop.f32.mrb[0].mxu0
      %v3725 = vadd.f32 0.0, %v3724
      %v3726 = vpop.f32.mrb[0].mxu0
      %v3727 = vadd.f32 0.0, %v3726
      %3728 = vmatprep.mubr.f32.mxu0 0.0
      %3729 = vmatmul.mubr.f32.gmra.mrb[0].mxu0 %v3656
      %v3730 = vpop.f32.mrb[0].mxu0
      %v3731 = vadd.f32 0.0, %v3730
      %v3732 = vpop.f32.mrb[0].mxu0
      %v3733 = vadd.f32 0.0, %v3732
      %3734 = vdwg.mxu0
      %3735 = vmatprep.subr.mxu0 0.0
      %3736 = vmatpush1.msra.mxu0 %v1972
      %3737 = vmatprep.subr.mxu0 0.0
      %3738 = vmatpush1.msra.mxu0 0.0
      %3739 = vmatprep.subr.mxu0 0.0
      %3740 = vmatpush1.msra.mxu0 0.0
      %3741 = vmatprep.subr.mxu0 0.0
      %3742 = vmatpush1.msra.mxu0 0.0
      %3743 = vmatprep.subr.mxu0 0.0
      %3744 = vmatpush1.msra.mxu0 0.0
      %3745 = vmatprep.subr.mxu0 0.0
      %3746 = vmatpush1.msra.mxu0 0.0
      %3747 = vmatprep.subr.mxu0 0.0
      %3748 = vmatpush1.msra.mxu0 0.0
      %3749 = vmatprep.subr.mxu0 0.0
      %3750 = vmatpush1.msra.mxu0 0.0
      %3751 = vmatprep.subr.mxu0 0.0
      %3752 = vmatpush1.msra.mxu0 0.0
      %3753 = vmatprep.subr.mxu0 0.0
      %3754 = vmatpush1.msra.mxu0 0.0
      %3755 = vmatprep.subr.mxu0 0.0
      %3756 = vmatpush1.msra.mxu0 0.0
      %3757 = vmatprep.subr.mxu0 0.0
      %3758 = vmatpush1.msra.mxu0 0.0
      %3759 = vmatprep.subr.mxu0 0.0
      %3760 = vmatpush1.msra.mxu0 0.0
      %3761 = vmatprep.subr.mxu0 0.0
      %3762 = vmatpush1.msra.mxu0 0.0
      %3763 = vmatprep.subr.mxu0 0.0
      %3764 = vmatpush1.msra.mxu0 0.0
      %3765 = vmatprep.subr.mxu0 0.0
      %3766 = vmatpush1.msra.mxu0 0.0
      %3767 = vmatprep.subr.mxu0 0.0
      %3768 = vmatpush1.msra.mxu0 0.0
      %3769 = vmatprep.subr.mxu0 0.0
      %3770 = vmatpush1.msra.mxu0 0.0
      %3771 = vmatprep.subr.mxu0 0.0
      %3772 = vmatpush1.msra.mxu0 0.0
      %3773 = vmatprep.subr.mxu0 0.0
      %3774 = vmatpush1.msra.mxu0 0.0
      %3775 = vmatprep.subr.mxu0 0.0
      %3776 = vmatpush1.msra.mxu0 0.0
      %3777 = vmatprep.subr.mxu0 0.0
      %3778 = vmatpush1.msra.mxu0 0.0
      %3779 = vmatprep.subr.mxu0 0.0
      %3780 = vmatpush1.msra.mxu0 0.0
      %3781 = vmatprep.subr.mxu0 0.0
      %3782 = vmatpush1.msra.mxu0 0.0
      %3783 = vmatprep.subr.mxu0 0.0
      %3784 = vmatpush1.msra.mxu0 0.0
      %3785 = vmatprep.subr.mxu0 0.0
      %3786 = vmatpush1.msra.mxu0 0.0
      %3787 = vmatprep.subr.mxu0 0.0
      %3788 = vmatpush1.msra.mxu0 0.0
      %3789 = vmatprep.subr.mxu0 0.0
      %3790 = vmatpush1.msra.mxu0 0.0
      %3791 = vmatprep.subr.mxu0 0.0
      %3792 = vmatpush1.msra.mxu0 0.0
      %3793 = vmatprep.subr.mxu0 0.0
      %3794 = vmatpush1.msra.mxu0 0.0
      %3795 = vmatprep.subr.mxu0 0.0
      %3796 = vmatpush1.msra.mxu0 0.0
      %3797 = vmatprep.subr.mxu0 0.0
      %3798 = vmatpush1.msra.mxu0 0.0
      %3799 = vmatprep.mubr.f32.mxu0 0.0
      %3800 = vmatmul.mubr.f32.gmra.mrb[0].mxu0 %v3653
      %v3801 = vpop.f32.mrb[0].mxu0
      %v3802 = vadd.f32 0.0, %v3801
      %v3803 = vpop.f32.mrb[0].mxu0
      %3804 = vmatprep.mubr.f32.mxu0 0.0
      %3805 = vmatmul.mubr.f32.gmra.mrb[0].mxu0 %v3656
      %v3806 = vpop.f32.mrb[0].mxu0
      %v3807 = vadd.f32 0.0, %v3806
      %v3808 = vpop.f32.mrb[0].mxu0
      %3809 = vdwg.mxu0
      %v3811 = vsel %vm785, %v3648, 0
      %v3814 = vsel %vm785, %v3649, 0
      %3816 = vmatprep.subr.mxu0 %v3646
      %3817 = vmatpush1.msra.mxu0 %v3645
      %3818 = vmatprep.subr.mxu0 0.0
      %3819 = vmatpush1.msra.mxu0 0.0
      %3820 = vmatprep.subr.mxu0 0.0
      %3821 = vmatpush1.msra.mxu0 0.0
      %3822 = vmatprep.subr.mxu0 0.0
      %3823 = vmatpush1.msra.mxu0 0.0
      %3824 = vmatprep.subr.mxu0 0.0
      %3825 = vmatpush1.msra.mxu0 0.0
      %3826 = vmatprep.subr.mxu0 0.0
      %3827 = vmatpush1.msra.mxu0 0.0
      %3828 = vmatprep.subr.mxu0 0.0
      %3829 = vmatpush1.msra.mxu0 0.0
      %3830 = vmatprep.subr.mxu0 0.0
      %3831 = vmatpush1.msra.mxu0 0.0
      %3832 = vmatprep.subr.mxu0 0.0
      %3833 = vmatpush1.msra.mxu0 0.0
      %3834 = vmatprep.subr.mxu0 0.0
      %3835 = vmatpush1.msra.mxu0 0.0
      %3836 = vmatprep.subr.mxu0 0.0
      %3837 = vmatpush1.msra.mxu0 0.0
      %3838 = vmatprep.subr.mxu0 0.0
      %3839 = vmatpush1.msra.mxu0 0.0
      %3840 = vmatprep.subr.mxu0 0.0
      %3841 = vmatpush1.msra.mxu0 0.0
      %3842 = vmatprep.subr.mxu0 0.0
      %3843 = vmatpush1.msra.mxu0 0.0
      %3844 = vmatprep.subr.mxu0 0.0
      %3845 = vmatpush1.msra.mxu0 0.0
      %3846 = vmatprep.subr.mxu0 0.0
      %3847 = vmatpush1.msra.mxu0 0.0
      %3848 = vmatprep.subr.mxu0 0.0
      %3849 = vmatpush1.msra.mxu0 0.0
      %3850 = vmatprep.subr.mxu0 0.0
      %3851 = vmatpush1.msra.mxu0 0.0
      %3852 = vmatprep.subr.mxu0 0.0
      %3853 = vmatpush1.msra.mxu0 0.0
      %3854 = vmatprep.subr.mxu0 0.0
      %3855 = vmatpush1.msra.mxu0 0.0
      %3856 = vmatprep.subr.mxu0 0.0
      %3857 = vmatpush1.msra.mxu0 0.0
      %3858 = vmatprep.subr.mxu0 0.0
      %3859 = vmatpush1.msra.mxu0 0.0
      %3860 = vmatprep.subr.mxu0 0.0
      %3861 = vmatpush1.msra.mxu0 0.0
      %3862 = vmatprep.subr.mxu0 0.0
      %3863 = vmatpush1.msra.mxu0 0.0
      %3864 = vmatprep.subr.mxu0 0.0
      %3865 = vmatpush1.msra.mxu0 0.0
      %3866 = vmatprep.subr.mxu0 0.0
      %3867 = vmatpush1.msra.mxu0 0.0
      %3868 = vmatprep.subr.mxu0 0.0
      %3869 = vmatpush1.msra.mxu0 0.0
      %3870 = vmatprep.subr.mxu0 0.0
      %3871 = vmatpush1.msra.mxu0 0.0
      %3872 = vmatprep.subr.mxu0 0.0
      %3873 = vmatpush1.msra.mxu0 0.0
      %3874 = vmatprep.subr.mxu0 0.0
      %3875 = vmatpush1.msra.mxu0 0.0
      %3876 = vmatprep.subr.mxu0 0.0
      %3877 = vmatpush1.msra.mxu0 0.0
      %3878 = vmatprep.subr.mxu0 0.0
      %3879 = vmatpush1.msra.mxu0 0.0
      %3880 = vmatprep.mubr.f32.mxu0 0.0
      %3881 = vmatmul.mubr.f32.gmra.mrb[0].mxu0 %v3811
      %v3882 = vpop.f32.mrb[0].mxu0
      %v3883 = vadd.f32 %v3725, %v3882
      %v3884 = vpop.f32.mrb[0].mxu0
      %v3885 = vadd.f32 %v3727, %v3884
      %3886 = vmatprep.mubr.f32.mxu0 0.0
      %3887 = vmatmul.mubr.f32.gmra.mrb[0].mxu0 %v3814
      %v3888 = vpop.f32.mrb[0].mxu0
      %v3889 = vadd.f32 %v3731, %v3888
      %v3890 = vpop.f32.mrb[0].mxu0
      %v3891 = vadd.f32 %v3733, %v3890
      %3892 = vdwg.mxu0
      %3893 = vmatprep.subr.mxu0 0.0
      %3894 = vmatpush1.msra.mxu0 %v3647
      %3895 = vmatprep.subr.mxu0 0.0
      %3896 = vmatpush1.msra.mxu0 0.0
      %3897 = vmatprep.subr.mxu0 0.0
      %3898 = vmatpush1.msra.mxu0 0.0
      %3899 = vmatprep.subr.mxu0 0.0
      %3900 = vmatpush1.msra.mxu0 0.0
      %3901 = vmatprep.subr.mxu0 0.0
      %3902 = vmatpush1.msra.mxu0 0.0
      %3903 = vmatprep.subr.mxu0 0.0
      %3904 = vmatpush1.msra.mxu0 0.0
      %3905 = vmatprep.subr.mxu0 0.0
      %3906 = vmatpush1.msra.mxu0 0.0
      %3907 = vmatprep.subr.mxu0 0.0
      %3908 = vmatpush1.msra.mxu0 0.0
      %3909 = vmatprep.subr.mxu0 0.0
      %3910 = vmatpush1.msra.mxu0 0.0
      %3911 = vmatprep.subr.mxu0 0.0
      %3912 = vmatpush1.msra.mxu0 0.0
      %3913 = vmatprep.subr.mxu0 0.0
      %3914 = vmatpush1.msra.mxu0 0.0
      %3915 = vmatprep.subr.mxu0 0.0
      %3916 = vmatpush1.msra.mxu0 0.0
      %3917 = vmatprep.subr.mxu0 0.0
      %3918 = vmatpush1.msra.mxu0 0.0
      %3919 = vmatprep.subr.mxu0 0.0
      %3920 = vmatpush1.msra.mxu0 0.0
      %3921 = vmatprep.subr.mxu0 0.0
      %3922 = vmatpush1.msra.mxu0 0.0
      %3923 = vmatprep.subr.mxu0 0.0
      %3924 = vmatpush1.msra.mxu0 0.0
      %3925 = vmatprep.subr.mxu0 0.0
      %3926 = vmatpush1.msra.mxu0 0.0
      %3927 = vmatprep.subr.mxu0 0.0
      %3928 = vmatpush1.msra.mxu0 0.0
      %3929 = vmatprep.subr.mxu0 0.0
      %3930 = vmatpush1.msra.mxu0 0.0
      %3931 = vmatprep.subr.mxu0 0.0
      %3932 = vmatpush1.msra.mxu0 0.0
      %3933 = vmatprep.subr.mxu0 0.0
      %3934 = vmatpush1.msra.mxu0 0.0
      %3935 = vmatprep.subr.mxu0 0.0
      %3936 = vmatpush1.msra.mxu0 0.0
      %3937 = vmatprep.subr.mxu0 0.0
      %3938 = vmatpush1.msra.mxu0 0.0
      %3939 = vmatprep.subr.mxu0 0.0
      %3940 = vmatpush1.msra.mxu0 0.0
      %3941 = vmatprep.subr.mxu0 0.0
      %3942 = vmatpush1.msra.mxu0 0.0
      %3943 = vmatprep.subr.mxu0 0.0
      %3944 = vmatpush1.msra.mxu0 0.0
      %3945 = vmatprep.subr.mxu0 0.0
      %3946 = vmatpush1.msra.mxu0 0.0
      %3947 = vmatprep.subr.mxu0 0.0
      %3948 = vmatpush1.msra.mxu0 0.0
      %3949 = vmatprep.subr.mxu0 0.0
      %3950 = vmatpush1.msra.mxu0 0.0
      %3951 = vmatprep.subr.mxu0 0.0
      %3952 = vmatpush1.msra.mxu0 0.0
      %3953 = vmatprep.subr.mxu0 0.0
      %3954 = vmatpush1.msra.mxu0 0.0
      %3955 = vmatprep.subr.mxu0 0.0
      %3956 = vmatpush1.msra.mxu0 0.0
      %3957 = vmatprep.mubr.f32.mxu0 0.0
      %3958 = vmatmul.mubr.f32.gmra.mrb[0].mxu0 %v3811
      %v3959 = vpop.f32.mrb[0].mxu0
      %v3960 = vadd.f32 %v3802, %v3959
      %v3961 = vpop.f32.mrb[0].mxu0
      %3962 = vmatprep.mubr.f32.mxu0 0.0
      %3963 = vmatmul.mubr.f32.gmra.mrb[0].mxu0 %v3814
      %v3964 = vpop.f32.mrb[0].mxu0
      %v3965 = vadd.f32 %v3807, %v3964
      %v3966 = vpop.f32.mrb[0].mxu0
      %3967 = vdwg.mxu0
      %v3968 = vld [vmem:[%s14] sm:$0xff]
      %v3969 = vld [vmem:[%s14 + $0x8] sm:$0xff]
      %3971 = vset.pattern.permute.xlu0 0
      %3972 = vperm.xlu0 %3971, %v3968
      %v3973 = vpop.permute.xlu0 %3972
      %3976 = vset.pattern.permute.xlu0 0
      %3977 = vperm.xlu0 %3976, %v3969
      %v3978 = vpop.permute.xlu0 %3977
      %v3980 = vadd.f32 %v3883, %v3973
      %v3981 = vadd.f32 %v3885, %v3973
      %v3982 = vadd.f32 %v3960, %v3973
      %v3983 = vadd.f32 %v3889, %v3978
      %v3984 = vadd.f32 %v3891, %v3978
      %v3985 = vadd.f32 %v3965, %v3978
      %v3986 = vxor.u32 %v3980, 2147483648
      %v3987 = vxor.u32 %v3981, 2147483648
      %v3988 = vxor.u32 %v3982, 2147483648
      %v3989 = vxor.u32 %v3983, 2147483648
      %v3990 = vxor.u32 %v3984, 2147483648
      %v3991 = vxor.u32 %v3985, 2147483648
      %v3992 = vmul.f32 %v3986, 1.442695
      %v3993 = vpow.pop %v3992
      %v3994 = vmul.f32 %v3987, 1.442695
      %v3995 = vpow.pop %v3994
      %v3996 = vmul.f32 %v3988, 1.442695
      %v3997 = vpow.pop %v3996
      %v3998 = vmul.f32 %v3989, 1.442695
      %v3999 = vpow.pop %v3998
      %v4000 = vmul.f32 %v3990, 1.442695
      %v4001 = vpow.pop %v4000
      %v4002 = vmul.f32 %v3991, 1.442695
      %v4003 = vpow.pop %v4002
      %v4004 = vadd.f32 %v3993, 1.0
      %v4005 = vadd.f32 %v3995, 1.0
      %v4006 = vadd.f32 %v3997, 1.0
      %v4007 = vadd.f32 %v3999, 1.0
      %v4008 = vadd.f32 %v4001, 1.0
      %v4009 = vadd.f32 %v4003, 1.0
      %v4010 = vrcp.pop %v4004
      %v4011 = vmul.f32 1.0, %v4010
      %v4012 = vrcp.pop %v4005
      %v4013 = vmul.f32 1.0, %v4012
      %v4014 = vrcp.pop %v4006
      %v4015 = vmul.f32 1.0, %v4014
      %v4016 = vrcp.pop %v4007
      %v4017 = vmul.f32 1.0, %v4016
      %v4018 = vrcp.pop %v4008
      %v4019 = vmul.f32 1.0, %v4018
      %v4020 = vrcp.pop %v4009
      %v4021 = vmul.f32 1.0, %v4020
      %v4022 = vmul.f32 %v3980, %v4011
      %v4023 = vmul.f32 %v3981, %v4013
      %v4024 = vmul.f32 %v3982, %v4015
      %v4025 = vmul.f32 %v3983, %v4017
      %v4026 = vmul.f32 %v3984, %v4019
      %v4027 = vmul.f32 %v3985, %v4021
      %v4028 = vld [vmem:[%s9] sm:$0xff]
      %v4029 = vld [vmem:[%s9 + $0x8] sm:$0xff]
      %v4030 = vld [vmem:[%s9 + $0x10] sm:$0xff]
      %v4031 = vld [vmem:[%s9 + $0x18] sm:$0xff]
      %v4033 = vsel %vm1208, %v4028, 0
      %v4036 = vsel %vm1208, %v4029, 0
      %v4039 = vsel %vm1208, %v4030, 0
      %v4042 = vsel %vm1208, %v4031, 0
      %4044 = vmatprep.subr.mxu0 %v4023
      %4045 = vmatpush1.msra.mxu0 %v4022
      %4046 = vmatprep.subr.mxu0 %v4026
      %4047 = vmatpush1.msra.mxu0 %v4025
      %4048 = vmatprep.subr.mxu0 0.0
      %4049 = vmatpush1.msra.mxu0 0.0
      %4050 = vmatprep.subr.mxu0 0.0
      %4051 = vmatpush1.msra.mxu0 0.0
      %4052 = vmatprep.subr.mxu0 0.0
      %4053 = vmatpush1.msra.mxu0 0.0
      %4054 = vmatprep.subr.mxu0 0.0
      %4055 = vmatpush1.msra.mxu0 0.0
      %4056 = vmatprep.subr.mxu0 0.0
      %4057 = vmatpush1.msra.mxu0 0.0
      %4058 = vmatprep.subr.mxu0 0.0
      %4059 = vmatpush1.msra.mxu0 0.0
      %4060 = vmatprep.subr.mxu0 0.0
      %4061 = vmatpush1.msra.mxu0 0.0
      %4062 = vmatprep.subr.mxu0 0.0
      %4063 = vmatpush1.msra.mxu0 0.0
      %4064 = vmatprep.subr.mxu0 0.0
      %4065 = vmatpush1.msra.mxu0 0.0
      %4066 = vmatprep.subr.mxu0 0.0
      %4067 = vmatpush1.msra.mxu0 0.0
      %4068 = vmatprep.subr.mxu0 0.0
      %4069 = vmatpush1.msra.mxu0 0.0
      %4070 = vmatprep.subr.mxu0 0.0
      %4071 = vmatpush1.msra.mxu0 0.0
      %4072 = vmatprep.subr.mxu0 0.0
      %4073 = vmatpush1.msra.mxu0 0.0
      %4074 = vmatprep.subr.mxu0 0.0
      %4075 = vmatpush1.msra.mxu0 0.0
      %4076 = vmatprep.subr.mxu0 0.0
      %4077 = vmatpush1.msra.mxu0 0.0
      %4078 = vmatprep.subr.mxu0 0.0
      %4079 = vmatpush1.msra.mxu0 0.0
      %4080 = vmatprep.subr.mxu0 0.0
      %4081 = vmatpush1.msra.mxu0 0.0
      %4082 = vmatprep.subr.mxu0 0.0
      %4083 = vmatpush1.msra.mxu0 0.0
      %4084 = vmatprep.subr.mxu0 0.0
      %4085 = vmatpush1.msra.mxu0 0.0
      %4086 = vmatprep.subr.mxu0 0.0
      %4087 = vmatpush1.msra.mxu0 0.0
      %4088 = vmatprep.subr.mxu0 0.0
      %4089 = vmatpush1.msra.mxu0 0.0
      %4090 = vmatprep.subr.mxu0 0.0
      %4091 = vmatpush1.msra.mxu0 0.0
      %4092 = vmatprep.subr.mxu0 0.0
      %4093 = vmatpush1.msra.mxu0 0.0
      %4094 = vmatprep.subr.mxu0 0.0
      %4095 = vmatpush1.msra.mxu0 0.0
      %4096 = vmatprep.subr.mxu0 0.0
      %4097 = vmatpush1.msra.mxu0 0.0
      %4098 = vmatprep.subr.mxu0 0.0
      %4099 = vmatpush1.msra.mxu0 0.0
      %4100 = vmatprep.subr.mxu0 0.0
      %4101 = vmatpush1.msra.mxu0 0.0
      %4102 = vmatprep.subr.mxu0 0.0
      %4103 = vmatpush1.msra.mxu0 0.0
      %4104 = vmatprep.subr.mxu0 0.0
      %4105 = vmatpush1.msra.mxu0 0.0
      %4106 = vmatprep.subr.mxu0 0.0
      %4107 = vmatpush1.msra.mxu0 0.0
      %4108 = vmatprep.mubr.f32.mxu0 0.0
      %4109 = vmatmul.mubr.f32.gmra.mrb[0].mxu0 %v4033
      %v4110 = vpop.f32.mrb[0].mxu0
      %v4111 = vadd.f32 0.0, %v4110
      %v4112 = vpop.f32.mrb[0].mxu0
      %v4113 = vadd.f32 0.0, %v4112
      %4114 = vmatprep.mubr.f32.mxu0 0.0
      %4115 = vmatmul.mubr.f32.gmra.mrb[0].mxu0 %v4036
      %v4116 = vpop.f32.mrb[0].mxu0
      %v4117 = vadd.f32 0.0, %v4116
      %v4118 = vpop.f32.mrb[0].mxu0
      %v4119 = vadd.f32 0.0, %v4118
      %4120 = vmatprep.mubr.f32.mxu0 0.0
      %4121 = vmatmul.mubr.f32.gmra.mrb[0].mxu0 %v4039
      %v4122 = vpop.f32.mrb[0].mxu0
      %v4123 = vadd.f32 0.0, %v4122
      %v4124 = vpop.f32.mrb[0].mxu0
      %v4125 = vadd.f32 0.0, %v4124
      %4126 = vmatprep.mubr.f32.mxu0 0.0
      %4127 = vmatmul.mubr.f32.gmra.mrb[0].mxu0 %v4042
      %v4128 = vpop.f32.mrb[0].mxu0
      %v4129 = vadd.f32 0.0, %v4128
      %v4130 = vpop.f32.mrb[0].mxu0
      %v4131 = vadd.f32 0.0, %v4130
      %4132 = vdwg.mxu0
      %4133 = vmatprep.subr.mxu0 0.0
      %4134 = vmatpush1.msra.mxu0 %v4024
      %4135 = vmatprep.subr.mxu0 0.0
      %4136 = vmatpush1.msra.mxu0 %v4027
      %4137 = vmatprep.subr.mxu0 0.0
      %4138 = vmatpush1.msra.mxu0 0.0
      %4139 = vmatprep.subr.mxu0 0.0
      %4140 = vmatpush1.msra.mxu0 0.0
      %4141 = vmatprep.subr.mxu0 0.0
      %4142 = vmatpush1.msra.mxu0 0.0
      %4143 = vmatprep.subr.mxu0 0.0
      %4144 = vmatpush1.msra.mxu0 0.0
      %4145 = vmatprep.subr.mxu0 0.0
      %4146 = vmatpush1.msra.mxu0 0.0
      %4147 = vmatprep.subr.mxu0 0.0
      %4148 = vmatpush1.msra.mxu0 0.0
      %4149 = vmatprep.subr.mxu0 0.0
      %4150 = vmatpush1.msra.mxu0 0.0
      %4151 = vmatprep.subr.mxu0 0.0
      %4152 = vmatpush1.msra.mxu0 0.0
      %4153 = vmatprep.subr.mxu0 0.0
      %4154 = vmatpush1.msra.mxu0 0.0
      %4155 = vmatprep.subr.mxu0 0.0
      %4156 = vmatpush1.msra.mxu0 0.0
      %4157 = vmatprep.subr.mxu0 0.0
      %4158 = vmatpush1.msra.mxu0 0.0
      %4159 = vmatprep.subr.mxu0 0.0
      %4160 = vmatpush1.msra.mxu0 0.0
      %4161 = vmatprep.subr.mxu0 0.0
      %4162 = vmatpush1.msra.mxu0 0.0
      %4163 = vmatprep.subr.mxu0 0.0
      %4164 = vmatpush1.msra.mxu0 0.0
      %4165 = vmatprep.subr.mxu0 0.0
      %4166 = vmatpush1.msra.mxu0 0.0
      %4167 = vmatprep.subr.mxu0 0.0
      %4168 = vmatpush1.msra.mxu0 0.0
      %4169 = vmatprep.subr.mxu0 0.0
      %4170 = vmatpush1.msra.mxu0 0.0
      %4171 = vmatprep.subr.mxu0 0.0
      %4172 = vmatpush1.msra.mxu0 0.0
      %4173 = vmatprep.subr.mxu0 0.0
      %4174 = vmatpush1.msra.mxu0 0.0
      %4175 = vmatprep.subr.mxu0 0.0
      %4176 = vmatpush1.msra.mxu0 0.0
      %4177 = vmatprep.subr.mxu0 0.0
      %4178 = vmatpush1.msra.mxu0 0.0
      %4179 = vmatprep.subr.mxu0 0.0
      %4180 = vmatpush1.msra.mxu0 0.0
      %4181 = vmatprep.subr.mxu0 0.0
      %4182 = vmatpush1.msra.mxu0 0.0
      %4183 = vmatprep.subr.mxu0 0.0
      %4184 = vmatpush1.msra.mxu0 0.0
      %4185 = vmatprep.subr.mxu0 0.0
      %4186 = vmatpush1.msra.mxu0 0.0
      %4187 = vmatprep.subr.mxu0 0.0
      %4188 = vmatpush1.msra.mxu0 0.0
      %4189 = vmatprep.subr.mxu0 0.0
      %4190 = vmatpush1.msra.mxu0 0.0
      %4191 = vmatprep.subr.mxu0 0.0
      %4192 = vmatpush1.msra.mxu0 0.0
      %4193 = vmatprep.subr.mxu0 0.0
      %4194 = vmatpush1.msra.mxu0 0.0
      %4195 = vmatprep.subr.mxu0 0.0
      %4196 = vmatpush1.msra.mxu0 0.0
      %4197 = vmatprep.mubr.f32.mxu0 0.0
      %4198 = vmatmul.mubr.f32.gmra.mrb[0].mxu0 %v4033
      %v4199 = vpop.f32.mrb[0].mxu0
      %v4200 = vadd.f32 0.0, %v4199
      %v4201 = vpop.f32.mrb[0].mxu0
      %4202 = vmatprep.mubr.f32.mxu0 0.0
      %4203 = vmatmul.mubr.f32.gmra.mrb[0].mxu0 %v4036
      %v4204 = vpop.f32.mrb[0].mxu0
      %v4205 = vadd.f32 0.0, %v4204
      %v4206 = vpop.f32.mrb[0].mxu0
      %4207 = vmatprep.mubr.f32.mxu0 0.0
      %4208 = vmatmul.mubr.f32.gmra.mrb[0].mxu0 %v4039
      %v4209 = vpop.f32.mrb[0].mxu0
      %v4210 = vadd.f32 0.0, %v4209
      %v4211 = vpop.f32.mrb[0].mxu0
      %4212 = vmatprep.mubr.f32.mxu0 0.0
      %4213 = vmatmul.mubr.f32.gmra.mrb[0].mxu0 %v4042
      %v4214 = vpop.f32.mrb[0].mxu0
      %v4215 = vadd.f32 0.0, %v4214
      %v4216 = vpop.f32.mrb[0].mxu0
      %4217 = vdwg.mxu0
      %v4218 = vadd.f32 %v1617, %v4111
      %v4219 = vadd.f32 %v1618, %v4113
      %v4220 = vadd.f32 %v1619, %v4200
      %v4221 = vadd.f32 %v1620, %v4117
      %v4222 = vadd.f32 %v1621, %v4119
      %v4223 = vadd.f32 %v1622, %v4205
      %v4224 = vadd.f32 %v1623, %v4123
      %v4225 = vadd.f32 %v1624, %v4125
      %v4226 = vadd.f32 %v1625, %v4210
      %v4227 = vadd.f32 %v1626, %v4129
      %v4228 = vadd.f32 %v1627, %v4131
      %v4229 = vadd.f32 %v1628, %v4215
      %v4230 = vxor.u32 %v4218, 2147483648
      %v4231 = vxor.u32 %v4219, 2147483648
      %v4232 = vxor.u32 %v4220, 2147483648
      %v4233 = vxor.u32 %v4221, 2147483648
      %v4234 = vxor.u32 %v4222, 2147483648
      %v4235 = vxor.u32 %v4223, 2147483648
      %v4236 = vxor.u32 %v4224, 2147483648
      %v4237 = vxor.u32 %v4225, 2147483648
      %v4238 = vxor.u32 %v4226, 2147483648
      %v4239 = vxor.u32 %v4227, 2147483648
      %v4240 = vxor.u32 %v4228, 2147483648
      %v4241 = vxor.u32 %v4229, 2147483648
      %v4242 = vmul.f32 %v4230, 1.442695
      %v4243 = vpow.pop %v4242
      %v4244 = vmul.f32 %v4231, 1.442695
      %v4245 = vpow.pop %v4244
      %v4246 = vmul.f32 %v4232, 1.442695
      %v4247 = vpow.pop %v4246
      %v4248 = vmul.f32 %v4233, 1.442695
      %v4249 = vpow.pop %v4248
      %v4250 = vmul.f32 %v4234, 1.442695
      %v4251 = vpow.pop %v4250
      %v4252 = vmul.f32 %v4235, 1.442695
      %v4253 = vpow.pop %v4252
      %v4254 = vmul.f32 %v4236, 1.442695
      %v4255 = vpow.pop %v4254
      %v4256 = vmul.f32 %v4237, 1.442695
      %v4257 = vpow.pop %v4256
      %v4258 = vmul.f32 %v4238, 1.442695
      %v4259 = vpow.pop %v4258
      %v4260 = vmul.f32 %v4239, 1.442695
      %v4261 = vpow.pop %v4260
      %v4262 = vmul.f32 %v4240, 1.442695
      %v4263 = vpow.pop %v4262
      %v4264 = vmul.f32 %v4241, 1.442695
      %v4265 = vpow.pop %v4264
      %v4266 = vadd.f32 %v4243, 1.0
      %v4267 = vadd.f32 %v4245, 1.0
      %v4268 = vadd.f32 %v4247, 1.0
      %v4269 = vadd.f32 %v4249, 1.0
      %v4270 = vadd.f32 %v4251, 1.0
      %v4271 = vadd.f32 %v4253, 1.0
      %v4272 = vadd.f32 %v4255, 1.0
      %v4273 = vadd.f32 %v4257, 1.0
      %v4274 = vadd.f32 %v4259, 1.0
      %v4275 = vadd.f32 %v4261, 1.0
      %v4276 = vadd.f32 %v4263, 1.0
      %v4277 = vadd.f32 %v4265, 1.0
      %v4278 = vrcp.pop %v4266
      %v4279 = vmul.f32 1.0, %v4278
      %v4280 = vrcp.pop %v4267
      %v4281 = vmul.f32 1.0, %v4280
      %v4282 = vrcp.pop %v4268
      %v4283 = vmul.f32 1.0, %v4282
      %v4284 = vrcp.pop %v4269
      %v4285 = vmul.f32 1.0, %v4284
      %v4286 = vrcp.pop %v4270
      %v4287 = vmul.f32 1.0, %v4286
      %v4288 = vrcp.pop %v4271
      %v4289 = vmul.f32 1.0, %v4288
      %v4290 = vrcp.pop %v4272
      %v4291 = vmul.f32 1.0, %v4290
      %v4292 = vrcp.pop %v4273
      %v4293 = vmul.f32 1.0, %v4292
      %v4294 = vrcp.pop %v4274
      %v4295 = vmul.f32 1.0, %v4294
      %v4296 = vrcp.pop %v4275
      %v4297 = vmul.f32 1.0, %v4296
      %v4298 = vrcp.pop %v4276
      %v4299 = vmul.f32 1.0, %v4298
      %v4300 = vrcp.pop %v4277
      %v4301 = vmul.f32 1.0, %v4300
      %v4302 = vmul.f32 %v4218, %v4279
      %v4303 = vmul.f32 %v4219, %v4281
      %v4304 = vmul.f32 %v4220, %v4283
      %v4305 = vmul.f32 %v4221, %v4285
      %v4306 = vmul.f32 %v4222, %v4287
      %v4307 = vmul.f32 %v4223, %v4289
      %v4308 = vmul.f32 %v4224, %v4291
      %v4309 = vmul.f32 %v4225, %v4293
      %v4310 = vmul.f32 %v4226, %v4295
      %v4311 = vmul.f32 %v4227, %v4297
      %v4312 = vmul.f32 %v4228, %v4299
      %v4313 = vmul.f32 %v4229, %v4301
      %4314 = vst [vmem:[%s764] sm:$0xff] %v4302
      %4315 = vst [vmem:[%s764 + $0x8] sm:$0xff] %v4303
      %4316 = vst [vmem:[%s764 + $0x10] sm:$0xff] %v4304
      %4317 = vst [vmem:[%s764 + $0x18] sm:$0xff] %v4305
      %4318 = vst [vmem:[%s764 + $0x20] sm:$0xff] %v4306
      %4319 = vst [vmem:[%s764 + $0x28] sm:$0xff] %v4307
      %4320 = vst [vmem:[%s764 + $0x30] sm:$0xff] %v4308
      %4321 = vst [vmem:[%s764 + $0x38] sm:$0xff] %v4309
      %4322 = vst [vmem:[%s764 + $0x40] sm:$0xff] %v4310
      %4323 = vst [vmem:[%s764 + $0x48] sm:$0xff] %v4311
      %4324 = vst [vmem:[%s764 + $0x50] sm:$0xff] %v4312
      %4325 = vst [vmem:[%s764 + $0x58] sm:$0xff] %v4313
      %p4326 = scmp.lt.s32.totalorder %s36, 1
      %s4327 = scalar_select %p4326, %s36, 1
      %s4328 = smul.addr %s4327, 12
      %s4329 = smul.addr %s4328, 8
      %s4330 = scalar_lea.vmem %s25, %s4329
      // Predicated region
      $region121: #{_lambda_.1} parent=119 // pred_check
        %p4331 = pneg %p584
      $region122: #{_lambda_.1} parent=119 // pred_check_branch
        %4333 = sbr.rel (%p4331) target = $region124
      $region123: #{_lambda_.1} parent=119 // pred_region
        _
      $region124: #{_lambda_.1} parent=119 // pred_fallthru
        _
    $region120: #{_lambda_.1} parent=5 // pred_fallthru
      _
    %p4334 = scmp.le.s32.totalorder 2, %s31
    // Predicated region
    $region125: #{_lambda_.1} parent=5 // pred_check
      %p4335 = pneg %p4334
    $region126: #{_lambda_.1} parent=5 // pred_check_branch
      %4337 = sbr.rel (%p4335) target = $region128
    $region127: #{_lambda_.1} parent=5 // pred_region
      %s4338 = ssub.s32 %s31, 2
      // Predicated region
      $region129: #{_lambda_.1} parent=127 // pred_check
        %p4339 = pneg %p590
      $region130: #{_lambda_.1} parent=127 // pred_check_branch
        %4341 = sbr.rel (%p4339) target = $region132
      $region131: #{_lambda_.1} parent=127 // pred_region
        %p4342 = scmp.lt.s32.totalorder %s37, 1
        %s4343 = scalar_select %p4342, %s37, 1
        %s4344 = smul.addr %s4343, 12
        %s4345 = smul.addr %s4344, 8
        %s4346 = scalar_lea.vmem %s25, %s4345
      $region132: #{_lambda_.1} parent=127 // pred_fallthru
        _
    $region128: #{_lambda_.1} parent=5 // pred_fallthru
      _
  $region6: #{_lambda_.1} parent=0 // loop_footer
    %s35 = sadd.s32 1, %s31
  $region7: #{_lambda_.1} parent=0 // loop_footer_branch
    %30 = sbr.rel target = $region3
  $region8: #{_lambda_.1} parent=0 // loop_exit
    _

</llo_original>
